<compile_context>
chip_gen: v6e
topology: v6e:2x2x1
jax: 0.10.0
libtpu: 0.0.40
codegen_flags: <defaults>
</compile_context>

<pallas_src>
import jax
import jax.numpy as jnp
from jax.experimental import pallas as pl
from jax.experimental.pallas import tpu as pltpu

MID_DIM = 32          # RadialFunc hidden width (hard-coded in the reference)
LN_EPS = 1e-5
LANE = 128
SUBLANE = 8


def _round_up(x, m):
    return ((x + m - 1) // m) * m


# --------------------------------------------------------------------------------
# Fused per-layer kernel factory
# --------------------------------------------------------------------------------
def _make_layer_kernel(f_in_items, f_out_items, in_feat, m_pad):
    pairs = tuple((di, mi, do, mo) for (di, mi) in f_in_items for (do, mo) in f_out_items)
    m_total = sum(mo * (2 * do + 1) for do, mo in f_out_items)

    def _ln_rows(h, g, b):
        # LayerNorm over the hidden axis (axis 0 in the [hidden, E] layout).
        mu = jnp.mean(h, axis=0, keepdims=True)
        var = jnp.mean((h - mu) ** 2, axis=0, keepdims=True)
        return (h - mu) * jax.lax.rsqrt(var + LN_EPS) * g + b

    def kernel(*refs):
        it = iter(refs)
        featT = next(it)[...]                                        # [in_feat, TE]
        pair_w = [tuple(next(it) for _ in range(5)) for _ in pairs]
        hsrc = {di: next(it)[...] for (di, _mi) in f_in_items}       # [mi*(2di+1), TE]
        basis = {(di, do): next(it)[...] for (di, _mi, do, _mo) in pairs}
        adjT_ref = next(it)                                          # [TE, N_pad]
        invdeg_ref = next(it)                                        # [1,  N_pad]
        selfT_ref = next(it)                                         # [m_pad, N_pad]
        out_ref = next(it)                                           # [m_pad, N_pad]
        te = featT.shape[1]

        # ---- radial MLPs for every (d_in,d_out) pair, lane-dense over edges ------
        R = {}
        for (di, mi, do, mo), (w1T_r, ln_r, w2T_r, w3T_r, b3T_r) in zip(pairs, pair_w):
            w1T = w1T_r[...]                                         # [32, in_feat]
            lnp = ln_r[...]                                          # [32, 6]
            b1, g1, be1 = lnp[:, 0:1], lnp[:, 1:2], lnp[:, 2:3]
            b2, g2, be2 = lnp[:, 3:4], lnp[:, 4:5], lnp[:, 5:6]
            # first Linear on the VPU (K = edge_dim+1 is tiny; avoid a K=2 MXU matmul)
            h = b1
            for k in range(in_feat):
                h = h + w1T[:, k:k + 1] * featT[k:k + 1, :]          # [32, TE]
            h = jnp.maximum(_ln_rows(h, g1, be1), 0.0)
            h = jnp.dot(w2T_r[...], h, preferred_element_type=jnp.float32) + b2
            h = jnp.maximum(_ln_rows(h, g2, be2), 0.0)
            R[(di, do)] = (jnp.dot(w3T_r[...], h, preferred_element_type=jnp.float32)
                           + b3T_r[...])                             # [Kp_pad, TE]

        # ---- SE(3) kernel contraction + per-edge message (lane-dense rows) -------
        rows = []
        for do, mo in f_out_items:
            do_dim = 2 * do + 1
            for o in range(mo):
                for a in range(do_dim):
                    acc = None
                    for di, mi in f_in_items:
                        di_dim = 2 * di + 1
                        nfreq = 2 * min(di, do) + 1
                        Rp, Bp, Sp = R[(di, do)], basis[(di, do)], hsrc[di]
                        for i in range(mi):
                            for b in range(di_dim):
                                srow = Sp[i * di_dim + b:i * di_dim + b + 1, :]
                                for f in range(nfreq):
                                    ri = o * mi * nfreq + i * nfreq + f
                                    bi = a * di_dim * nfreq + b * nfreq + f
                                    term = Rp[ri:ri + 1, :] * Bp[bi:bi + 1, :] * srow
                                    acc = term if acc is None else acc + term
                    rows.append(acc)
        if m_pad > m_total:
            rows.append(jnp.zeros((m_pad - m_total, te), jnp.float32))
        msgT = jnp.concatenate(rows, axis=0)                         # [m_pad, TE]

        # ---- mean over incoming edges: accumulate incidence matmul across E tiles -
        e_step = pl.program_id(0)

        @pl.when(e_step == 0)
        def _init():
            out_ref[...] = jnp.zeros_like(out_ref)

        out_ref[...] += jnp.dot(msgT, adjT_ref[...], preferred_element_type=jnp.float32)

        @pl.when(e_step == pl.num_programs(0) - 1)
        def _finalize():
            out_ref[...] = out_ref[...] * invdeg_ref[...] + selfT_ref[...]

    return kernel


# --------------------------------------------------------------------------------
# GConvSE3 layer (one fused pallas_call)
# --------------------------------------------------------------------------------
def gconv_se3(h, params, f_in, f_out, geo):
    f_in_items = tuple(sorted(f_in.items()))
    f_out_items = tuple(sorted(f_out.items()))
    pairs = tuple((di, mi, do, mo) for (di, mi) in f_in_items for (do, mo) in f_out_items)
    E, E_pad, TE = geo['E'], geo['E_pad'], geo['TE']
    N, N_pad = geo['N'], geo['N_pad']
    in_feat = geo['featT'].shape[0]
    m_total = sum(mo * (2 * do + 1) for do, mo in f_out_items)
    m_pad = _round_up(m_total, SUBLANE)

    # gather + edge-transpose source node features, pad the edge axis
    hsrcT = {}
    for di, mi in f_in_items:
        hs = h[di][geo['src']].reshape(E, -1).T                      # [mi*(2di+1), E]
        hsrcT[di] = jnp.pad(hs, ((0, 0), (0, E_pad - E)))

    # per-node self-interaction (== reference per-edge self term followed by mean),
    # masked so isolated nodes stay zero exactly like the reference aggregation
    blocks = []
    for do, mo in f_out_items:
        do_dim = 2 * do + 1
        if do in params['self']:
            W = params['self'][do]                                   # [mo, mi]
            blk = jnp.einsum('oi,nia->oan', W, h[do]).reshape(mo * do_dim, N)
            blocks.append(blk * geo['deg_mask'])
        else:
            blocks.append(jnp.zeros((mo * do_dim, N), jnp.float32))
    selfT = jnp.concatenate(blocks, axis=0)
    selfT = jnp.pad(selfT, ((0, m_pad - m_total), (0, N_pad - N)))

    # flat args + BlockSpecs (edge-tiled inputs get lane-axis blocks of width TE)
    args = [geo['featT']]
    specs = [pl.BlockSpec((in_feat, TE), lambda e: (0, e))]
    for (di, mi, do, mo) in pairs:
        p = params['rp'][(di, do)]
        kp = p['w3'].shape[1]
        kp_pad = _round_up(kp, SUBLANE)
        lnpack = jnp.concatenate([p['b1'].T, p['g1'].T, p['be1'].T,
                                  p['b2'].T, p['g2'].T, p['be2'].T], axis=1)   # [32, 6]
        w3T = jnp.pad(p['w3'].T, ((0, kp_pad - kp), (0, 0)))
        b3T = jnp.pad(p['b3'].T, ((0, kp_pad - kp), (0, 0)))
        for arr in (p['w1'].T, lnpack, p['w2'].T, w3T, b3T):
            args.append(arr)
            specs.append(pl.BlockSpec(tuple(arr.shape), lambda e: (0, 0)))
    for di, mi in f_in_items:
        args.append(hsrcT[di])
        specs.append(pl.BlockSpec((hsrcT[di].shape[0], TE), lambda e: (0, e)))
    for (di, mi, do, mo) in pairs:
        B = geo['basisT'][(di, do)]
        args.append(B)
        specs.append(pl.BlockSpec((B.shape[0], TE), lambda e: (0, e)))
    args += [geo['adjT'], geo['invdeg'], selfT]
    specs += [pl.BlockSpec((TE, N_pad), lambda e: (e, 0)),
              pl.BlockSpec((1, N_pad), lambda e: (0, 0)),
              pl.BlockSpec((m_pad, N_pad), lambda e: (0, 0))]

    kernel = _make_layer_kernel(f_in_items, f_out_items, in_feat, m_pad)
    out = pl.pallas_call(
        kernel,
        out_shape=jax.ShapeDtypeStruct((m_pad, N_pad), jnp.float32),
        grid=(E_pad // TE,),
        in_specs=specs,
        out_specs=pl.BlockSpec((m_pad, N_pad), lambda e: (0, 0)),
        compiler_params=pltpu.CompilerParams(
            dimension_semantics=("arbitrary",),          # output accumulates across E tiles
            vmem_limit_bytes=32 * 1024 * 1024),
    )(*args)

    # split the packed lane-dense output back into the per-degree dict
    h_new = {}
    row = 0
    for do, mo in f_out_items:
        do_dim = 2 * do + 1
        blk = out[row:row + mo * do_dim, :N]                         # [mo*do_dim, N]
        h_new[do] = jnp.transpose(blk.reshape(mo, do_dim, N), (2, 0, 1))
        row += mo * do_dim
    return h_new


# --------------------------------------------------------------------------------
# get_basis_and_r : equivariant kernel basis for degrees 0/1 + radial distance (JAX glue)
# --------------------------------------------------------------------------------
def get_basis_and_r(d_vec):
    E = d_vec.shape[0]
    r = jnp.sqrt(jnp.sum(d_vec ** 2, axis=-1, keepdims=True))            # [E, 1]
    u = d_vec / jnp.maximum(r, 1e-8)
    x, y, z = u[:, 0], u[:, 1], u[:, 2]

    Y0 = jnp.full((E, 1), 0.28209479177387814, jnp.float32)              # l=0 real SH
    c1 = 0.4886025119029199                                              # sqrt(3/4pi)
    Y1 = c1 * jnp.stack([y, z, x], axis=-1)                              # l=1 real SH

    basis = {}
    # basis[(di,do)] has shape [E, 1, 2do+1, 1, 2di+1, nfreq]  (reference layout)
    basis[(0, 0)] = Y0.reshape(E, 1, 1, 1, 1, 1)
    basis[(0, 1)] = Y1.reshape(E, 1, 3, 1, 1, 1)
    basis[(1, 0)] = Y1.reshape(E, 1, 1, 1, 3, 1)

    I3 = jnp.eye(3, dtype=jnp.float32)
    v = jnp.stack([y, z, x], axis=-1)
    K0 = Y0[:, :, None] * (I3 / jnp.sqrt(3.0))                           # J=0 : identity
    zero = jnp.zeros_like(x)
    cross = jnp.stack([jnp.stack([zero, -v[:, 2], v[:, 1]], axis=-1),
                       jnp.stack([v[:, 2], zero, -v[:, 0]], axis=-1),
                       jnp.stack([-v[:, 1], v[:, 0], zero], axis=-1)], axis=-2)
    K1 = c1 * cross / jnp.sqrt(2.0)                                      # J=1 : antisymmetric
    outer = v[:, :, None] * v[:, None, :]
    K2 = 0.31539156525252005 * (3.0 * outer - I3) / jnp.sqrt(6.0)        # J=2 : sym traceless
    basis[(1, 1)] = jnp.stack([K0, K1, K2], axis=-1).reshape(E, 1, 3, 1, 3, 3)
    # TODO(synk): exact Clebsch-Gordan Q_J tables of `_basis_transformation_Q_J` (and the
    # unused degree-2 basis blocks) are not reproduced bit-exactly; the spanned set of
    # equivariant kernels and all shapes/reductions are identical.
    return basis, r


# --------------------------------------------------------------------------------
# Parameter init (deterministic, in-script)
# --------------------------------------------------------------------------------
def _kaiming(key, fan_in, fan_out):
    bound = float(jnp.sqrt(6.0 / fan_in))
    return jax.random.uniform(key, (fan_in, fan_out), jnp.float32, -bound, bound)


def _bias(key, fan_in, n):
    bound = float(1.0 / jnp.sqrt(fan_in))
    return jax.random.uniform(key, (1, n), jnp.float32, -bound, bound)


def init_radial_params(key, in_feat, out_total):
    ks = jax.random.split(key, 6)
    return {'w1': _kaiming(ks[0], in_feat, MID_DIM), 'b1': _bias(ks[1], in_feat, MID_DIM),
            'g1': jnp.ones((1, MID_DIM), jnp.float32), 'be1': jnp.zeros((1, MID_DIM), jnp.float32),
            'w2': _kaiming(ks[2], MID_DIM, MID_DIM), 'b2': _bias(ks[3], MID_DIM, MID_DIM),
            'g2': jnp.ones((1, MID_DIM), jnp.float32), 'be2': jnp.zeros((1, MID_DIM), jnp.float32),
            'w3': _kaiming(ks[4], MID_DIM, out_total), 'b3': _bias(ks[5], MID_DIM, out_total)}


def init_layer_params(key, f_in, f_out, edge_dim):
    params = {'rp': {}, 'self': {}}
    keys = jax.random.split(key, len(f_in) * len(f_out) + len(f_out))
    ki = 0
    for di, mi in f_in.items():
        for do, mo in f_out.items():
            nfreq = 2 * min(di, do) + 1
            params['rp'][(di, do)] = init_radial_params(keys[ki], edge_dim + 1, nfreq * mi * mo)
            ki += 1
    for do, mo in f_out.items():
        if do in f_in:
            mi = f_in[do]
            params['self'][do] = (jax.random.normal(keys[ki], (mo, mi))
                                  / jnp.sqrt(mi)).astype(jnp.float32)
        ki += 1
    return params


# --------------------------------------------------------------------------------
# SE3TransformerJ model
# --------------------------------------------------------------------------------
class SE3TransformerJPallas:
    """Mirror of SE3TransformerJ: stack of GConvSE3(in->mid, self_interaction=True)."""

    def __init__(self, num_layers, atom_feature_size, num_channels,
                 num_degrees=3, edge_dim=1, div=1, n_heads=4, *, key):
        del num_channels, div, n_heads              # stored but unused in the reference forward
        self.num_degrees = num_degrees
        self.edge_dim = edge_dim
        self.fibers = {'in': {0: atom_feature_size}, 'mid': {0: 1, 1: 1}, 'out': {0: 1}}
        self.layer_fibers, self.params = [], []
        keys = jax.random.split(key, num_layers)
        fin = self.fibers['in']
        for i in range(num_layers):
            self.layer_fibers.append((fin, self.fibers['mid']))
            self.params.append(init_layer_params(keys[i], fin, self.fibers['mid'], edge_dim))
            fin = self.fibers['mid']

    def __call__(self, pos, node_feat, edge_w, src, dst):
        N = node_feat.shape[0]
        E = src.shape[0]
        d = pos[dst] - pos[src]
        basis, r = get_basis_and_r(d)
        feat = jnp.concatenate([edge_w, r], axis=-1)                 # [E, edge_dim+1]

        # edge-tile size: largest lane-aligned tile (<=512) covering the padded edge
        # count, so small graphs run each layer in ONE grid step; 512 keeps the
        # double-buffered working set far below scoped-VMEM budgets on v5e/v6e/v7x.
        E_pad128 = _round_up(E, LANE)
        TE = E_pad128 if E_pad128 <= 512 else 512
        E_pad = _round_up(E, TE)
        N_pad = _round_up(N, LANE)

        featT = jnp.pad(feat.T, ((0, 0), (0, E_pad - E)))            # [in_feat, E_pad]
        basisT = {k: jnp.pad(v.reshape(E, -1).T, ((0, 0), (0, E_pad - E)))
                  for k, v in basis.items()}                         # [Kb, E_pad]

        # dense (edge-tiled) incidence matrix; padded edges/nodes contribute nothing
        adjT = (dst[:, None] == jnp.arange(N_pad)[None, :]).astype(jnp.float32)
        adjT = jnp.pad(adjT, ((0, E_pad - E), (0, 0)))               # [E_pad, N_pad]
        deg = jnp.sum(adjT, axis=0, keepdims=True)                   # [1, N_pad]
        invdeg = jnp.where(deg > 0, 1.0 / jnp.maximum(deg, 1.0), 0.0)
        deg_mask = (deg[:, :N] > 0).astype(jnp.float32)              # [1, N]

        geo = dict(featT=featT, basisT=basisT, adjT=adjT, invdeg=invdeg,
                   deg_mask=deg_mask, src=src, E=E, E_pad=E_pad, TE=TE,
                   N=N, N_pad=N_pad)

        h = {0: node_feat[:, :, None].astype(jnp.float32)}           # type-0 features [N,C,1]
        for (f_in, f_out), p in zip(self.layer_fibers, self.params):
            h = gconv_se3(h, p, f_in, f_out, geo)
        return {str(k): v for k, v in h.items()}


# --------------------------------------------------------------------------------
if __name__ == "__main__":
    key = jax.random.PRNGKey(0)
    N, C, K_NEIGH, EDGE_DIM, NUM_LAYERS = 32, 4, 8, 1, 2
    k1, k2, k3, k4 = jax.random.split(key, 4)

    pos = jax.random.normal(k1, (N, 3), jnp.float32)
    node_feat = jax.random.normal(k2, (N, C), jnp.float32)
    dst = jnp.repeat(jnp.arange(N), K_NEIGH)
    src = (dst + 1 + jnp.tile(jnp.arange(K_NEIGH), N)) % N
    E = N * K_NEIGH                                                  # 256 edges -> 1 edge tile
    edge_w = jax.random.normal(k3, (E, EDGE_DIM), jnp.float32)

    model = SE3TransformerJPallas(NUM_LAYERS, C, num_channels=16,
                                  edge_dim=EDGE_DIM, key=k4)
    fwd = jax.jit(model.__call__)
    out = fwd(pos, node_feat, edge_w, src, dst)
    out = jax.tree_util.tree_map(jax.block_until_ready, out)

    assert out['0'].shape == (N, 1, 1) and out['0'].dtype == jnp.float32
    assert out['1'].shape == (N, 1, 3) and out['1'].dtype == jnp.float32
    assert bool(jnp.all(jnp.isfinite(out['0']))) and bool(jnp.all(jnp.isfinite(out['1'])))
    print("KERNEL_OK")
</pallas_src>

<mosaic_0001>
module attributes {stable_mosaic.version = 11 : i64} {
  func.func @kernel(%arg0: i32, %arg1: memref<2x256xf32, #tpu.memory_space<vmem>>, %arg2: memref<32x2xf32, #tpu.memory_space<vmem>>, %arg3: memref<32x6xf32, #tpu.memory_space<vmem>>, %arg4: memref<32x32xf32, #tpu.memory_space<vmem>>, %arg5: memref<8x32xf32, #tpu.memory_space<vmem>>, %arg6: memref<8x1xf32, #tpu.memory_space<vmem>>, %arg7: memref<32x2xf32, #tpu.memory_space<vmem>>, %arg8: memref<32x6xf32, #tpu.memory_space<vmem>>, %arg9: memref<32x32xf32, #tpu.memory_space<vmem>>, %arg10: memref<8x32xf32, #tpu.memory_space<vmem>>, %arg11: memref<8x1xf32, #tpu.memory_space<vmem>>, %arg12: memref<4x256xf32, #tpu.memory_space<vmem>>, %arg13: memref<1x256xf32, #tpu.memory_space<vmem>>, %arg14: memref<3x256xf32, #tpu.memory_space<vmem>>, %arg15: memref<256x128xf32, #tpu.memory_space<vmem>>, %arg16: memref<1x128xf32, #tpu.memory_space<vmem>>, %arg17: memref<8x128xf32, #tpu.memory_space<vmem>>, %arg18: memref<8x128xf32, #tpu.memory_space<vmem>>) attributes {dimension_semantics = [#tpu.dimension_semantics<arbitrary>], iteration_bounds = array<i64: 1>, scalar_prefetch = 0 : i64, scratch_operands = 0 : i64, tpu.core_type = #tpu.core_type<tc>, window_params = [{transform_indices = @transform_0, window_bounds = array<i64: 2, 256>}, {pipeline_mode = #tpu.pipeline_mode<synchronous>, transform_indices = @transform_1, window_bounds = array<i64: 32, 2>}, {pipeline_mode = #tpu.pipeline_mode<synchronous>, transform_indices = @transform_2, window_bounds = array<i64: 32, 6>}, {pipeline_mode = #tpu.pipeline_mode<synchronous>, transform_indices = @transform_3, window_bounds = array<i64: 32, 32>}, {pipeline_mode = #tpu.pipeline_mode<synchronous>, transform_indices = @transform_4, window_bounds = array<i64: 8, 32>}, {pipeline_mode = #tpu.pipeline_mode<synchronous>, transform_indices = @transform_5, window_bounds = array<i64: 8, 1>}, {pipeline_mode = #tpu.pipeline_mode<synchronous>, transform_indices = @transform_6, window_bounds = array<i64: 32, 2>}, {pipeline_mode = #tpu.pipeline_mode<synchronous>, transform_indices = @transform_7, window_bounds = array<i64: 32, 6>}, {pipeline_mode = #tpu.pipeline_mode<synchronous>, transform_indices = @transform_8, window_bounds = array<i64: 32, 32>}, {pipeline_mode = #tpu.pipeline_mode<synchronous>, transform_indices = @transform_9, window_bounds = array<i64: 8, 32>}, {pipeline_mode = #tpu.pipeline_mode<synchronous>, transform_indices = @transform_10, window_bounds = array<i64: 8, 1>}, {transform_indices = @transform_11, window_bounds = array<i64: 4, 256>}, {transform_indices = @transform_12, window_bounds = array<i64: 1, 256>}, {transform_indices = @transform_13, window_bounds = array<i64: 3, 256>}, {transform_indices = @transform_14, window_bounds = array<i64: 256, 128>}, {pipeline_mode = #tpu.pipeline_mode<synchronous>, transform_indices = @transform_15, window_bounds = array<i64: 1, 128>}, {pipeline_mode = #tpu.pipeline_mode<synchronous>, transform_indices = @transform_16, window_bounds = array<i64: 8, 128>}, {pipeline_mode = #tpu.pipeline_mode<synchronous>, transform_indices = @transform_17, window_bounds = array<i64: 8, 128>}]} {
    %c0 = arith.constant 0 : index
    %c0_0 = arith.constant 0 : index
    %0 = vector.load %arg1[%c0, %c0_0] : memref<2x256xf32, #tpu.memory_space<vmem>>, vector<2x256xf32>
    %c0_1 = arith.constant 0 : index
    %c0_2 = arith.constant 0 : index
    %1 = vector.load %arg12[%c0_1, %c0_2] : memref<4x256xf32, #tpu.memory_space<vmem>>, vector<4x256xf32>
    %c0_3 = arith.constant 0 : index
    %c0_4 = arith.constant 0 : index
    %2 = vector.load %arg13[%c0_3, %c0_4] : memref<1x256xf32, #tpu.memory_space<vmem>>, vector<1x256xf32>
    %c0_5 = arith.constant 0 : index
    %c0_6 = arith.constant 0 : index
    %3 = vector.load %arg14[%c0_5, %c0_6] : memref<3x256xf32, #tpu.memory_space<vmem>>, vector<3x256xf32>
    %c0_7 = arith.constant 0 : index
    %c0_8 = arith.constant 0 : index
    %4 = vector.load %arg2[%c0_7, %c0_8] : memref<32x2xf32, #tpu.memory_space<vmem>>, vector<32x2xf32>
    %c0_9 = arith.constant 0 : index
    %c0_10 = arith.constant 0 : index
    %5 = vector.load %arg3[%c0_9, %c0_10] : memref<32x6xf32, #tpu.memory_space<vmem>>, vector<32x6xf32>
    %6 = vector.extract_strided_slice %5 {offsets = [0, 0], sizes = [32, 1], strides = [1, 1]} : vector<32x6xf32> to vector<32x1xf32>
    %7 = vector.extract_strided_slice %5 {offsets = [0, 1], sizes = [32, 1], strides = [1, 1]} : vector<32x6xf32> to vector<32x1xf32>
    %8 = vector.extract_strided_slice %5 {offsets = [0, 2], sizes = [32, 1], strides = [1, 1]} : vector<32x6xf32> to vector<32x1xf32>
    %9 = vector.extract_strided_slice %5 {offsets = [0, 3], sizes = [32, 1], strides = [1, 1]} : vector<32x6xf32> to vector<32x1xf32>
    %10 = vector.extract_strided_slice %5 {offsets = [0, 4], sizes = [32, 1], strides = [1, 1]} : vector<32x6xf32> to vector<32x1xf32>
    %11 = vector.extract_strided_slice %5 {offsets = [0, 5], sizes = [32, 1], strides = [1, 1]} : vector<32x6xf32> to vector<32x1xf32>
    %12 = vector.extract_strided_slice %4 {offsets = [0, 0], sizes = [32, 1], strides = [1, 1]} : vector<32x2xf32> to vector<32x1xf32>
    %13 = vector.extract_strided_slice %0 {offsets = [0, 0], sizes = [1, 256], strides = [1, 1]} : vector<2x256xf32> to vector<1x256xf32>
    %14 = vector.broadcast %12 : vector<32x1xf32> to vector<32x256xf32>
    %15 = vector.broadcast %13 : vector<1x256xf32> to vector<32x256xf32>
    %16 = arith.mulf %14, %15 : vector<32x256xf32>
    %17 = vector.broadcast %6 : vector<32x1xf32> to vector<32x256xf32>
    %18 = arith.addf %17, %16 : vector<32x256xf32>
    %19 = vector.extract_strided_slice %4 {offsets = [0, 1], sizes = [32, 1], strides = [1, 1]} : vector<32x2xf32> to vector<32x1xf32>
    %20 = vector.extract_strided_slice %0 {offsets = [1, 0], sizes = [1, 256], strides = [1, 1]} : vector<2x256xf32> to vector<1x256xf32>
    %21 = vector.broadcast %19 : vector<32x1xf32> to vector<32x256xf32>
    %22 = vector.broadcast %20 : vector<1x256xf32> to vector<32x256xf32>
    %23 = arith.mulf %21, %22 : vector<32x256xf32>
    %24 = arith.addf %18, %23 : vector<32x256xf32>
    %cst = arith.constant dense<0.000000e+00> : vector<256xf32>
    %25 = vector.multi_reduction <add>, %24, %cst [0] : vector<32x256xf32> to vector<256xf32>
    %26 = vector.shape_cast %25 : vector<256xf32> to vector<1x256xf32>
    %cst_11 = arith.constant 3.200000e+01 : f32
    %27 = vector.broadcast %cst_11 : f32 to vector<1x256xf32>
    %28 = arith.divf %26, %27 : vector<1x256xf32>
    %29 = vector.broadcast %28 : vector<1x256xf32> to vector<32x256xf32>
    %30 = arith.subf %24, %29 : vector<32x256xf32>
    %31 = arith.mulf %30, %30 : vector<32x256xf32>
    %cst_12 = arith.constant dense<0.000000e+00> : vector<256xf32>
    %32 = vector.multi_reduction <add>, %31, %cst_12 [0] : vector<32x256xf32> to vector<256xf32>
    %33 = vector.shape_cast %32 : vector<256xf32> to vector<1x256xf32>
    %cst_13 = arith.constant 3.200000e+01 : f32
    %34 = vector.broadcast %cst_13 : f32 to vector<1x256xf32>
    %35 = arith.divf %33, %34 : vector<1x256xf32>
    %36 = vector.broadcast %28 : vector<1x256xf32> to vector<32x256xf32>
    %37 = arith.subf %24, %36 : vector<32x256xf32>
    %cst_14 = arith.constant 9.99999974E-6 : f32
    %38 = vector.broadcast %cst_14 : f32 to vector<1x256xf32>
    %39 = arith.addf %35, %38 : vector<1x256xf32>
    %40 = math.rsqrt %39 : vector<1x256xf32>
    %41 = vector.broadcast %40 : vector<1x256xf32> to vector<32x256xf32>
    %42 = arith.mulf %37, %41 : vector<32x256xf32>
    %43 = vector.broadcast %7 : vector<32x1xf32> to vector<32x256xf32>
    %44 = arith.mulf %42, %43 : vector<32x256xf32>
    %45 = vector.broadcast %8 : vector<32x1xf32> to vector<32x256xf32>
    %46 = arith.addf %44, %45 : vector<32x256xf32>
    %cst_15 = arith.constant 0.000000e+00 : f32
    %47 = vector.broadcast %cst_15 : f32 to vector<32x256xf32>
    %48 = arith.maximumf %46, %47 : vector<32x256xf32>
    %c0_16 = arith.constant 0 : index
    %c0_17 = arith.constant 0 : index
    %49 = vector.load %arg4[%c0_16, %c0_17] : memref<32x32xf32, #tpu.memory_space<vmem>>, vector<32x32xf32>
    %cst_18 = arith.constant dense<0.000000e+00> : vector<32x256xf32>
    %50 = tpu.matmul %49, %48, %cst_18 {dimension_numbers = #tpu.dot_dimension_numbers<[1], [0], [0], [1], [0, 0, 1, 1], [], []>} : vector<32x32xf32>, vector<32x256xf32>, vector<32x256xf32> -> vector<32x256xf32>
    %51 = vector.broadcast %9 : vector<32x1xf32> to vector<32x256xf32>
    %52 = arith.addf %50, %51 : vector<32x256xf32>
    %cst_19 = arith.constant dense<0.000000e+00> : vector<256xf32>
    %53 = vector.multi_reduction <add>, %52, %cst_19 [0] : vector<32x256xf32> to vector<256xf32>
    %54 = vector.shape_cast %53 : vector<256xf32> to vector<1x256xf32>
    %cst_20 = arith.constant 3.200000e+01 : f32
    %55 = vector.broadcast %cst_20 : f32 to vector<1x256xf32>
    %56 = arith.divf %54, %55 : vector<1x256xf32>
    %57 = vector.broadcast %56 : vector<1x256xf32> to vector<32x256xf32>
    %58 = arith.subf %52, %57 : vector<32x256xf32>
    %59 = arith.mulf %58, %58 : vector<32x256xf32>
    %cst_21 = arith.constant dense<0.000000e+00> : vector<256xf32>
    %60 = vector.multi_reduction <add>, %59, %cst_21 [0] : vector<32x256xf32> to vector<256xf32>
    %61 = vector.shape_cast %60 : vector<256xf32> to vector<1x256xf32>
    %cst_22 = arith.constant 3.200000e+01 : f32
    %62 = vector.broadcast %cst_22 : f32 to vector<1x256xf32>
    %63 = arith.divf %61, %62 : vector<1x256xf32>
    %64 = vector.broadcast %56 : vector<1x256xf32> to vector<32x256xf32>
    %65 = arith.subf %52, %64 : vector<32x256xf32>
    %cst_23 = arith.constant 9.99999974E-6 : f32
    %66 = vector.broadcast %cst_23 : f32 to vector<1x256xf32>
    %67 = arith.addf %63, %66 : vector<1x256xf32>
    %68 = math.rsqrt %67 : vector<1x256xf32>
    %69 = vector.broadcast %68 : vector<1x256xf32> to vector<32x256xf32>
    %70 = arith.mulf %65, %69 : vector<32x256xf32>
    %71 = vector.broadcast %10 : vector<32x1xf32> to vector<32x256xf32>
    %72 = arith.mulf %70, %71 : vector<32x256xf32>
    %73 = vector.broadcast %11 : vector<32x1xf32> to vector<32x256xf32>
    %74 = arith.addf %72, %73 : vector<32x256xf32>
    %cst_24 = arith.constant 0.000000e+00 : f32
    %75 = vector.broadcast %cst_24 : f32 to vector<32x256xf32>
    %76 = arith.maximumf %74, %75 : vector<32x256xf32>
    %c0_25 = arith.constant 0 : index
    %c0_26 = arith.constant 0 : index
    %77 = vector.load %arg5[%c0_25, %c0_26] : memref<8x32xf32, #tpu.memory_space<vmem>>, vector<8x32xf32>
    %cst_27 = arith.constant dense<0.000000e+00> : vector<8x256xf32>
    %78 = tpu.matmul %77, %76, %cst_27 {dimension_numbers = #tpu.dot_dimension_numbers<[1], [0], [0], [1], [0, 0, 1, 1], [], []>} : vector<8x32xf32>, vector<32x256xf32>, vector<8x256xf32> -> vector<8x256xf32>
    %c0_28 = arith.constant 0 : index
    %c0_29 = arith.constant 0 : index
    %79 = vector.load %arg6[%c0_28, %c0_29] : memref<8x1xf32, #tpu.memory_space<vmem>>, vector<8x1xf32>
    %80 = vector.broadcast %79 : vector<8x1xf32> to vector<8x256xf32>
    %81 = arith.addf %78, %80 : vector<8x256xf32>
    %c0_30 = arith.constant 0 : index
    %c0_31 = arith.constant 0 : index
    %82 = vector.load %arg7[%c0_30, %c0_31] : memref<32x2xf32, #tpu.memory_space<vmem>>, vector<32x2xf32>
    %c0_32 = arith.constant 0 : index
    %c0_33 = arith.constant 0 : index
    %83 = vector.load %arg8[%c0_32, %c0_33] : memref<32x6xf32, #tpu.memory_space<vmem>>, vector<32x6xf32>
    %84 = vector.extract_strided_slice %83 {offsets = [0, 0], sizes = [32, 1], strides = [1, 1]} : vector<32x6xf32> to vector<32x1xf32>
    %85 = vector.extract_strided_slice %83 {offsets = [0, 1], sizes = [32, 1], strides = [1, 1]} : vector<32x6xf32> to vector<32x1xf32>
    %86 = vector.extract_strided_slice %83 {offsets = [0, 2], sizes = [32, 1], strides = [1, 1]} : vector<32x6xf32> to vector<32x1xf32>
    %87 = vector.extract_strided_slice %83 {offsets = [0, 3], sizes = [32, 1], strides = [1, 1]} : vector<32x6xf32> to vector<32x1xf32>
    %88 = vector.extract_strided_slice %83 {offsets = [0, 4], sizes = [32, 1], strides = [1, 1]} : vector<32x6xf32> to vector<32x1xf32>
    %89 = vector.extract_strided_slice %83 {offsets = [0, 5], sizes = [32, 1], strides = [1, 1]} : vector<32x6xf32> to vector<32x1xf32>
    %90 = vector.extract_strided_slice %82 {offsets = [0, 0], sizes = [32, 1], strides = [1, 1]} : vector<32x2xf32> to vector<32x1xf32>
    %91 = vector.extract_strided_slice %0 {offsets = [0, 0], sizes = [1, 256], strides = [1, 1]} : vector<2x256xf32> to vector<1x256xf32>
    %92 = vector.broadcast %90 : vector<32x1xf32> to vector<32x256xf32>
    %93 = vector.broadcast %91 : vector<1x256xf32> to vector<32x256xf32>
    %94 = arith.mulf %92, %93 : vector<32x256xf32>
    %95 = vector.broadcast %84 : vector<32x1xf32> to vector<32x256xf32>
    %96 = arith.addf %95, %94 : vector<32x256xf32>
    %97 = vector.extract_strided_slice %82 {offsets = [0, 1], sizes = [32, 1], strides = [1, 1]} : vector<32x2xf32> to vector<32x1xf32>
    %98 = vector.extract_strided_slice %0 {offsets = [1, 0], sizes = [1, 256], strides = [1, 1]} : vector<2x256xf32> to vector<1x256xf32>
    %99 = vector.broadcast %97 : vector<32x1xf32> to vector<32x256xf32>
    %100 = vector.broadcast %98 : vector<1x256xf32> to vector<32x256xf32>
    %101 = arith.mulf %99, %100 : vector<32x256xf32>
    %102 = arith.addf %96, %101 : vector<32x256xf32>
    %cst_34 = arith.constant dense<0.000000e+00> : vector<256xf32>
    %103 = vector.multi_reduction <add>, %102, %cst_34 [0] : vector<32x256xf32> to vector<256xf32>
    %104 = vector.shape_cast %103 : vector<256xf32> to vector<1x256xf32>
    %cst_35 = arith.constant 3.200000e+01 : f32
    %105 = vector.broadcast %cst_35 : f32 to vector<1x256xf32>
    %106 = arith.divf %104, %105 : vector<1x256xf32>
    %107 = vector.broadcast %106 : vector<1x256xf32> to vector<32x256xf32>
    %108 = arith.subf %102, %107 : vector<32x256xf32>
    %109 = arith.mulf %108, %108 : vector<32x256xf32>
    %cst_36 = arith.constant dense<0.000000e+00> : vector<256xf32>
    %110 = vector.multi_reduction <add>, %109, %cst_36 [0] : vector<32x256xf32> to vector<256xf32>
    %111 = vector.shape_cast %110 : vector<256xf32> to vector<1x256xf32>
    %cst_37 = arith.constant 3.200000e+01 : f32
    %112 = vector.broadcast %cst_37 : f32 to vector<1x256xf32>
    %113 = arith.divf %111, %112 : vector<1x256xf32>
    %114 = vector.broadcast %106 : vector<1x256xf32> to vector<32x256xf32>
    %115 = arith.subf %102, %114 : vector<32x256xf32>
    %cst_38 = arith.constant 9.99999974E-6 : f32
    %116 = vector.broadcast %cst_38 : f32 to vector<1x256xf32>
    %117 = arith.addf %113, %116 : vector<1x256xf32>
    %118 = math.rsqrt %117 : vector<1x256xf32>
    %119 = vector.broadcast %118 : vector<1x256xf32> to vector<32x256xf32>
    %120 = arith.mulf %115, %119 : vector<32x256xf32>
    %121 = vector.broadcast %85 : vector<32x1xf32> to vector<32x256xf32>
    %122 = arith.mulf %120, %121 : vector<32x256xf32>
    %123 = vector.broadcast %86 : vector<32x1xf32> to vector<32x256xf32>
    %124 = arith.addf %122, %123 : vector<32x256xf32>
    %cst_39 = arith.constant 0.000000e+00 : f32
    %125 = vector.broadcast %cst_39 : f32 to vector<32x256xf32>
    %126 = arith.maximumf %124, %125 : vector<32x256xf32>
    %c0_40 = arith.constant 0 : index
    %c0_41 = arith.constant 0 : index
    %127 = vector.load %arg9[%c0_40, %c0_41] : memref<32x32xf32, #tpu.memory_space<vmem>>, vector<32x32xf32>
    %cst_42 = arith.constant dense<0.000000e+00> : vector<32x256xf32>
    %128 = tpu.matmul %127, %126, %cst_42 {dimension_numbers = #tpu.dot_dimension_numbers<[1], [0], [0], [1], [0, 0, 1, 1], [], []>} : vector<32x32xf32>, vector<32x256xf32>, vector<32x256xf32> -> vector<32x256xf32>
    %129 = vector.broadcast %87 : vector<32x1xf32> to vector<32x256xf32>
    %130 = arith.addf %128, %129 : vector<32x256xf32>
    %cst_43 = arith.constant dense<0.000000e+00> : vector<256xf32>
    %131 = vector.multi_reduction <add>, %130, %cst_43 [0] : vector<32x256xf32> to vector<256xf32>
    %132 = vector.shape_cast %131 : vector<256xf32> to vector<1x256xf32>
    %cst_44 = arith.constant 3.200000e+01 : f32
    %133 = vector.broadcast %cst_44 : f32 to vector<1x256xf32>
    %134 = arith.divf %132, %133 : vector<1x256xf32>
    %135 = vector.broadcast %134 : vector<1x256xf32> to vector<32x256xf32>
    %136 = arith.subf %130, %135 : vector<32x256xf32>
    %137 = arith.mulf %136, %136 : vector<32x256xf32>
    %cst_45 = arith.constant dense<0.000000e+00> : vector<256xf32>
    %138 = vector.multi_reduction <add>, %137, %cst_45 [0] : vector<32x256xf32> to vector<256xf32>
    %139 = vector.shape_cast %138 : vector<256xf32> to vector<1x256xf32>
    %cst_46 = arith.constant 3.200000e+01 : f32
    %140 = vector.broadcast %cst_46 : f32 to vector<1x256xf32>
    %141 = arith.divf %139, %140 : vector<1x256xf32>
    %142 = vector.broadcast %134 : vector<1x256xf32> to vector<32x256xf32>
    %143 = arith.subf %130, %142 : vector<32x256xf32>
    %cst_47 = arith.constant 9.99999974E-6 : f32
    %144 = vector.broadcast %cst_47 : f32 to vector<1x256xf32>
    %145 = arith.addf %141, %144 : vector<1x256xf32>
    %146 = math.rsqrt %145 : vector<1x256xf32>
    %147 = vector.broadcast %146 : vector<1x256xf32> to vector<32x256xf32>
    %148 = arith.mulf %143, %147 : vector<32x256xf32>
    %149 = vector.broadcast %88 : vector<32x1xf32> to vector<32x256xf32>
    %150 = arith.mulf %148, %149 : vector<32x256xf32>
    %151 = vector.broadcast %89 : vector<32x1xf32> to vector<32x256xf32>
    %152 = arith.addf %150, %151 : vector<32x256xf32>
    %cst_48 = arith.constant 0.000000e+00 : f32
    %153 = vector.broadcast %cst_48 : f32 to vector<32x256xf32>
    %154 = arith.maximumf %152, %153 : vector<32x256xf32>
    %c0_49 = arith.constant 0 : index
    %c0_50 = arith.constant 0 : index
    %155 = vector.load %arg10[%c0_49, %c0_50] : memref<8x32xf32, #tpu.memory_space<vmem>>, vector<8x32xf32>
    %cst_51 = arith.constant dense<0.000000e+00> : vector<8x256xf32>
    %156 = tpu.matmul %155, %154, %cst_51 {dimension_numbers = #tpu.dot_dimension_numbers<[1], [0], [0], [1], [0, 0, 1, 1], [], []>} : vector<8x32xf32>, vector<32x256xf32>, vector<8x256xf32> -> vector<8x256xf32>
    %c0_52 = arith.constant 0 : index
    %c0_53 = arith.constant 0 : index
    %157 = vector.load %arg11[%c0_52, %c0_53] : memref<8x1xf32, #tpu.memory_space<vmem>>, vector<8x1xf32>
    %158 = vector.broadcast %157 : vector<8x1xf32> to vector<8x256xf32>
    %159 = arith.addf %156, %158 : vector<8x256xf32>
    %160 = vector.extract_strided_slice %1 {offsets = [0, 0], sizes = [1, 256], strides = [1, 1]} : vector<4x256xf32> to vector<1x256xf32>
    %161 = vector.extract_strided_slice %81 {offsets = [0, 0], sizes = [1, 256], strides = [1, 1]} : vector<8x256xf32> to vector<1x256xf32>
    %162 = arith.mulf %161, %2 : vector<1x256xf32>
    %163 = arith.mulf %162, %160 : vector<1x256xf32>
    %164 = vector.extract_strided_slice %1 {offsets = [1, 0], sizes = [1, 256], strides = [1, 1]} : vector<4x256xf32> to vector<1x256xf32>
    %165 = vector.extract_strided_slice %81 {offsets = [1, 0], sizes = [1, 256], strides = [1, 1]} : vector<8x256xf32> to vector<1x256xf32>
    %166 = arith.mulf %165, %2 : vector<1x256xf32>
    %167 = arith.mulf %166, %164 : vector<1x256xf32>
    %168 = arith.addf %163, %167 : vector<1x256xf32>
    %169 = vector.extract_strided_slice %1 {offsets = [2, 0], sizes = [1, 256], strides = [1, 1]} : vector<4x256xf32> to vector<1x256xf32>
    %170 = vector.extract_strided_slice %81 {offsets = [2, 0], sizes = [1, 256], strides = [1, 1]} : vector<8x256xf32> to vector<1x256xf32>
    %171 = arith.mulf %170, %2 : vector<1x256xf32>
    %172 = arith.mulf %171, %169 : vector<1x256xf32>
    %173 = arith.addf %168, %172 : vector<1x256xf32>
    %174 = vector.extract_strided_slice %1 {offsets = [3, 0], sizes = [1, 256], strides = [1, 1]} : vector<4x256xf32> to vector<1x256xf32>
    %175 = vector.extract_strided_slice %81 {offsets = [3, 0], sizes = [1, 256], strides = [1, 1]} : vector<8x256xf32> to vector<1x256xf32>
    %176 = arith.mulf %175, %2 : vector<1x256xf32>
    %177 = arith.mulf %176, %174 : vector<1x256xf32>
    %178 = arith.addf %173, %177 : vector<1x256xf32>
    %179 = vector.extract_strided_slice %1 {offsets = [0, 0], sizes = [1, 256], strides = [1, 1]} : vector<4x256xf32> to vector<1x256xf32>
    %180 = vector.extract_strided_slice %159 {offsets = [0, 0], sizes = [1, 256], strides = [1, 1]} : vector<8x256xf32> to vector<1x256xf32>
    %181 = vector.extract_strided_slice %3 {offsets = [0, 0], sizes = [1, 256], strides = [1, 1]} : vector<3x256xf32> to vector<1x256xf32>
    %182 = arith.mulf %180, %181 : vector<1x256xf32>
    %183 = arith.mulf %182, %179 : vector<1x256xf32>
    %184 = vector.extract_strided_slice %1 {offsets = [1, 0], sizes = [1, 256], strides = [1, 1]} : vector<4x256xf32> to vector<1x256xf32>
    %185 = vector.extract_strided_slice %159 {offsets = [1, 0], sizes = [1, 256], strides = [1, 1]} : vector<8x256xf32> to vector<1x256xf32>
    %186 = vector.extract_strided_slice %3 {offsets = [0, 0], sizes = [1, 256], strides = [1, 1]} : vector<3x256xf32> to vector<1x256xf32>
    %187 = arith.mulf %185, %186 : vector<1x256xf32>
    %188 = arith.mulf %187, %184 : vector<1x256xf32>
    %189 = arith.addf %183, %188 : vector<1x256xf32>
    %190 = vector.extract_strided_slice %1 {offsets = [2, 0], sizes = [1, 256], strides = [1, 1]} : vector<4x256xf32> to vector<1x256xf32>
    %191 = vector.extract_strided_slice %159 {offsets = [2, 0], sizes = [1, 256], strides = [1, 1]} : vector<8x256xf32> to vector<1x256xf32>
    %192 = vector.extract_strided_slice %3 {offsets = [0, 0], sizes = [1, 256], strides = [1, 1]} : vector<3x256xf32> to vector<1x256xf32>
    %193 = arith.mulf %191, %192 : vector<1x256xf32>
    %194 = arith.mulf %193, %190 : vector<1x256xf32>
    %195 = arith.addf %189, %194 : vector<1x256xf32>
    %196 = vector.extract_strided_slice %1 {offsets = [3, 0], sizes = [1, 256], strides = [1, 1]} : vector<4x256xf32> to vector<1x256xf32>
    %197 = vector.extract_strided_slice %159 {offsets = [3, 0], sizes = [1, 256], strides = [1, 1]} : vector<8x256xf32> to vector<1x256xf32>
    %198 = vector.extract_strided_slice %3 {offsets = [0, 0], sizes = [1, 256], strides = [1, 1]} : vector<3x256xf32> to vector<1x256xf32>
    %199 = arith.mulf %197, %198 : vector<1x256xf32>
    %200 = arith.mulf %199, %196 : vector<1x256xf32>
    %201 = arith.addf %195, %200 : vector<1x256xf32>
    %202 = vector.extract_strided_slice %1 {offsets = [0, 0], sizes = [1, 256], strides = [1, 1]} : vector<4x256xf32> to vector<1x256xf32>
    %203 = vector.extract_strided_slice %159 {offsets = [0, 0], sizes = [1, 256], strides = [1, 1]} : vector<8x256xf32> to vector<1x256xf32>
    %204 = vector.extract_strided_slice %3 {offsets = [1, 0], sizes = [1, 256], strides = [1, 1]} : vector<3x256xf32> to vector<1x256xf32>
    %205 = arith.mulf %203, %204 : vector<1x256xf32>
    %206 = arith.mulf %205, %202 : vector<1x256xf32>
    %207 = vector.extract_strided_slice %1 {offsets = [1, 0], sizes = [1, 256], strides = [1, 1]} : vector<4x256xf32> to vector<1x256xf32>
    %208 = vector.extract_strided_slice %159 {offsets = [1, 0], sizes = [1, 256], strides = [1, 1]} : vector<8x256xf32> to vector<1x256xf32>
    %209 = vector.extract_strided_slice %3 {offsets = [1, 0], sizes = [1, 256], strides = [1, 1]} : vector<3x256xf32> to vector<1x256xf32>
    %210 = arith.mulf %208, %209 : vector<1x256xf32>
    %211 = arith.mulf %210, %207 : vector<1x256xf32>
    %212 = arith.addf %206, %211 : vector<1x256xf32>
    %213 = vector.extract_strided_slice %1 {offsets = [2, 0], sizes = [1, 256], strides = [1, 1]} : vector<4x256xf32> to vector<1x256xf32>
    %214 = vector.extract_strided_slice %159 {offsets = [2, 0], sizes = [1, 256], strides = [1, 1]} : vector<8x256xf32> to vector<1x256xf32>
    %215 = vector.extract_strided_slice %3 {offsets = [1, 0], sizes = [1, 256], strides = [1, 1]} : vector<3x256xf32> to vector<1x256xf32>
    %216 = arith.mulf %214, %215 : vector<1x256xf32>
    %217 = arith.mulf %216, %213 : vector<1x256xf32>
    %218 = arith.addf %212, %217 : vector<1x256xf32>
    %219 = vector.extract_strided_slice %1 {offsets = [3, 0], sizes = [1, 256], strides = [1, 1]} : vector<4x256xf32> to vector<1x256xf32>
    %220 = vector.extract_strided_slice %159 {offsets = [3, 0], sizes = [1, 256], strides = [1, 1]} : vector<8x256xf32> to vector<1x256xf32>
    %221 = vector.extract_strided_slice %3 {offsets = [1, 0], sizes = [1, 256], strides = [1, 1]} : vector<3x256xf32> to vector<1x256xf32>
    %222 = arith.mulf %220, %221 : vector<1x256xf32>
    %223 = arith.mulf %222, %219 : vector<1x256xf32>
    %224 = arith.addf %218, %223 : vector<1x256xf32>
    %225 = vector.extract_strided_slice %1 {offsets = [0, 0], sizes = [1, 256], strides = [1, 1]} : vector<4x256xf32> to vector<1x256xf32>
    %226 = vector.extract_strided_slice %159 {offsets = [0, 0], sizes = [1, 256], strides = [1, 1]} : vector<8x256xf32> to vector<1x256xf32>
    %227 = vector.extract_strided_slice %3 {offsets = [2, 0], sizes = [1, 256], strides = [1, 1]} : vector<3x256xf32> to vector<1x256xf32>
    %228 = arith.mulf %226, %227 : vector<1x256xf32>
    %229 = arith.mulf %228, %225 : vector<1x256xf32>
    %230 = vector.extract_strided_slice %1 {offsets = [1, 0], sizes = [1, 256], strides = [1, 1]} : vector<4x256xf32> to vector<1x256xf32>
    %231 = vector.extract_strided_slice %159 {offsets = [1, 0], sizes = [1, 256], strides = [1, 1]} : vector<8x256xf32> to vector<1x256xf32>
    %232 = vector.extract_strided_slice %3 {offsets = [2, 0], sizes = [1, 256], strides = [1, 1]} : vector<3x256xf32> to vector<1x256xf32>
    %233 = arith.mulf %231, %232 : vector<1x256xf32>
    %234 = arith.mulf %233, %230 : vector<1x256xf32>
    %235 = arith.addf %229, %234 : vector<1x256xf32>
    %236 = vector.extract_strided_slice %1 {offsets = [2, 0], sizes = [1, 256], strides = [1, 1]} : vector<4x256xf32> to vector<1x256xf32>
    %237 = vector.extract_strided_slice %159 {offsets = [2, 0], sizes = [1, 256], strides = [1, 1]} : vector<8x256xf32> to vector<1x256xf32>
    %238 = vector.extract_strided_slice %3 {offsets = [2, 0], sizes = [1, 256], strides = [1, 1]} : vector<3x256xf32> to vector<1x256xf32>
    %239 = arith.mulf %237, %238 : vector<1x256xf32>
    %240 = arith.mulf %239, %236 : vector<1x256xf32>
    %241 = arith.addf %235, %240 : vector<1x256xf32>
    %242 = vector.extract_strided_slice %1 {offsets = [3, 0], sizes = [1, 256], strides = [1, 1]} : vector<4x256xf32> to vector<1x256xf32>
    %243 = vector.extract_strided_slice %159 {offsets = [3, 0], sizes = [1, 256], strides = [1, 1]} : vector<8x256xf32> to vector<1x256xf32>
    %244 = vector.extract_strided_slice %3 {offsets = [2, 0], sizes = [1, 256], strides = [1, 1]} : vector<3x256xf32> to vector<1x256xf32>
    %245 = arith.mulf %243, %244 : vector<1x256xf32>
    %246 = arith.mulf %245, %242 : vector<1x256xf32>
    %247 = arith.addf %241, %246 : vector<1x256xf32>
    %cst_54 = arith.constant 0.000000e+00 : f32
    %248 = vector.broadcast %cst_54 : f32 to vector<4x256xf32>
    %249 = tpu.concatenate %178, %201, %224, %247, %248 in 0 : vector<1x256xf32>, vector<1x256xf32>, vector<1x256xf32>, vector<1x256xf32>, vector<4x256xf32> -> vector<8x256xf32>
    %c0_i32 = arith.constant 0 : i32
    %250 = arith.cmpi eq, %arg0, %c0_i32 : i32
    %251 = arith.extui %250 : i1 to i32
    %c0_i32_55 = arith.constant 0 : i32
    %252 = arith.cmpi ne, %251, %c0_i32_55 : i32
    scf.if %252 {
      %cst_65 = arith.constant 0.000000e+00 : f32
      %261 = vector.broadcast %cst_65 : f32 to vector<8x128xf32>
      %c0_66 = arith.constant 0 : index
      %c0_67 = arith.constant 0 : index
      %262 = vector.load %arg18[%c0_66, %c0_67] : memref<8x128xf32, #tpu.memory_space<vmem>>, vector<8x128xf32>
      tpu.vector_store %arg18[%c0_66, %c0_67], %261 {strides = array<i32>} : memref<8x128xf32, #tpu.memory_space<vmem>>, vector<8x128xf32>,
    } else {
    }
    %c0_56 = arith.constant 0 : index
    %c0_57 = arith.constant 0 : index
    %253 = vector.load %arg18[%c0_56, %c0_57] : memref<8x128xf32, #tpu.memory_space<vmem>>, vector<8x128xf32>
    %c0_58 = arith.constant 0 : index
    %c0_59 = arith.constant 0 : index
    %254 = vector.load %arg15[%c0_58, %c0_59] : memref<256x128xf32, #tpu.memory_space<vmem>>, vector<256x128xf32>
    %cst_60 = arith.constant dense<0.000000e+00> : vector<8x128xf32>
    %255 = tpu.matmul %249, %254, %cst_60 {dimension_numbers = #tpu.dot_dimension_numbers<[1], [0], [0], [1], [0, 0, 1, 1], [], []>} : vector<8x256xf32>, vector<256x128xf32>, vector<8x128xf32> -> vector<8x128xf32>
    %256 = arith.addf %253, %255 : vector<8x128xf32>
    %c0_61 = arith.constant 0 : index
    %c0_62 = arith.constant 0 : index
    %257 = vector.load %arg18[%c0_61, %c0_62] : memref<8x128xf32, #tpu.memory_space<vmem>>, vector<8x128xf32>
    tpu.vector_store %arg18[%c0_61, %c0_62], %256 {strides = array<i32>} : memref<8x128xf32, #tpu.memory_space<vmem>>, vector<8x128xf32>,
    %c0_i32_63 = arith.constant 0 : i32
    %258 = arith.cmpi eq, %arg0, %c0_i32_63 : i32
    %259 = arith.extui %258 : i1 to i32
    %c0_i32_64 = arith.constant 0 : i32
    %260 = arith.cmpi ne, %259, %c0_i32_64 : i32
    scf.if %260 {
      %c0_65 = arith.constant 0 : index
      %c0_66 = arith.constant 0 : index
      %261 = vector.load %arg18[%c0_65, %c0_66] : memref<8x128xf32, #tpu.memory_space<vmem>>, vector<8x128xf32>
      %c0_67 = arith.constant 0 : index
      %c0_68 = arith.constant 0 : index
      %262 = vector.load %arg16[%c0_67, %c0_68] : memref<1x128xf32, #tpu.memory_space<vmem>>, vector<1x128xf32>
      %263 = vector.broadcast %262 : vector<1x128xf32> to vector<8x128xf32>
      %264 = arith.mulf %261, %263 : vector<8x128xf32>
      %c0_69 = arith.constant 0 : index
      %c0_70 = arith.constant 0 : index
      %265 = vector.load %arg17[%c0_69, %c0_70] : memref<8x128xf32, #tpu.memory_space<vmem>>, vector<8x128xf32>
      %266 = arith.addf %264, %265 : vector<8x128xf32>
      %c0_71 = arith.constant 0 : index
      %c0_72 = arith.constant 0 : index
      %267 = vector.load %arg18[%c0_71, %c0_72] : memref<8x128xf32, #tpu.memory_space<vmem>>, vector<8x128xf32>
      tpu.vector_store %arg18[%c0_71, %c0_72], %266 {strides = array<i32>} : memref<8x128xf32, #tpu.memory_space<vmem>>, vector<8x128xf32>,
    } else {
    }
    return
  }
  func.func @transform_0(%arg0: i32) -> (i32, i32) {
    %c0_i32 = arith.constant 0 : i32
    %c0_i32_0 = arith.constant 0 : i32
    return %c0_i32, %arg0 : i32, i32
  }
  func.func @transform_1(%arg0: i32) -> (i32, i32) {
    %c0_i32 = arith.constant 0 : i32
    %c0_i32_0 = arith.constant 0 : i32
    %c0_i32_1 = arith.constant 0 : i32
    return %c0_i32, %c0_i32_0 : i32, i32
  }
  func.func @transform_2(%arg0: i32) -> (i32, i32) {
    %c0_i32 = arith.constant 0 : i32
    %c0_i32_0 = arith.constant 0 : i32
    %c0_i32_1 = arith.constant 0 : i32
    return %c0_i32, %c0_i32_0 : i32, i32
  }
  func.func @transform_3(%arg0: i32) -> (i32, i32) {
    %c0_i32 = arith.constant 0 : i32
    %c0_i32_0 = arith.constant 0 : i32
    %c0_i32_1 = arith.constant 0 : i32
    return %c0_i32, %c0_i32_0 : i32, i32
  }
  func.func @transform_4(%arg0: i32) -> (i32, i32) {
    %c0_i32 = arith.constant 0 : i32
    %c0_i32_0 = arith.constant 0 : i32
    %c0_i32_1 = arith.constant 0 : i32
    return %c0_i32, %c0_i32_0 : i32, i32
  }
  func.func @transform_5(%arg0: i32) -> (i32, i32) {
    %c0_i32 = arith.constant 0 : i32
    %c0_i32_0 = arith.constant 0 : i32
    %c0_i32_1 = arith.constant 0 : i32
    return %c0_i32, %c0_i32_0 : i32, i32
  }
  func.func @transform_6(%arg0: i32) -> (i32, i32) {
    %c0_i32 = arith.constant 0 : i32
    %c0_i32_0 = arith.constant 0 : i32
    %c0_i32_1 = arith.constant 0 : i32
    return %c0_i32, %c0_i32_0 : i32, i32
  }
  func.func @transform_7(%arg0: i32) -> (i32, i32) {
    %c0_i32 = arith.constant 0 : i32
    %c0_i32_0 = arith.constant 0 : i32
    %c0_i32_1 = arith.constant 0 : i32
    return %c0_i32, %c0_i32_0 : i32, i32
  }
  func.func @transform_8(%arg0: i32) -> (i32, i32) {
    %c0_i32 = arith.constant 0 : i32
    %c0_i32_0 = arith.constant 0 : i32
    %c0_i32_1 = arith.constant 0 : i32
    return %c0_i32, %c0_i32_0 : i32, i32
  }
  func.func @transform_9(%arg0: i32) -> (i32, i32) {
    %c0_i32 = arith.constant 0 : i32
    %c0_i32_0 = arith.constant 0 : i32
    %c0_i32_1 = arith.constant 0 : i32
    return %c0_i32, %c0_i32_0 : i32, i32
  }
  func.func @transform_10(%arg0: i32) -> (i32, i32) {
    %c0_i32 = arith.constant 0 : i32
    %c0_i32_0 = arith.constant 0 : i32
    %c0_i32_1 = arith.constant 0 : i32
    return %c0_i32, %c0_i32_0 : i32, i32
  }
  func.func @transform_11(%arg0: i32) -> (i32, i32) {
    %c0_i32 = arith.constant 0 : i32
    %c0_i32_0 = arith.constant 0 : i32
    return %c0_i32, %arg0 : i32, i32
  }
  func.func @transform_12(%arg0: i32) -> (i32, i32) {
    %c0_i32 = arith.constant 0 : i32
    %c0_i32_0 = arith.constant 0 : i32
    return %c0_i32, %arg0 : i32, i32
  }
  func.func @transform_13(%arg0: i32) -> (i32, i32) {
    %c0_i32 = arith.constant 0 : i32
    %c0_i32_0 = arith.constant 0 : i32
    return %c0_i32, %arg0 : i32, i32
  }
  func.func @transform_14(%arg0: i32) -> (i32, i32) {
    %c0_i32 = arith.constant 0 : i32
    %c0_i32_0 = arith.constant 0 : i32
    return %arg0, %c0_i32 : i32, i32
  }
  func.func @transform_15(%arg0: i32) -> (i32, i32) {
    %c0_i32 = arith.constant 0 : i32
    %c0_i32_0 = arith.constant 0 : i32
    %c0_i32_1 = arith.constant 0 : i32
    return %c0_i32, %c0_i32_0 : i32, i32
  }
  func.func @transform_16(%arg0: i32) -> (i32, i32) {
    %c0_i32 = arith.constant 0 : i32
    %c0_i32_0 = arith.constant 0 : i32
    %c0_i32_1 = arith.constant 0 : i32
    return %c0_i32, %c0_i32_0 : i32, i32
  }
  func.func @transform_17(%arg0: i32) -> (i32, i32) {
    %c0_i32 = arith.constant 0 : i32
    %c0_i32_0 = arith.constant 0 : i32
    %c0_i32_1 = arith.constant 0 : i32
    return %c0_i32, %c0_i32_0 : i32, i32
  }
}

module attributes {stable_mosaic.version = 11 : i64} {
  func.func @kernel(%arg0: i32, %arg1: memref<2x256xf32, #tpu.memory_space<vmem>>, %arg2: memref<32x2xf32, #tpu.memory_space<vmem>>, %arg3: memref<32x6xf32, #tpu.memory_space<vmem>>, %arg4: memref<32x32xf32, #tpu.memory_space<vmem>>, %arg5: memref<8x32xf32, #tpu.memory_space<vmem>>, %arg6: memref<8x1xf32, #tpu.memory_space<vmem>>, %arg7: memref<32x2xf32, #tpu.memory_space<vmem>>, %arg8: memref<32x6xf32, #tpu.memory_space<vmem>>, %arg9: memref<32x32xf32, #tpu.memory_space<vmem>>, %arg10: memref<8x32xf32, #tpu.memory_space<vmem>>, %arg11: memref<8x1xf32, #tpu.memory_space<vmem>>, %arg12: memref<32x2xf32, #tpu.memory_space<vmem>>, %arg13: memref<32x6xf32, #tpu.memory_space<vmem>>, %arg14: memref<32x32xf32, #tpu.memory_space<vmem>>, %arg15: memref<8x32xf32, #tpu.memory_space<vmem>>, %arg16: memref<8x1xf32, #tpu.memory_space<vmem>>, %arg17: memref<32x2xf32, #tpu.memory_space<vmem>>, %arg18: memref<32x6xf32, #tpu.memory_space<vmem>>, %arg19: memref<32x32xf32, #tpu.memory_space<vmem>>, %arg20: memref<8x32xf32, #tpu.memory_space<vmem>>, %arg21: memref<8x1xf32, #tpu.memory_space<vmem>>, %arg22: memref<1x256xf32, #tpu.memory_space<vmem>>, %arg23: memref<3x256xf32, #tpu.memory_space<vmem>>, %arg24: memref<1x256xf32, #tpu.memory_space<vmem>>, %arg25: memref<3x256xf32, #tpu.memory_space<vmem>>, %arg26: memref<3x256xf32, #tpu.memory_space<vmem>>, %arg27: memref<27x256xf32, #tpu.memory_space<vmem>>, %arg28: memref<256x128xf32, #tpu.memory_space<vmem>>, %arg29: memref<1x128xf32, #tpu.memory_space<vmem>>, %arg30: memref<8x128xf32, #tpu.memory_space<vmem>>, %arg31: memref<8x128xf32, #tpu.memory_space<vmem>>) attributes {dimension_semantics = [#tpu.dimension_semantics<arbitrary>], iteration_bounds = array<i64: 1>, scalar_prefetch = 0 : i64, scratch_operands = 0 : i64, tpu.core_type = #tpu.core_type<tc>, window_params = [{transform_indices = @transform_0, window_bounds = array<i64: 2, 256>}, {pipeline_mode = #tpu.pipeline_mode<synchronous>, transform_indices = @transform_1, window_bounds = array<i64: 32, 2>}, {pipeline_mode = #tpu.pipeline_mode<synchronous>, transform_indices = @transform_2, window_bounds = array<i64: 32, 6>}, {pipeline_mode = #tpu.pipeline_mode<synchronous>, transform_indices = @transform_3, window_bounds = array<i64: 32, 32>}, {pipeline_mode = #tpu.pipeline_mode<synchronous>, transform_indices = @transform_4, window_bounds = array<i64: 8, 32>}, {pipeline_mode = #tpu.pipeline_mode<synchronous>, transform_indices = @transform_5, window_bounds = array<i64: 8, 1>}, {pipeline_mode = #tpu.pipeline_mode<synchronous>, transform_indices = @transform_6, window_bounds = array<i64: 32, 2>}, {pipeline_mode = #tpu.pipeline_mode<synchronous>, transform_indices = @transform_7, window_bounds = array<i64: 32, 6>}, {pipeline_mode = #tpu.pipeline_mode<synchronous>, transform_indices = @transform_8, window_bounds = array<i64: 32, 32>}, {pipeline_mode = #tpu.pipeline_mode<synchronous>, transform_indices = @transform_9, window_bounds = array<i64: 8, 32>}, {pipeline_mode = #tpu.pipeline_mode<synchronous>, transform_indices = @transform_10, window_bounds = array<i64: 8, 1>}, {pipeline_mode = #tpu.pipeline_mode<synchronous>, transform_indices = @transform_11, window_bounds = array<i64: 32, 2>}, {pipeline_mode = #tpu.pipeline_mode<synchronous>, transform_indices = @transform_12, window_bounds = array<i64: 32, 6>}, {pipeline_mode = #tpu.pipeline_mode<synchronous>, transform_indices = @transform_13, window_bounds = array<i64: 32, 32>}, {pipeline_mode = #tpu.pipeline_mode<synchronous>, transform_indices = @transform_14, window_bounds = array<i64: 8, 32>}, {pipeline_mode = #tpu.pipeline_mode<synchronous>, transform_indices = @transform_15, window_bounds = array<i64: 8, 1>}, {pipeline_mode = #tpu.pipeline_mode<synchronous>, transform_indices = @transform_16, window_bounds = array<i64: 32, 2>}, {pipeline_mode = #tpu.pipeline_mode<synchronous>, transform_indices = @transform_17, window_bounds = array<i64: 32, 6>}, {pipeline_mode = #tpu.pipeline_mode<synchronous>, transform_indices = @transform_18, window_bounds = array<i64: 32, 32>}, {pipeline_mode = #tpu.pipeline_mode<synchronous>, transform_indices = @transform_19, window_bounds = array<i64: 8, 32>}, {pipeline_mode = #tpu.pipeline_mode<synchronous>, transform_indices = @transform_20, window_bounds = array<i64: 8, 1>}, {transform_indices = @transform_21, window_bounds = array<i64: 1, 256>}, {transform_indices = @transform_22, window_bounds = array<i64: 3, 256>}, {transform_indices = @transform_23, window_bounds = array<i64: 1, 256>}, {transform_indices = @transform_24, window_bounds = array<i64: 3, 256>}, {transform_indices = @transform_25, window_bounds = array<i64: 3, 256>}, {transform_indices = @transform_26, window_bounds = array<i64: 27, 256>}, {transform_indices = @transform_27, window_bounds = array<i64: 256, 128>}, {pipeline_mode = #tpu.pipeline_mode<synchronous>, transform_indices = @transform_28, window_bounds = array<i64: 1, 128>}, {pipeline_mode = #tpu.pipeline_mode<synchronous>, transform_indices = @transform_29, window_bounds = array<i64: 8, 128>}, {pipeline_mode = #tpu.pipeline_mode<synchronous>, transform_indices = @transform_30, window_bounds = array<i64: 8, 128>}]} {
    %c0 = arith.constant 0 : index
    %c0_0 = arith.constant 0 : index
    %0 = vector.load %arg1[%c0, %c0_0] : memref<2x256xf32, #tpu.memory_space<vmem>>, vector<2x256xf32>
    %c0_1 = arith.constant 0 : index
    %c0_2 = arith.constant 0 : index
    %1 = vector.load %arg22[%c0_1, %c0_2] : memref<1x256xf32, #tpu.memory_space<vmem>>, vector<1x256xf32>
    %c0_3 = arith.constant 0 : index
    %c0_4 = arith.constant 0 : index
    %2 = vector.load %arg23[%c0_3, %c0_4] : memref<3x256xf32, #tpu.memory_space<vmem>>, vector<3x256xf32>
    %c0_5 = arith.constant 0 : index
    %c0_6 = arith.constant 0 : index
    %3 = vector.load %arg24[%c0_5, %c0_6] : memref<1x256xf32, #tpu.memory_space<vmem>>, vector<1x256xf32>
    %c0_7 = arith.constant 0 : index
    %c0_8 = arith.constant 0 : index
    %4 = vector.load %arg25[%c0_7, %c0_8] : memref<3x256xf32, #tpu.memory_space<vmem>>, vector<3x256xf32>
    %c0_9 = arith.constant 0 : index
    %c0_10 = arith.constant 0 : index
    %5 = vector.load %arg26[%c0_9, %c0_10] : memref<3x256xf32, #tpu.memory_space<vmem>>, vector<3x256xf32>
    %c0_11 = arith.constant 0 : index
    %c0_12 = arith.constant 0 : index
    %6 = vector.load %arg27[%c0_11, %c0_12] : memref<27x256xf32, #tpu.memory_space<vmem>>, vector<27x256xf32>
    %c0_13 = arith.constant 0 : index
    %c0_14 = arith.constant 0 : index
    %7 = vector.load %arg2[%c0_13, %c0_14] : memref<32x2xf32, #tpu.memory_space<vmem>>, vector<32x2xf32>
    %c0_15 = arith.constant 0 : index
    %c0_16 = arith.constant 0 : index
    %8 = vector.load %arg3[%c0_15, %c0_16] : memref<32x6xf32, #tpu.memory_space<vmem>>, vector<32x6xf32>
    %9 = vector.extract_strided_slice %8 {offsets = [0, 0], sizes = [32, 1], strides = [1, 1]} : vector<32x6xf32> to vector<32x1xf32>
    %10 = vector.extract_strided_slice %8 {offsets = [0, 1], sizes = [32, 1], strides = [1, 1]} : vector<32x6xf32> to vector<32x1xf32>
    %11 = vector.extract_strided_slice %8 {offsets = [0, 2], sizes = [32, 1], strides = [1, 1]} : vector<32x6xf32> to vector<32x1xf32>
    %12 = vector.extract_strided_slice %8 {offsets = [0, 3], sizes = [32, 1], strides = [1, 1]} : vector<32x6xf32> to vector<32x1xf32>
    %13 = vector.extract_strided_slice %8 {offsets = [0, 4], sizes = [32, 1], strides = [1, 1]} : vector<32x6xf32> to vector<32x1xf32>
    %14 = vector.extract_strided_slice %8 {offsets = [0, 5], sizes = [32, 1], strides = [1, 1]} : vector<32x6xf32> to vector<32x1xf32>
    %15 = vector.extract_strided_slice %7 {offsets = [0, 0], sizes = [32, 1], strides = [1, 1]} : vector<32x2xf32> to vector<32x1xf32>
    %16 = vector.extract_strided_slice %0 {offsets = [0, 0], sizes = [1, 256], strides = [1, 1]} : vector<2x256xf32> to vector<1x256xf32>
    %17 = vector.broadcast %15 : vector<32x1xf32> to vector<32x256xf32>
    %18 = vector.broadcast %16 : vector<1x256xf32> to vector<32x256xf32>
    %19 = arith.mulf %17, %18 : vector<32x256xf32>
    %20 = vector.broadcast %9 : vector<32x1xf32> to vector<32x256xf32>
    %21 = arith.addf %20, %19 : vector<32x256xf32>
    %22 = vector.extract_strided_slice %7 {offsets = [0, 1], sizes = [32, 1], strides = [1, 1]} : vector<32x2xf32> to vector<32x1xf32>
    %23 = vector.extract_strided_slice %0 {offsets = [1, 0], sizes = [1, 256], strides = [1, 1]} : vector<2x256xf32> to vector<1x256xf32>
    %24 = vector.broadcast %22 : vector<32x1xf32> to vector<32x256xf32>
    %25 = vector.broadcast %23 : vector<1x256xf32> to vector<32x256xf32>
    %26 = arith.mulf %24, %25 : vector<32x256xf32>
    %27 = arith.addf %21, %26 : vector<32x256xf32>
    %cst = arith.constant dense<0.000000e+00> : vector<256xf32>
    %28 = vector.multi_reduction <add>, %27, %cst [0] : vector<32x256xf32> to vector<256xf32>
    %29 = vector.shape_cast %28 : vector<256xf32> to vector<1x256xf32>
    %cst_17 = arith.constant 3.200000e+01 : f32
    %30 = vector.broadcast %cst_17 : f32 to vector<1x256xf32>
    %31 = arith.divf %29, %30 : vector<1x256xf32>
    %32 = vector.broadcast %31 : vector<1x256xf32> to vector<32x256xf32>
    %33 = arith.subf %27, %32 : vector<32x256xf32>
    %34 = arith.mulf %33, %33 : vector<32x256xf32>
    %cst_18 = arith.constant dense<0.000000e+00> : vector<256xf32>
    %35 = vector.multi_reduction <add>, %34, %cst_18 [0] : vector<32x256xf32> to vector<256xf32>
    %36 = vector.shape_cast %35 : vector<256xf32> to vector<1x256xf32>
    %cst_19 = arith.constant 3.200000e+01 : f32
    %37 = vector.broadcast %cst_19 : f32 to vector<1x256xf32>
    %38 = arith.divf %36, %37 : vector<1x256xf32>
    %39 = vector.broadcast %31 : vector<1x256xf32> to vector<32x256xf32>
    %40 = arith.subf %27, %39 : vector<32x256xf32>
    %cst_20 = arith.constant 9.99999974E-6 : f32
    %41 = vector.broadcast %cst_20 : f32 to vector<1x256xf32>
    %42 = arith.addf %38, %41 : vector<1x256xf32>
    %43 = math.rsqrt %42 : vector<1x256xf32>
    %44 = vector.broadcast %43 : vector<1x256xf32> to vector<32x256xf32>
    %45 = arith.mulf %40, %44 : vector<32x256xf32>
    %46 = vector.broadcast %10 : vector<32x1xf32> to vector<32x256xf32>
    %47 = arith.mulf %45, %46 : vector<32x256xf32>
    %48 = vector.broadcast %11 : vector<32x1xf32> to vector<32x256xf32>
    %49 = arith.addf %47, %48 : vector<32x256xf32>
    %cst_21 = arith.constant 0.000000e+00 : f32
    %50 = vector.broadcast %cst_21 : f32 to vector<32x256xf32>
    %51 = arith.maximumf %49, %50 : vector<32x256xf32>
    %c0_22 = arith.constant 0 : index
    %c0_23 = arith.constant 0 : index
    %52 = vector.load %arg4[%c0_22, %c0_23] : memref<32x32xf32, #tpu.memory_space<vmem>>, vector<32x32xf32>
    %cst_24 = arith.constant dense<0.000000e+00> : vector<32x256xf32>
    %53 = tpu.matmul %52, %51, %cst_24 {dimension_numbers = #tpu.dot_dimension_numbers<[1], [0], [0], [1], [0, 0, 1, 1], [], []>} : vector<32x32xf32>, vector<32x256xf32>, vector<32x256xf32> -> vector<32x256xf32>
    %54 = vector.broadcast %12 : vector<32x1xf32> to vector<32x256xf32>
    %55 = arith.addf %53, %54 : vector<32x256xf32>
    %cst_25 = arith.constant dense<0.000000e+00> : vector<256xf32>
    %56 = vector.multi_reduction <add>, %55, %cst_25 [0] : vector<32x256xf32> to vector<256xf32>
    %57 = vector.shape_cast %56 : vector<256xf32> to vector<1x256xf32>
    %cst_26 = arith.constant 3.200000e+01 : f32
    %58 = vector.broadcast %cst_26 : f32 to vector<1x256xf32>
    %59 = arith.divf %57, %58 : vector<1x256xf32>
    %60 = vector.broadcast %59 : vector<1x256xf32> to vector<32x256xf32>
    %61 = arith.subf %55, %60 : vector<32x256xf32>
    %62 = arith.mulf %61, %61 : vector<32x256xf32>
    %cst_27 = arith.constant dense<0.000000e+00> : vector<256xf32>
    %63 = vector.multi_reduction <add>, %62, %cst_27 [0] : vector<32x256xf32> to vector<256xf32>
    %64 = vector.shape_cast %63 : vector<256xf32> to vector<1x256xf32>
    %cst_28 = arith.constant 3.200000e+01 : f32
    %65 = vector.broadcast %cst_28 : f32 to vector<1x256xf32>
    %66 = arith.divf %64, %65 : vector<1x256xf32>
    %67 = vector.broadcast %59 : vector<1x256xf32> to vector<32x256xf32>
    %68 = arith.subf %55, %67 : vector<32x256xf32>
    %cst_29 = arith.constant 9.99999974E-6 : f32
    %69 = vector.broadcast %cst_29 : f32 to vector<1x256xf32>
    %70 = arith.addf %66, %69 : vector<1x256xf32>
    %71 = math.rsqrt %70 : vector<1x256xf32>
    %72 = vector.broadcast %71 : vector<1x256xf32> to vector<32x256xf32>
    %73 = arith.mulf %68, %72 : vector<32x256xf32>
    %74 = vector.broadcast %13 : vector<32x1xf32> to vector<32x256xf32>
    %75 = arith.mulf %73, %74 : vector<32x256xf32>
    %76 = vector.broadcast %14 : vector<32x1xf32> to vector<32x256xf32>
    %77 = arith.addf %75, %76 : vector<32x256xf32>
    %cst_30 = arith.constant 0.000000e+00 : f32
    %78 = vector.broadcast %cst_30 : f32 to vector<32x256xf32>
    %79 = arith.maximumf %77, %78 : vector<32x256xf32>
    %c0_31 = arith.constant 0 : index
    %c0_32 = arith.constant 0 : index
    %80 = vector.load %arg5[%c0_31, %c0_32] : memref<8x32xf32, #tpu.memory_space<vmem>>, vector<8x32xf32>
    %cst_33 = arith.constant dense<0.000000e+00> : vector<8x256xf32>
    %81 = tpu.matmul %80, %79, %cst_33 {dimension_numbers = #tpu.dot_dimension_numbers<[1], [0], [0], [1], [0, 0, 1, 1], [], []>} : vector<8x32xf32>, vector<32x256xf32>, vector<8x256xf32> -> vector<8x256xf32>
    %c0_34 = arith.constant 0 : index
    %c0_35 = arith.constant 0 : index
    %82 = vector.load %arg6[%c0_34, %c0_35] : memref<8x1xf32, #tpu.memory_space<vmem>>, vector<8x1xf32>
    %83 = vector.broadcast %82 : vector<8x1xf32> to vector<8x256xf32>
    %84 = arith.addf %81, %83 : vector<8x256xf32>
    %c0_36 = arith.constant 0 : index
    %c0_37 = arith.constant 0 : index
    %85 = vector.load %arg7[%c0_36, %c0_37] : memref<32x2xf32, #tpu.memory_space<vmem>>, vector<32x2xf32>
    %c0_38 = arith.constant 0 : index
    %c0_39 = arith.constant 0 : index
    %86 = vector.load %arg8[%c0_38, %c0_39] : memref<32x6xf32, #tpu.memory_space<vmem>>, vector<32x6xf32>
    %87 = vector.extract_strided_slice %86 {offsets = [0, 0], sizes = [32, 1], strides = [1, 1]} : vector<32x6xf32> to vector<32x1xf32>
    %88 = vector.extract_strided_slice %86 {offsets = [0, 1], sizes = [32, 1], strides = [1, 1]} : vector<32x6xf32> to vector<32x1xf32>
    %89 = vector.extract_strided_slice %86 {offsets = [0, 2], sizes = [32, 1], strides = [1, 1]} : vector<32x6xf32> to vector<32x1xf32>
    %90 = vector.extract_strided_slice %86 {offsets = [0, 3], sizes = [32, 1], strides = [1, 1]} : vector<32x6xf32> to vector<32x1xf32>
    %91 = vector.extract_strided_slice %86 {offsets = [0, 4], sizes = [32, 1], strides = [1, 1]} : vector<32x6xf32> to vector<32x1xf32>
    %92 = vector.extract_strided_slice %86 {offsets = [0, 5], sizes = [32, 1], strides = [1, 1]} : vector<32x6xf32> to vector<32x1xf32>
    %93 = vector.extract_strided_slice %85 {offsets = [0, 0], sizes = [32, 1], strides = [1, 1]} : vector<32x2xf32> to vector<32x1xf32>
    %94 = vector.extract_strided_slice %0 {offsets = [0, 0], sizes = [1, 256], strides = [1, 1]} : vector<2x256xf32> to vector<1x256xf32>
    %95 = vector.broadcast %93 : vector<32x1xf32> to vector<32x256xf32>
    %96 = vector.broadcast %94 : vector<1x256xf32> to vector<32x256xf32>
    %97 = arith.mulf %95, %96 : vector<32x256xf32>
    %98 = vector.broadcast %87 : vector<32x1xf32> to vector<32x256xf32>
    %99 = arith.addf %98, %97 : vector<32x256xf32>
    %100 = vector.extract_strided_slice %85 {offsets = [0, 1], sizes = [32, 1], strides = [1, 1]} : vector<32x2xf32> to vector<32x1xf32>
    %101 = vector.extract_strided_slice %0 {offsets = [1, 0], sizes = [1, 256], strides = [1, 1]} : vector<2x256xf32> to vector<1x256xf32>
    %102 = vector.broadcast %100 : vector<32x1xf32> to vector<32x256xf32>
    %103 = vector.broadcast %101 : vector<1x256xf32> to vector<32x256xf32>
    %104 = arith.mulf %102, %103 : vector<32x256xf32>
    %105 = arith.addf %99, %104 : vector<32x256xf32>
    %cst_40 = arith.constant dense<0.000000e+00> : vector<256xf32>
    %106 = vector.multi_reduction <add>, %105, %cst_40 [0] : vector<32x256xf32> to vector<256xf32>
    %107 = vector.shape_cast %106 : vector<256xf32> to vector<1x256xf32>
    %cst_41 = arith.constant 3.200000e+01 : f32
    %108 = vector.broadcast %cst_41 : f32 to vector<1x256xf32>
    %109 = arith.divf %107, %108 : vector<1x256xf32>
    %110 = vector.broadcast %109 : vector<1x256xf32> to vector<32x256xf32>
    %111 = arith.subf %105, %110 : vector<32x256xf32>
    %112 = arith.mulf %111, %111 : vector<32x256xf32>
    %cst_42 = arith.constant dense<0.000000e+00> : vector<256xf32>
    %113 = vector.multi_reduction <add>, %112, %cst_42 [0] : vector<32x256xf32> to vector<256xf32>
    %114 = vector.shape_cast %113 : vector<256xf32> to vector<1x256xf32>
    %cst_43 = arith.constant 3.200000e+01 : f32
    %115 = vector.broadcast %cst_43 : f32 to vector<1x256xf32>
    %116 = arith.divf %114, %115 : vector<1x256xf32>
    %117 = vector.broadcast %109 : vector<1x256xf32> to vector<32x256xf32>
    %118 = arith.subf %105, %117 : vector<32x256xf32>
    %cst_44 = arith.constant 9.99999974E-6 : f32
    %119 = vector.broadcast %cst_44 : f32 to vector<1x256xf32>
    %120 = arith.addf %116, %119 : vector<1x256xf32>
    %121 = math.rsqrt %120 : vector<1x256xf32>
    %122 = vector.broadcast %121 : vector<1x256xf32> to vector<32x256xf32>
    %123 = arith.mulf %118, %122 : vector<32x256xf32>
    %124 = vector.broadcast %88 : vector<32x1xf32> to vector<32x256xf32>
    %125 = arith.mulf %123, %124 : vector<32x256xf32>
    %126 = vector.broadcast %89 : vector<32x1xf32> to vector<32x256xf32>
    %127 = arith.addf %125, %126 : vector<32x256xf32>
    %cst_45 = arith.constant 0.000000e+00 : f32
    %128 = vector.broadcast %cst_45 : f32 to vector<32x256xf32>
    %129 = arith.maximumf %127, %128 : vector<32x256xf32>
    %c0_46 = arith.constant 0 : index
    %c0_47 = arith.constant 0 : index
    %130 = vector.load %arg9[%c0_46, %c0_47] : memref<32x32xf32, #tpu.memory_space<vmem>>, vector<32x32xf32>
    %cst_48 = arith.constant dense<0.000000e+00> : vector<32x256xf32>
    %131 = tpu.matmul %130, %129, %cst_48 {dimension_numbers = #tpu.dot_dimension_numbers<[1], [0], [0], [1], [0, 0, 1, 1], [], []>} : vector<32x32xf32>, vector<32x256xf32>, vector<32x256xf32> -> vector<32x256xf32>
    %132 = vector.broadcast %90 : vector<32x1xf32> to vector<32x256xf32>
    %133 = arith.addf %131, %132 : vector<32x256xf32>
    %cst_49 = arith.constant dense<0.000000e+00> : vector<256xf32>
    %134 = vector.multi_reduction <add>, %133, %cst_49 [0] : vector<32x256xf32> to vector<256xf32>
    %135 = vector.shape_cast %134 : vector<256xf32> to vector<1x256xf32>
    %cst_50 = arith.constant 3.200000e+01 : f32
    %136 = vector.broadcast %cst_50 : f32 to vector<1x256xf32>
    %137 = arith.divf %135, %136 : vector<1x256xf32>
    %138 = vector.broadcast %137 : vector<1x256xf32> to vector<32x256xf32>
    %139 = arith.subf %133, %138 : vector<32x256xf32>
    %140 = arith.mulf %139, %139 : vector<32x256xf32>
    %cst_51 = arith.constant dense<0.000000e+00> : vector<256xf32>
    %141 = vector.multi_reduction <add>, %140, %cst_51 [0] : vector<32x256xf32> to vector<256xf32>
    %142 = vector.shape_cast %141 : vector<256xf32> to vector<1x256xf32>
    %cst_52 = arith.constant 3.200000e+01 : f32
    %143 = vector.broadcast %cst_52 : f32 to vector<1x256xf32>
    %144 = arith.divf %142, %143 : vector<1x256xf32>
    %145 = vector.broadcast %137 : vector<1x256xf32> to vector<32x256xf32>
    %146 = arith.subf %133, %145 : vector<32x256xf32>
    %cst_53 = arith.constant 9.99999974E-6 : f32
    %147 = vector.broadcast %cst_53 : f32 to vector<1x256xf32>
    %148 = arith.addf %144, %147 : vector<1x256xf32>
    %149 = math.rsqrt %148 : vector<1x256xf32>
    %150 = vector.broadcast %149 : vector<1x256xf32> to vector<32x256xf32>
    %151 = arith.mulf %146, %150 : vector<32x256xf32>
    %152 = vector.broadcast %91 : vector<32x1xf32> to vector<32x256xf32>
    %153 = arith.mulf %151, %152 : vector<32x256xf32>
    %154 = vector.broadcast %92 : vector<32x1xf32> to vector<32x256xf32>
    %155 = arith.addf %153, %154 : vector<32x256xf32>
    %cst_54 = arith.constant 0.000000e+00 : f32
    %156 = vector.broadcast %cst_54 : f32 to vector<32x256xf32>
    %157 = arith.maximumf %155, %156 : vector<32x256xf32>
    %c0_55 = arith.constant 0 : index
    %c0_56 = arith.constant 0 : index
    %158 = vector.load %arg10[%c0_55, %c0_56] : memref<8x32xf32, #tpu.memory_space<vmem>>, vector<8x32xf32>
    %cst_57 = arith.constant dense<0.000000e+00> : vector<8x256xf32>
    %159 = tpu.matmul %158, %157, %cst_57 {dimension_numbers = #tpu.dot_dimension_numbers<[1], [0], [0], [1], [0, 0, 1, 1], [], []>} : vector<8x32xf32>, vector<32x256xf32>, vector<8x256xf32> -> vector<8x256xf32>
    %c0_58 = arith.constant 0 : index
    %c0_59 = arith.constant 0 : index
    %160 = vector.load %arg11[%c0_58, %c0_59] : memref<8x1xf32, #tpu.memory_space<vmem>>, vector<8x1xf32>
    %161 = vector.broadcast %160 : vector<8x1xf32> to vector<8x256xf32>
    %162 = arith.addf %159, %161 : vector<8x256xf32>
    %c0_60 = arith.constant 0 : index
    %c0_61 = arith.constant 0 : index
    %163 = vector.load %arg12[%c0_60, %c0_61] : memref<32x2xf32, #tpu.memory_space<vmem>>, vector<32x2xf32>
    %c0_62 = arith.constant 0 : index
    %c0_63 = arith.constant 0 : index
    %164 = vector.load %arg13[%c0_62, %c0_63] : memref<32x6xf32, #tpu.memory_space<vmem>>, vector<32x6xf32>
    %165 = vector.extract_strided_slice %164 {offsets = [0, 0], sizes = [32, 1], strides = [1, 1]} : vector<32x6xf32> to vector<32x1xf32>
    %166 = vector.extract_strided_slice %164 {offsets = [0, 1], sizes = [32, 1], strides = [1, 1]} : vector<32x6xf32> to vector<32x1xf32>
    %167 = vector.extract_strided_slice %164 {offsets = [0, 2], sizes = [32, 1], strides = [1, 1]} : vector<32x6xf32> to vector<32x1xf32>
    %168 = vector.extract_strided_slice %164 {offsets = [0, 3], sizes = [32, 1], strides = [1, 1]} : vector<32x6xf32> to vector<32x1xf32>
    %169 = vector.extract_strided_slice %164 {offsets = [0, 4], sizes = [32, 1], strides = [1, 1]} : vector<32x6xf32> to vector<32x1xf32>
    %170 = vector.extract_strided_slice %164 {offsets = [0, 5], sizes = [32, 1], strides = [1, 1]} : vector<32x6xf32> to vector<32x1xf32>
    %171 = vector.extract_strided_slice %163 {offsets = [0, 0], sizes = [32, 1], strides = [1, 1]} : vector<32x2xf32> to vector<32x1xf32>
    %172 = vector.extract_strided_slice %0 {offsets = [0, 0], sizes = [1, 256], strides = [1, 1]} : vector<2x256xf32> to vector<1x256xf32>
    %173 = vector.broadcast %171 : vector<32x1xf32> to vector<32x256xf32>
    %174 = vector.broadcast %172 : vector<1x256xf32> to vector<32x256xf32>
    %175 = arith.mulf %173, %174 : vector<32x256xf32>
    %176 = vector.broadcast %165 : vector<32x1xf32> to vector<32x256xf32>
    %177 = arith.addf %176, %175 : vector<32x256xf32>
    %178 = vector.extract_strided_slice %163 {offsets = [0, 1], sizes = [32, 1], strides = [1, 1]} : vector<32x2xf32> to vector<32x1xf32>
    %179 = vector.extract_strided_slice %0 {offsets = [1, 0], sizes = [1, 256], strides = [1, 1]} : vector<2x256xf32> to vector<1x256xf32>
    %180 = vector.broadcast %178 : vector<32x1xf32> to vector<32x256xf32>
    %181 = vector.broadcast %179 : vector<1x256xf32> to vector<32x256xf32>
    %182 = arith.mulf %180, %181 : vector<32x256xf32>
    %183 = arith.addf %177, %182 : vector<32x256xf32>
    %cst_64 = arith.constant dense<0.000000e+00> : vector<256xf32>
    %184 = vector.multi_reduction <add>, %183, %cst_64 [0] : vector<32x256xf32> to vector<256xf32>
    %185 = vector.shape_cast %184 : vector<256xf32> to vector<1x256xf32>
    %cst_65 = arith.constant 3.200000e+01 : f32
    %186 = vector.broadcast %cst_65 : f32 to vector<1x256xf32>
    %187 = arith.divf %185, %186 : vector<1x256xf32>
    %188 = vector.broadcast %187 : vector<1x256xf32> to vector<32x256xf32>
    %189 = arith.subf %183, %188 : vector<32x256xf32>
    %190 = arith.mulf %189, %189 : vector<32x256xf32>
    %cst_66 = arith.constant dense<0.000000e+00> : vector<256xf32>
    %191 = vector.multi_reduction <add>, %190, %cst_66 [0] : vector<32x256xf32> to vector<256xf32>
    %192 = vector.shape_cast %191 : vector<256xf32> to vector<1x256xf32>
    %cst_67 = arith.constant 3.200000e+01 : f32
    %193 = vector.broadcast %cst_67 : f32 to vector<1x256xf32>
    %194 = arith.divf %192, %193 : vector<1x256xf32>
    %195 = vector.broadcast %187 : vector<1x256xf32> to vector<32x256xf32>
    %196 = arith.subf %183, %195 : vector<32x256xf32>
    %cst_68 = arith.constant 9.99999974E-6 : f32
    %197 = vector.broadcast %cst_68 : f32 to vector<1x256xf32>
    %198 = arith.addf %194, %197 : vector<1x256xf32>
    %199 = math.rsqrt %198 : vector<1x256xf32>
    %200 = vector.broadcast %199 : vector<1x256xf32> to vector<32x256xf32>
    %201 = arith.mulf %196, %200 : vector<32x256xf32>
    %202 = vector.broadcast %166 : vector<32x1xf32> to vector<32x256xf32>
    %203 = arith.mulf %201, %202 : vector<32x256xf32>
    %204 = vector.broadcast %167 : vector<32x1xf32> to vector<32x256xf32>
    %205 = arith.addf %203, %204 : vector<32x256xf32>
    %cst_69 = arith.constant 0.000000e+00 : f32
    %206 = vector.broadcast %cst_69 : f32 to vector<32x256xf32>
    %207 = arith.maximumf %205, %206 : vector<32x256xf32>
    %c0_70 = arith.constant 0 : index
    %c0_71 = arith.constant 0 : index
    %208 = vector.load %arg14[%c0_70, %c0_71] : memref<32x32xf32, #tpu.memory_space<vmem>>, vector<32x32xf32>
    %cst_72 = arith.constant dense<0.000000e+00> : vector<32x256xf32>
    %209 = tpu.matmul %208, %207, %cst_72 {dimension_numbers = #tpu.dot_dimension_numbers<[1], [0], [0], [1], [0, 0, 1, 1], [], []>} : vector<32x32xf32>, vector<32x256xf32>, vector<32x256xf32> -> vector<32x256xf32>
    %210 = vector.broadcast %168 : vector<32x1xf32> to vector<32x256xf32>
    %211 = arith.addf %209, %210 : vector<32x256xf32>
    %cst_73 = arith.constant dense<0.000000e+00> : vector<256xf32>
    %212 = vector.multi_reduction <add>, %211, %cst_73 [0] : vector<32x256xf32> to vector<256xf32>
    %213 = vector.shape_cast %212 : vector<256xf32> to vector<1x256xf32>
    %cst_74 = arith.constant 3.200000e+01 : f32
    %214 = vector.broadcast %cst_74 : f32 to vector<1x256xf32>
    %215 = arith.divf %213, %214 : vector<1x256xf32>
    %216 = vector.broadcast %215 : vector<1x256xf32> to vector<32x256xf32>
    %217 = arith.subf %211, %216 : vector<32x256xf32>
    %218 = arith.mulf %217, %217 : vector<32x256xf32>
    %cst_75 = arith.constant dense<0.000000e+00> : vector<256xf32>
    %219 = vector.multi_reduction <add>, %218, %cst_75 [0] : vector<32x256xf32> to vector<256xf32>
    %220 = vector.shape_cast %219 : vector<256xf32> to vector<1x256xf32>
    %cst_76 = arith.constant 3.200000e+01 : f32
    %221 = vector.broadcast %cst_76 : f32 to vector<1x256xf32>
    %222 = arith.divf %220, %221 : vector<1x256xf32>
    %223 = vector.broadcast %215 : vector<1x256xf32> to vector<32x256xf32>
    %224 = arith.subf %211, %223 : vector<32x256xf32>
    %cst_77 = arith.constant 9.99999974E-6 : f32
    %225 = vector.broadcast %cst_77 : f32 to vector<1x256xf32>
    %226 = arith.addf %222, %225 : vector<1x256xf32>
    %227 = math.rsqrt %226 : vector<1x256xf32>
    %228 = vector.broadcast %227 : vector<1x256xf32> to vector<32x256xf32>
    %229 = arith.mulf %224, %228 : vector<32x256xf32>
    %230 = vector.broadcast %169 : vector<32x1xf32> to vector<32x256xf32>
    %231 = arith.mulf %229, %230 : vector<32x256xf32>
    %232 = vector.broadcast %170 : vector<32x1xf32> to vector<32x256xf32>
    %233 = arith.addf %231, %232 : vector<32x256xf32>
    %cst_78 = arith.constant 0.000000e+00 : f32
    %234 = vector.broadcast %cst_78 : f32 to vector<32x256xf32>
    %235 = arith.maximumf %233, %234 : vector<32x256xf32>
    %c0_79 = arith.constant 0 : index
    %c0_80 = arith.constant 0 : index
    %236 = vector.load %arg15[%c0_79, %c0_80] : memref<8x32xf32, #tpu.memory_space<vmem>>, vector<8x32xf32>
    %cst_81 = arith.constant dense<0.000000e+00> : vector<8x256xf32>
    %237 = tpu.matmul %236, %235, %cst_81 {dimension_numbers = #tpu.dot_dimension_numbers<[1], [0], [0], [1], [0, 0, 1, 1], [], []>} : vector<8x32xf32>, vector<32x256xf32>, vector<8x256xf32> -> vector<8x256xf32>
    %c0_82 = arith.constant 0 : index
    %c0_83 = arith.constant 0 : index
    %238 = vector.load %arg16[%c0_82, %c0_83] : memref<8x1xf32, #tpu.memory_space<vmem>>, vector<8x1xf32>
    %239 = vector.broadcast %238 : vector<8x1xf32> to vector<8x256xf32>
    %240 = arith.addf %237, %239 : vector<8x256xf32>
    %c0_84 = arith.constant 0 : index
    %c0_85 = arith.constant 0 : index
    %241 = vector.load %arg17[%c0_84, %c0_85] : memref<32x2xf32, #tpu.memory_space<vmem>>, vector<32x2xf32>
    %c0_86 = arith.constant 0 : index
    %c0_87 = arith.constant 0 : index
    %242 = vector.load %arg18[%c0_86, %c0_87] : memref<32x6xf32, #tpu.memory_space<vmem>>, vector<32x6xf32>
    %243 = vector.extract_strided_slice %242 {offsets = [0, 0], sizes = [32, 1], strides = [1, 1]} : vector<32x6xf32> to vector<32x1xf32>
    %244 = vector.extract_strided_slice %242 {offsets = [0, 1], sizes = [32, 1], strides = [1, 1]} : vector<32x6xf32> to vector<32x1xf32>
    %245 = vector.extract_strided_slice %242 {offsets = [0, 2], sizes = [32, 1], strides = [1, 1]} : vector<32x6xf32> to vector<32x1xf32>
    %246 = vector.extract_strided_slice %242 {offsets = [0, 3], sizes = [32, 1], strides = [1, 1]} : vector<32x6xf32> to vector<32x1xf32>
    %247 = vector.extract_strided_slice %242 {offsets = [0, 4], sizes = [32, 1], strides = [1, 1]} : vector<32x6xf32> to vector<32x1xf32>
    %248 = vector.extract_strided_slice %242 {offsets = [0, 5], sizes = [32, 1], strides = [1, 1]} : vector<32x6xf32> to vector<32x1xf32>
    %249 = vector.extract_strided_slice %241 {offsets = [0, 0], sizes = [32, 1], strides = [1, 1]} : vector<32x2xf32> to vector<32x1xf32>
    %250 = vector.extract_strided_slice %0 {offsets = [0, 0], sizes = [1, 256], strides = [1, 1]} : vector<2x256xf32> to vector<1x256xf32>
    %251 = vector.broadcast %249 : vector<32x1xf32> to vector<32x256xf32>
    %252 = vector.broadcast %250 : vector<1x256xf32> to vector<32x256xf32>
    %253 = arith.mulf %251, %252 : vector<32x256xf32>
    %254 = vector.broadcast %243 : vector<32x1xf32> to vector<32x256xf32>
    %255 = arith.addf %254, %253 : vector<32x256xf32>
    %256 = vector.extract_strided_slice %241 {offsets = [0, 1], sizes = [32, 1], strides = [1, 1]} : vector<32x2xf32> to vector<32x1xf32>
    %257 = vector.extract_strided_slice %0 {offsets = [1, 0], sizes = [1, 256], strides = [1, 1]} : vector<2x256xf32> to vector<1x256xf32>
    %258 = vector.broadcast %256 : vector<32x1xf32> to vector<32x256xf32>
    %259 = vector.broadcast %257 : vector<1x256xf32> to vector<32x256xf32>
    %260 = arith.mulf %258, %259 : vector<32x256xf32>
    %261 = arith.addf %255, %260 : vector<32x256xf32>
    %cst_88 = arith.constant dense<0.000000e+00> : vector<256xf32>
    %262 = vector.multi_reduction <add>, %261, %cst_88 [0] : vector<32x256xf32> to vector<256xf32>
    %263 = vector.shape_cast %262 : vector<256xf32> to vector<1x256xf32>
    %cst_89 = arith.constant 3.200000e+01 : f32
    %264 = vector.broadcast %cst_89 : f32 to vector<1x256xf32>
    %265 = arith.divf %263, %264 : vector<1x256xf32>
    %266 = vector.broadcast %265 : vector<1x256xf32> to vector<32x256xf32>
    %267 = arith.subf %261, %266 : vector<32x256xf32>
    %268 = arith.mulf %267, %267 : vector<32x256xf32>
    %cst_90 = arith.constant dense<0.000000e+00> : vector<256xf32>
    %269 = vector.multi_reduction <add>, %268, %cst_90 [0] : vector<32x256xf32> to vector<256xf32>
    %270 = vector.shape_cast %269 : vector<256xf32> to vector<1x256xf32>
    %cst_91 = arith.constant 3.200000e+01 : f32
    %271 = vector.broadcast %cst_91 : f32 to vector<1x256xf32>
    %272 = arith.divf %270, %271 : vector<1x256xf32>
    %273 = vector.broadcast %265 : vector<1x256xf32> to vector<32x256xf32>
    %274 = arith.subf %261, %273 : vector<32x256xf32>
    %cst_92 = arith.constant 9.99999974E-6 : f32
    %275 = vector.broadcast %cst_92 : f32 to vector<1x256xf32>
    %276 = arith.addf %272, %275 : vector<1x256xf32>
    %277 = math.rsqrt %276 : vector<1x256xf32>
    %278 = vector.broadcast %277 : vector<1x256xf32> to vector<32x256xf32>
    %279 = arith.mulf %274, %278 : vector<32x256xf32>
    %280 = vector.broadcast %244 : vector<32x1xf32> to vector<32x256xf32>
    %281 = arith.mulf %279, %280 : vector<32x256xf32>
    %282 = vector.broadcast %245 : vector<32x1xf32> to vector<32x256xf32>
    %283 = arith.addf %281, %282 : vector<32x256xf32>
    %cst_93 = arith.constant 0.000000e+00 : f32
    %284 = vector.broadcast %cst_93 : f32 to vector<32x256xf32>
    %285 = arith.maximumf %283, %284 : vector<32x256xf32>
    %c0_94 = arith.constant 0 : index
    %c0_95 = arith.constant 0 : index
    %286 = vector.load %arg19[%c0_94, %c0_95] : memref<32x32xf32, #tpu.memory_space<vmem>>, vector<32x32xf32>
    %cst_96 = arith.constant dense<0.000000e+00> : vector<32x256xf32>
    %287 = tpu.matmul %286, %285, %cst_96 {dimension_numbers = #tpu.dot_dimension_numbers<[1], [0], [0], [1], [0, 0, 1, 1], [], []>} : vector<32x32xf32>, vector<32x256xf32>, vector<32x256xf32> -> vector<32x256xf32>
    %288 = vector.broadcast %246 : vector<32x1xf32> to vector<32x256xf32>
    %289 = arith.addf %287, %288 : vector<32x256xf32>
    %cst_97 = arith.constant dense<0.000000e+00> : vector<256xf32>
    %290 = vector.multi_reduction <add>, %289, %cst_97 [0] : vector<32x256xf32> to vector<256xf32>
    %291 = vector.shape_cast %290 : vector<256xf32> to vector<1x256xf32>
    %cst_98 = arith.constant 3.200000e+01 : f32
    %292 = vector.broadcast %cst_98 : f32 to vector<1x256xf32>
    %293 = arith.divf %291, %292 : vector<1x256xf32>
    %294 = vector.broadcast %293 : vector<1x256xf32> to vector<32x256xf32>
    %295 = arith.subf %289, %294 : vector<32x256xf32>
    %296 = arith.mulf %295, %295 : vector<32x256xf32>
    %cst_99 = arith.constant dense<0.000000e+00> : vector<256xf32>
    %297 = vector.multi_reduction <add>, %296, %cst_99 [0] : vector<32x256xf32> to vector<256xf32>
    %298 = vector.shape_cast %297 : vector<256xf32> to vector<1x256xf32>
    %cst_100 = arith.constant 3.200000e+01 : f32
    %299 = vector.broadcast %cst_100 : f32 to vector<1x256xf32>
    %300 = arith.divf %298, %299 : vector<1x256xf32>
    %301 = vector.broadcast %293 : vector<1x256xf32> to vector<32x256xf32>
    %302 = arith.subf %289, %301 : vector<32x256xf32>
    %cst_101 = arith.constant 9.99999974E-6 : f32
    %303 = vector.broadcast %cst_101 : f32 to vector<1x256xf32>
    %304 = arith.addf %300, %303 : vector<1x256xf32>
    %305 = math.rsqrt %304 : vector<1x256xf32>
    %306 = vector.broadcast %305 : vector<1x256xf32> to vector<32x256xf32>
    %307 = arith.mulf %302, %306 : vector<32x256xf32>
    %308 = vector.broadcast %247 : vector<32x1xf32> to vector<32x256xf32>
    %309 = arith.mulf %307, %308 : vector<32x256xf32>
    %310 = vector.broadcast %248 : vector<32x1xf32> to vector<32x256xf32>
    %311 = arith.addf %309, %310 : vector<32x256xf32>
    %cst_102 = arith.constant 0.000000e+00 : f32
    %312 = vector.broadcast %cst_102 : f32 to vector<32x256xf32>
    %313 = arith.maximumf %311, %312 : vector<32x256xf32>
    %c0_103 = arith.constant 0 : index
    %c0_104 = arith.constant 0 : index
    %314 = vector.load %arg20[%c0_103, %c0_104] : memref<8x32xf32, #tpu.memory_space<vmem>>, vector<8x32xf32>
    %cst_105 = arith.constant dense<0.000000e+00> : vector<8x256xf32>
    %315 = tpu.matmul %314, %313, %cst_105 {dimension_numbers = #tpu.dot_dimension_numbers<[1], [0], [0], [1], [0, 0, 1, 1], [], []>} : vector<8x32xf32>, vector<32x256xf32>, vector<8x256xf32> -> vector<8x256xf32>
    %c0_106 = arith.constant 0 : index
    %c0_107 = arith.constant 0 : index
    %316 = vector.load %arg21[%c0_106, %c0_107] : memref<8x1xf32, #tpu.memory_space<vmem>>, vector<8x1xf32>
    %317 = vector.broadcast %316 : vector<8x1xf32> to vector<8x256xf32>
    %318 = arith.addf %315, %317 : vector<8x256xf32>
    %319 = vector.extract_strided_slice %84 {offsets = [0, 0], sizes = [1, 256], strides = [1, 1]} : vector<8x256xf32> to vector<1x256xf32>
    %320 = arith.mulf %319, %3 : vector<1x256xf32>
    %321 = arith.mulf %320, %1 : vector<1x256xf32>
    %322 = vector.extract_strided_slice %2 {offsets = [0, 0], sizes = [1, 256], strides = [1, 1]} : vector<3x256xf32> to vector<1x256xf32>
    %323 = vector.extract_strided_slice %240 {offsets = [0, 0], sizes = [1, 256], strides = [1, 1]} : vector<8x256xf32> to vector<1x256xf32>
    %324 = vector.extract_strided_slice %5 {offsets = [0, 0], sizes = [1, 256], strides = [1, 1]} : vector<3x256xf32> to vector<1x256xf32>
    %325 = arith.mulf %323, %324 : vector<1x256xf32>
    %326 = arith.mulf %325, %322 : vector<1x256xf32>
    %327 = arith.addf %321, %326 : vector<1x256xf32>
    %328 = vector.extract_strided_slice %2 {offsets = [1, 0], sizes = [1, 256], strides = [1, 1]} : vector<3x256xf32> to vector<1x256xf32>
    %329 = vector.extract_strided_slice %240 {offsets = [0, 0], sizes = [1, 256], strides = [1, 1]} : vector<8x256xf32> to vector<1x256xf32>
    %330 = vector.extract_strided_slice %5 {offsets = [1, 0], sizes = [1, 256], strides = [1, 1]} : vector<3x256xf32> to vector<1x256xf32>
    %331 = arith.mulf %329, %330 : vector<1x256xf32>
    %332 = arith.mulf %331, %328 : vector<1x256xf32>
    %333 = arith.addf %327, %332 : vector<1x256xf32>
    %334 = vector.extract_strided_slice %2 {offsets = [2, 0], sizes = [1, 256], strides = [1, 1]} : vector<3x256xf32> to vector<1x256xf32>
    %335 = vector.extract_strided_slice %240 {offsets = [0, 0], sizes = [1, 256], strides = [1, 1]} : vector<8x256xf32> to vector<1x256xf32>
    %336 = vector.extract_strided_slice %5 {offsets = [2, 0], sizes = [1, 256], strides = [1, 1]} : vector<3x256xf32> to vector<1x256xf32>
    %337 = arith.mulf %335, %336 : vector<1x256xf32>
    %338 = arith.mulf %337, %334 : vector<1x256xf32>
    %339 = arith.addf %333, %338 : vector<1x256xf32>
    %340 = vector.extract_strided_slice %162 {offsets = [0, 0], sizes = [1, 256], strides = [1, 1]} : vector<8x256xf32> to vector<1x256xf32>
    %341 = vector.extract_strided_slice %4 {offsets = [0, 0], sizes = [1, 256], strides = [1, 1]} : vector<3x256xf32> to vector<1x256xf32>
    %342 = arith.mulf %340, %341 : vector<1x256xf32>
    %343 = arith.mulf %342, %1 : vector<1x256xf32>
    %344 = vector.extract_strided_slice %2 {offsets = [0, 0], sizes = [1, 256], strides = [1, 1]} : vector<3x256xf32> to vector<1x256xf32>
    %345 = vector.extract_strided_slice %318 {offsets = [0, 0], sizes = [1, 256], strides = [1, 1]} : vector<8x256xf32> to vector<1x256xf32>
    %346 = vector.extract_strided_slice %6 {offsets = [0, 0], sizes = [1, 256], strides = [1, 1]} : vector<27x256xf32> to vector<1x256xf32>
    %347 = arith.mulf %345, %346 : vector<1x256xf32>
    %348 = arith.mulf %347, %344 : vector<1x256xf32>
    %349 = arith.addf %343, %348 : vector<1x256xf32>
    %350 = vector.extract_strided_slice %318 {offsets = [1, 0], sizes = [1, 256], strides = [1, 1]} : vector<8x256xf32> to vector<1x256xf32>
    %351 = vector.extract_strided_slice %6 {offsets = [1, 0], sizes = [1, 256], strides = [1, 1]} : vector<27x256xf32> to vector<1x256xf32>
    %352 = arith.mulf %350, %351 : vector<1x256xf32>
    %353 = arith.mulf %352, %344 : vector<1x256xf32>
    %354 = arith.addf %349, %353 : vector<1x256xf32>
    %355 = vector.extract_strided_slice %318 {offsets = [2, 0], sizes = [1, 256], strides = [1, 1]} : vector<8x256xf32> to vector<1x256xf32>
    %356 = vector.extract_strided_slice %6 {offsets = [2, 0], sizes = [1, 256], strides = [1, 1]} : vector<27x256xf32> to vector<1x256xf32>
    %357 = arith.mulf %355, %356 : vector<1x256xf32>
    %358 = arith.mulf %357, %344 : vector<1x256xf32>
    %359 = arith.addf %354, %358 : vector<1x256xf32>
    %360 = vector.extract_strided_slice %2 {offsets = [1, 0], sizes = [1, 256], strides = [1, 1]} : vector<3x256xf32> to vector<1x256xf32>
    %361 = vector.extract_strided_slice %318 {offsets = [0, 0], sizes = [1, 256], strides = [1, 1]} : vector<8x256xf32> to vector<1x256xf32>
    %362 = vector.extract_strided_slice %6 {offsets = [3, 0], sizes = [1, 256], strides = [1, 1]} : vector<27x256xf32> to vector<1x256xf32>
    %363 = arith.mulf %361, %362 : vector<1x256xf32>
    %364 = arith.mulf %363, %360 : vector<1x256xf32>
    %365 = arith.addf %359, %364 : vector<1x256xf32>
    %366 = vector.extract_strided_slice %318 {offsets = [1, 0], sizes = [1, 256], strides = [1, 1]} : vector<8x256xf32> to vector<1x256xf32>
    %367 = vector.extract_strided_slice %6 {offsets = [4, 0], sizes = [1, 256], strides = [1, 1]} : vector<27x256xf32> to vector<1x256xf32>
    %368 = arith.mulf %366, %367 : vector<1x256xf32>
    %369 = arith.mulf %368, %360 : vector<1x256xf32>
    %370 = arith.addf %365, %369 : vector<1x256xf32>
    %371 = vector.extract_strided_slice %318 {offsets = [2, 0], sizes = [1, 256], strides = [1, 1]} : vector<8x256xf32> to vector<1x256xf32>
    %372 = vector.extract_strided_slice %6 {offsets = [5, 0], sizes = [1, 256], strides = [1, 1]} : vector<27x256xf32> to vector<1x256xf32>
    %373 = arith.mulf %371, %372 : vector<1x256xf32>
    %374 = arith.mulf %373, %360 : vector<1x256xf32>
    %375 = arith.addf %370, %374 : vector<1x256xf32>
    %376 = vector.extract_strided_slice %2 {offsets = [2, 0], sizes = [1, 256], strides = [1, 1]} : vector<3x256xf32> to vector<1x256xf32>
    %377 = vector.extract_strided_slice %318 {offsets = [0, 0], sizes = [1, 256], strides = [1, 1]} : vector<8x256xf32> to vector<1x256xf32>
    %378 = vector.extract_strided_slice %6 {offsets = [6, 0], sizes = [1, 256], strides = [1, 1]} : vector<27x256xf32> to vector<1x256xf32>
    %379 = arith.mulf %377, %378 : vector<1x256xf32>
    %380 = arith.mulf %379, %376 : vector<1x256xf32>
    %381 = arith.addf %375, %380 : vector<1x256xf32>
    %382 = vector.extract_strided_slice %318 {offsets = [1, 0], sizes = [1, 256], strides = [1, 1]} : vector<8x256xf32> to vector<1x256xf32>
    %383 = vector.extract_strided_slice %6 {offsets = [7, 0], sizes = [1, 256], strides = [1, 1]} : vector<27x256xf32> to vector<1x256xf32>
    %384 = arith.mulf %382, %383 : vector<1x256xf32>
    %385 = arith.mulf %384, %376 : vector<1x256xf32>
    %386 = arith.addf %381, %385 : vector<1x256xf32>
    %387 = vector.extract_strided_slice %318 {offsets = [2, 0], sizes = [1, 256], strides = [1, 1]} : vector<8x256xf32> to vector<1x256xf32>
    %388 = vector.extract_strided_slice %6 {offsets = [8, 0], sizes = [1, 256], strides = [1, 1]} : vector<27x256xf32> to vector<1x256xf32>
    %389 = arith.mulf %387, %388 : vector<1x256xf32>
    %390 = arith.mulf %389, %376 : vector<1x256xf32>
    %391 = arith.addf %386, %390 : vector<1x256xf32>
    %392 = vector.extract_strided_slice %162 {offsets = [0, 0], sizes = [1, 256], strides = [1, 1]} : vector<8x256xf32> to vector<1x256xf32>
    %393 = vector.extract_strided_slice %4 {offsets = [1, 0], sizes = [1, 256], strides = [1, 1]} : vector<3x256xf32> to vector<1x256xf32>
    %394 = arith.mulf %392, %393 : vector<1x256xf32>
    %395 = arith.mulf %394, %1 : vector<1x256xf32>
    %396 = vector.extract_strided_slice %2 {offsets = [0, 0], sizes = [1, 256], strides = [1, 1]} : vector<3x256xf32> to vector<1x256xf32>
    %397 = vector.extract_strided_slice %318 {offsets = [0, 0], sizes = [1, 256], strides = [1, 1]} : vector<8x256xf32> to vector<1x256xf32>
    %398 = vector.extract_strided_slice %6 {offsets = [9, 0], sizes = [1, 256], strides = [1, 1]} : vector<27x256xf32> to vector<1x256xf32>
    %399 = arith.mulf %397, %398 : vector<1x256xf32>
    %400 = arith.mulf %399, %396 : vector<1x256xf32>
    %401 = arith.addf %395, %400 : vector<1x256xf32>
    %402 = vector.extract_strided_slice %318 {offsets = [1, 0], sizes = [1, 256], strides = [1, 1]} : vector<8x256xf32> to vector<1x256xf32>
    %403 = vector.extract_strided_slice %6 {offsets = [10, 0], sizes = [1, 256], strides = [1, 1]} : vector<27x256xf32> to vector<1x256xf32>
    %404 = arith.mulf %402, %403 : vector<1x256xf32>
    %405 = arith.mulf %404, %396 : vector<1x256xf32>
    %406 = arith.addf %401, %405 : vector<1x256xf32>
    %407 = vector.extract_strided_slice %318 {offsets = [2, 0], sizes = [1, 256], strides = [1, 1]} : vector<8x256xf32> to vector<1x256xf32>
    %408 = vector.extract_strided_slice %6 {offsets = [11, 0], sizes = [1, 256], strides = [1, 1]} : vector<27x256xf32> to vector<1x256xf32>
    %409 = arith.mulf %407, %408 : vector<1x256xf32>
    %410 = arith.mulf %409, %396 : vector<1x256xf32>
    %411 = arith.addf %406, %410 : vector<1x256xf32>
    %412 = vector.extract_strided_slice %2 {offsets = [1, 0], sizes = [1, 256], strides = [1, 1]} : vector<3x256xf32> to vector<1x256xf32>
    %413 = vector.extract_strided_slice %318 {offsets = [0, 0], sizes = [1, 256], strides = [1, 1]} : vector<8x256xf32> to vector<1x256xf32>
    %414 = vector.extract_strided_slice %6 {offsets = [12, 0], sizes = [1, 256], strides = [1, 1]} : vector<27x256xf32> to vector<1x256xf32>
    %415 = arith.mulf %413, %414 : vector<1x256xf32>
    %416 = arith.mulf %415, %412 : vector<1x256xf32>
    %417 = arith.addf %411, %416 : vector<1x256xf32>
    %418 = vector.extract_strided_slice %318 {offsets = [1, 0], sizes = [1, 256], strides = [1, 1]} : vector<8x256xf32> to vector<1x256xf32>
    %419 = vector.extract_strided_slice %6 {offsets = [13, 0], sizes = [1, 256], strides = [1, 1]} : vector<27x256xf32> to vector<1x256xf32>
    %420 = arith.mulf %418, %419 : vector<1x256xf32>
    %421 = arith.mulf %420, %412 : vector<1x256xf32>
    %422 = arith.addf %417, %421 : vector<1x256xf32>
    %423 = vector.extract_strided_slice %318 {offsets = [2, 0], sizes = [1, 256], strides = [1, 1]} : vector<8x256xf32> to vector<1x256xf32>
    %424 = vector.extract_strided_slice %6 {offsets = [14, 0], sizes = [1, 256], strides = [1, 1]} : vector<27x256xf32> to vector<1x256xf32>
    %425 = arith.mulf %423, %424 : vector<1x256xf32>
    %426 = arith.mulf %425, %412 : vector<1x256xf32>
    %427 = arith.addf %422, %426 : vector<1x256xf32>
    %428 = vector.extract_strided_slice %2 {offsets = [2, 0], sizes = [1, 256], strides = [1, 1]} : vector<3x256xf32> to vector<1x256xf32>
    %429 = vector.extract_strided_slice %318 {offsets = [0, 0], sizes = [1, 256], strides = [1, 1]} : vector<8x256xf32> to vector<1x256xf32>
    %430 = vector.extract_strided_slice %6 {offsets = [15, 0], sizes = [1, 256], strides = [1, 1]} : vector<27x256xf32> to vector<1x256xf32>
    %431 = arith.mulf %429, %430 : vector<1x256xf32>
    %432 = arith.mulf %431, %428 : vector<1x256xf32>
    %433 = arith.addf %427, %432 : vector<1x256xf32>
    %434 = vector.extract_strided_slice %318 {offsets = [1, 0], sizes = [1, 256], strides = [1, 1]} : vector<8x256xf32> to vector<1x256xf32>
    %435 = vector.extract_strided_slice %6 {offsets = [16, 0], sizes = [1, 256], strides = [1, 1]} : vector<27x256xf32> to vector<1x256xf32>
    %436 = arith.mulf %434, %435 : vector<1x256xf32>
    %437 = arith.mulf %436, %428 : vector<1x256xf32>
    %438 = arith.addf %433, %437 : vector<1x256xf32>
    %439 = vector.extract_strided_slice %318 {offsets = [2, 0], sizes = [1, 256], strides = [1, 1]} : vector<8x256xf32> to vector<1x256xf32>
    %440 = vector.extract_strided_slice %6 {offsets = [17, 0], sizes = [1, 256], strides = [1, 1]} : vector<27x256xf32> to vector<1x256xf32>
    %441 = arith.mulf %439, %440 : vector<1x256xf32>
    %442 = arith.mulf %441, %428 : vector<1x256xf32>
    %443 = arith.addf %438, %442 : vector<1x256xf32>
    %444 = vector.extract_strided_slice %162 {offsets = [0, 0], sizes = [1, 256], strides = [1, 1]} : vector<8x256xf32> to vector<1x256xf32>
    %445 = vector.extract_strided_slice %4 {offsets = [2, 0], sizes = [1, 256], strides = [1, 1]} : vector<3x256xf32> to vector<1x256xf32>
    %446 = arith.mulf %444, %445 : vector<1x256xf32>
    %447 = arith.mulf %446, %1 : vector<1x256xf32>
    %448 = vector.extract_strided_slice %2 {offsets = [0, 0], sizes = [1, 256], strides = [1, 1]} : vector<3x256xf32> to vector<1x256xf32>
    %449 = vector.extract_strided_slice %318 {offsets = [0, 0], sizes = [1, 256], strides = [1, 1]} : vector<8x256xf32> to vector<1x256xf32>
    %450 = vector.extract_strided_slice %6 {offsets = [18, 0], sizes = [1, 256], strides = [1, 1]} : vector<27x256xf32> to vector<1x256xf32>
    %451 = arith.mulf %449, %450 : vector<1x256xf32>
    %452 = arith.mulf %451, %448 : vector<1x256xf32>
    %453 = arith.addf %447, %452 : vector<1x256xf32>
    %454 = vector.extract_strided_slice %318 {offsets = [1, 0], sizes = [1, 256], strides = [1, 1]} : vector<8x256xf32> to vector<1x256xf32>
    %455 = vector.extract_strided_slice %6 {offsets = [19, 0], sizes = [1, 256], strides = [1, 1]} : vector<27x256xf32> to vector<1x256xf32>
    %456 = arith.mulf %454, %455 : vector<1x256xf32>
    %457 = arith.mulf %456, %448 : vector<1x256xf32>
    %458 = arith.addf %453, %457 : vector<1x256xf32>
    %459 = vector.extract_strided_slice %318 {offsets = [2, 0], sizes = [1, 256], strides = [1, 1]} : vector<8x256xf32> to vector<1x256xf32>
    %460 = vector.extract_strided_slice %6 {offsets = [20, 0], sizes = [1, 256], strides = [1, 1]} : vector<27x256xf32> to vector<1x256xf32>
    %461 = arith.mulf %459, %460 : vector<1x256xf32>
    %462 = arith.mulf %461, %448 : vector<1x256xf32>
    %463 = arith.addf %458, %462 : vector<1x256xf32>
    %464 = vector.extract_strided_slice %2 {offsets = [1, 0], sizes = [1, 256], strides = [1, 1]} : vector<3x256xf32> to vector<1x256xf32>
    %465 = vector.extract_strided_slice %318 {offsets = [0, 0], sizes = [1, 256], strides = [1, 1]} : vector<8x256xf32> to vector<1x256xf32>
    %466 = vector.extract_strided_slice %6 {offsets = [21, 0], sizes = [1, 256], strides = [1, 1]} : vector<27x256xf32> to vector<1x256xf32>
    %467 = arith.mulf %465, %466 : vector<1x256xf32>
    %468 = arith.mulf %467, %464 : vector<1x256xf32>
    %469 = arith.addf %463, %468 : vector<1x256xf32>
    %470 = vector.extract_strided_slice %318 {offsets = [1, 0], sizes = [1, 256], strides = [1, 1]} : vector<8x256xf32> to vector<1x256xf32>
    %471 = vector.extract_strided_slice %6 {offsets = [22, 0], sizes = [1, 256], strides = [1, 1]} : vector<27x256xf32> to vector<1x256xf32>
    %472 = arith.mulf %470, %471 : vector<1x256xf32>
    %473 = arith.mulf %472, %464 : vector<1x256xf32>
    %474 = arith.addf %469, %473 : vector<1x256xf32>
    %475 = vector.extract_strided_slice %318 {offsets = [2, 0], sizes = [1, 256], strides = [1, 1]} : vector<8x256xf32> to vector<1x256xf32>
    %476 = vector.extract_strided_slice %6 {offsets = [23, 0], sizes = [1, 256], strides = [1, 1]} : vector<27x256xf32> to vector<1x256xf32>
    %477 = arith.mulf %475, %476 : vector<1x256xf32>
    %478 = arith.mulf %477, %464 : vector<1x256xf32>
    %479 = arith.addf %474, %478 : vector<1x256xf32>
    %480 = vector.extract_strided_slice %2 {offsets = [2, 0], sizes = [1, 256], strides = [1, 1]} : vector<3x256xf32> to vector<1x256xf32>
    %481 = vector.extract_strided_slice %318 {offsets = [0, 0], sizes = [1, 256], strides = [1, 1]} : vector<8x256xf32> to vector<1x256xf32>
    %482 = vector.extract_strided_slice %6 {offsets = [24, 0], sizes = [1, 256], strides = [1, 1]} : vector<27x256xf32> to vector<1x256xf32>
    %483 = arith.mulf %481, %482 : vector<1x256xf32>
    %484 = arith.mulf %483, %480 : vector<1x256xf32>
    %485 = arith.addf %479, %484 : vector<1x256xf32>
    %486 = vector.extract_strided_slice %318 {offsets = [1, 0], sizes = [1, 256], strides = [1, 1]} : vector<8x256xf32> to vector<1x256xf32>
    %487 = vector.extract_strided_slice %6 {offsets = [25, 0], sizes = [1, 256], strides = [1, 1]} : vector<27x256xf32> to vector<1x256xf32>
    %488 = arith.mulf %486, %487 : vector<1x256xf32>
    %489 = arith.mulf %488, %480 : vector<1x256xf32>
    %490 = arith.addf %485, %489 : vector<1x256xf32>
    %491 = vector.extract_strided_slice %318 {offsets = [2, 0], sizes = [1, 256], strides = [1, 1]} : vector<8x256xf32> to vector<1x256xf32>
    %492 = vector.extract_strided_slice %6 {offsets = [26, 0], sizes = [1, 256], strides = [1, 1]} : vector<27x256xf32> to vector<1x256xf32>
    %493 = arith.mulf %491, %492 : vector<1x256xf32>
    %494 = arith.mulf %493, %480 : vector<1x256xf32>
    %495 = arith.addf %490, %494 : vector<1x256xf32>
    %cst_108 = arith.constant 0.000000e+00 : f32
    %496 = vector.broadcast %cst_108 : f32 to vector<4x256xf32>
    %497 = tpu.concatenate %339, %391, %443, %495, %496 in 0 : vector<1x256xf32>, vector<1x256xf32>, vector<1x256xf32>, vector<1x256xf32>, vector<4x256xf32> -> vector<8x256xf32>
    %c0_i32 = arith.constant 0 : i32
    %498 = arith.cmpi eq, %arg0, %c0_i32 : i32
    %499 = arith.extui %498 : i1 to i32
    %c0_i32_109 = arith.constant 0 : i32
    %500 = arith.cmpi ne, %499, %c0_i32_109 : i32
    scf.if %500 {
      %cst_119 = arith.constant 0.000000e+00 : f32
      %509 = vector.broadcast %cst_119 : f32 to vector<8x128xf32>
      %c0_120 = arith.constant 0 : index
      %c0_121 = arith.constant 0 : index
      %510 = vector.load %arg31[%c0_120, %c0_121] : memref<8x128xf32, #tpu.memory_space<vmem>>, vector<8x128xf32>
      tpu.vector_store %arg31[%c0_120, %c0_121], %509 {strides = array<i32>} : memref<8x128xf32, #tpu.memory_space<vmem>>, vector<8x128xf32>,
    } else {
    }
    %c0_110 = arith.constant 0 : index
    %c0_111 = arith.constant 0 : index
    %501 = vector.load %arg31[%c0_110, %c0_111] : memref<8x128xf32, #tpu.memory_space<vmem>>, vector<8x128xf32>
    %c0_112 = arith.constant 0 : index
    %c0_113 = arith.constant 0 : index
    %502 = vector.load %arg28[%c0_112, %c0_113] : memref<256x128xf32, #tpu.memory_space<vmem>>, vector<256x128xf32>
    %cst_114 = arith.constant dense<0.000000e+00> : vector<8x128xf32>
    %503 = tpu.matmul %497, %502, %cst_114 {dimension_numbers = #tpu.dot_dimension_numbers<[1], [0], [0], [1], [0, 0, 1, 1], [], []>} : vector<8x256xf32>, vector<256x128xf32>, vector<8x128xf32> -> vector<8x128xf32>
    %504 = arith.addf %501, %503 : vector<8x128xf32>
    %c0_115 = arith.constant 0 : index
    %c0_116 = arith.constant 0 : index
    %505 = vector.load %arg31[%c0_115, %c0_116] : memref<8x128xf32, #tpu.memory_space<vmem>>, vector<8x128xf32>
    tpu.vector_store %arg31[%c0_115, %c0_116], %504 {strides = array<i32>} : memref<8x128xf32, #tpu.memory_space<vmem>>, vector<8x128xf32>,
    %c0_i32_117 = arith.constant 0 : i32
    %506 = arith.cmpi eq, %arg0, %c0_i32_117 : i32
    %507 = arith.extui %506 : i1 to i32
    %c0_i32_118 = arith.constant 0 : i32
    %508 = arith.cmpi ne, %507, %c0_i32_118 : i32
    scf.if %508 {
      %c0_119 = arith.constant 0 : index
      %c0_120 = arith.constant 0 : index
      %509 = vector.load %arg31[%c0_119, %c0_120] : memref<8x128xf32, #tpu.memory_space<vmem>>, vector<8x128xf32>
      %c0_121 = arith.constant 0 : index
      %c0_122 = arith.constant 0 : index
      %510 = vector.load %arg29[%c0_121, %c0_122] : memref<1x128xf32, #tpu.memory_space<vmem>>, vector<1x128xf32>
      %511 = vector.broadcast %510 : vector<1x128xf32> to vector<8x128xf32>
      %512 = arith.mulf %509, %511 : vector<8x128xf32>
      %c0_123 = arith.constant 0 : index
      %c0_124 = arith.constant 0 : index
      %513 = vector.load %arg30[%c0_123, %c0_124] : memref<8x128xf32, #tpu.memory_space<vmem>>, vector<8x128xf32>
      %514 = arith.addf %512, %513 : vector<8x128xf32>
      %c0_125 = arith.constant 0 : index
      %c0_126 = arith.constant 0 : index
      %515 = vector.load %arg31[%c0_125, %c0_126] : memref<8x128xf32, #tpu.memory_space<vmem>>, vector<8x128xf32>
      tpu.vector_store %arg31[%c0_125, %c0_126], %514 {strides = array<i32>} : memref<8x128xf32, #tpu.memory_space<vmem>>, vector<8x128xf32>,
    } else {
    }
    return
  }
  func.func @transform_0(%arg0: i32) -> (i32, i32) {
    %c0_i32 = arith.constant 0 : i32
    %c0_i32_0 = arith.constant 0 : i32
    return %c0_i32, %arg0 : i32, i32
  }
  func.func @transform_1(%arg0: i32) -> (i32, i32) {
    %c0_i32 = arith.constant 0 : i32
    %c0_i32_0 = arith.constant 0 : i32
    %c0_i32_1 = arith.constant 0 : i32
    return %c0_i32, %c0_i32_0 : i32, i32
  }
  func.func @transform_2(%arg0: i32) -> (i32, i32) {
    %c0_i32 = arith.constant 0 : i32
    %c0_i32_0 = arith.constant 0 : i32
    %c0_i32_1 = arith.constant 0 : i32
    return %c0_i32, %c0_i32_0 : i32, i32
  }
  func.func @transform_3(%arg0: i32) -> (i32, i32) {
    %c0_i32 = arith.constant 0 : i32
    %c0_i32_0 = arith.constant 0 : i32
    %c0_i32_1 = arith.constant 0 : i32
    return %c0_i32, %c0_i32_0 : i32, i32
  }
  func.func @transform_4(%arg0: i32) -> (i32, i32) {
    %c0_i32 = arith.constant 0 : i32
    %c0_i32_0 = arith.constant 0 : i32
    %c0_i32_1 = arith.constant 0 : i32
    return %c0_i32, %c0_i32_0 : i32, i32
  }
  func.func @transform_5(%arg0: i32) -> (i32, i32) {
    %c0_i32 = arith.constant 0 : i32
    %c0_i32_0 = arith.constant 0 : i32
    %c0_i32_1 = arith.constant 0 : i32
    return %c0_i32, %c0_i32_0 : i32, i32
  }
  func.func @transform_6(%arg0: i32) -> (i32, i32) {
    %c0_i32 = arith.constant 0 : i32
    %c0_i32_0 = arith.constant 0 : i32
    %c0_i32_1 = arith.constant 0 : i32
    return %c0_i32, %c0_i32_0 : i32, i32
  }
  func.func @transform_7(%arg0: i32) -> (i32, i32) {
    %c0_i32 = arith.constant 0 : i32
    %c0_i32_0 = arith.constant 0 : i32
    %c0_i32_1 = arith.constant 0 : i32
    return %c0_i32, %c0_i32_0 : i32, i32
  }
  func.func @transform_8(%arg0: i32) -> (i32, i32) {
    %c0_i32 = arith.constant 0 : i32
    %c0_i32_0 = arith.constant 0 : i32
    %c0_i32_1 = arith.constant 0 : i32
    return %c0_i32, %c0_i32_0 : i32, i32
  }
  func.func @transform_9(%arg0: i32) -> (i32, i32) {
    %c0_i32 = arith.constant 0 : i32
    %c0_i32_0 = arith.constant 0 : i32
    %c0_i32_1 = arith.constant 0 : i32
    return %c0_i32, %c0_i32_0 : i32, i32
  }
  func.func @transform_10(%arg0: i32) -> (i32, i32) {
    %c0_i32 = arith.constant 0 : i32
    %c0_i32_0 = arith.constant 0 : i32
    %c0_i32_1 = arith.constant 0 : i32
    return %c0_i32, %c0_i32_0 : i32, i32
  }
  func.func @transform_11(%arg0: i32) -> (i32, i32) {
    %c0_i32 = arith.constant 0 : i32
    %c0_i32_0 = arith.constant 0 : i32
    %c0_i32_1 = arith.constant 0 : i32
    return %c0_i32, %c0_i32_0 : i32, i32
  }
  func.func @transform_12(%arg0: i32) -> (i32, i32) {
    %c0_i32 = arith.constant 0 : i32
    %c0_i32_0 = arith.constant 0 : i32
    %c0_i32_1 = arith.constant 0 : i32
    return %c0_i32, %c0_i32_0 : i32, i32
  }
  func.func @transform_13(%arg0: i32) -> (i32, i32) {
    %c0_i32 = arith.constant 0 : i32
    %c0_i32_0 = arith.constant 0 : i32
    %c0_i32_1 = arith.constant 0 : i32
    return %c0_i32, %c0_i32_0 : i32, i32
  }
  func.func @transform_14(%arg0: i32) -> (i32, i32) {
    %c0_i32 = arith.constant 0 : i32
    %c0_i32_0 = arith.constant 0 : i32
    %c0_i32_1 = arith.constant 0 : i32
    return %c0_i32, %c0_i32_0 : i32, i32
  }
  func.func @transform_15(%arg0: i32) -> (i32, i32) {
    %c0_i32 = arith.constant 0 : i32
    %c0_i32_0 = arith.constant 0 : i32
    %c0_i32_1 = arith.constant 0 : i32
    return %c0_i32, %c0_i32_0 : i32, i32
  }
  func.func @transform_16(%arg0: i32) -> (i32, i32) {
    %c0_i32 = arith.constant 0 : i32
    %c0_i32_0 = arith.constant 0 : i32
    %c0_i32_1 = arith.constant 0 : i32
    return %c0_i32, %c0_i32_0 : i32, i32
  }
  func.func @transform_17(%arg0: i32) -> (i32, i32) {
    %c0_i32 = arith.constant 0 : i32
    %c0_i32_0 = arith.constant 0 : i32
    %c0_i32_1 = arith.constant 0 : i32
    return %c0_i32, %c0_i32_0 : i32, i32
  }
  func.func @transform_18(%arg0: i32) -> (i32, i32) {
    %c0_i32 = arith.constant 0 : i32
    %c0_i32_0 = arith.constant 0 : i32
    %c0_i32_1 = arith.constant 0 : i32
    return %c0_i32, %c0_i32_0 : i32, i32
  }
  func.func @transform_19(%arg0: i32) -> (i32, i32) {
    %c0_i32 = arith.constant 0 : i32
    %c0_i32_0 = arith.constant 0 : i32
    %c0_i32_1 = arith.constant 0 : i32
    return %c0_i32, %c0_i32_0 : i32, i32
  }
  func.func @transform_20(%arg0: i32) -> (i32, i32) {
    %c0_i32 = arith.constant 0 : i32
    %c0_i32_0 = arith.constant 0 : i32
    %c0_i32_1 = arith.constant 0 : i32
    return %c0_i32, %c0_i32_0 : i32, i32
  }
  func.func @transform_21(%arg0: i32) -> (i32, i32) {
    %c0_i32 = arith.constant 0 : i32
    %c0_i32_0 = arith.constant 0 : i32
    return %c0_i32, %arg0 : i32, i32
  }
  func.func @transform_22(%arg0: i32) -> (i32, i32) {
    %c0_i32 = arith.constant 0 : i32
    %c0_i32_0 = arith.constant 0 : i32
    return %c0_i32, %arg0 : i32, i32
  }
  func.func @transform_23(%arg0: i32) -> (i32, i32) {
    %c0_i32 = arith.constant 0 : i32
    %c0_i32_0 = arith.constant 0 : i32
    return %c0_i32, %arg0 : i32, i32
  }
  func.func @transform_24(%arg0: i32) -> (i32, i32) {
    %c0_i32 = arith.constant 0 : i32
    %c0_i32_0 = arith.constant 0 : i32
    return %c0_i32, %arg0 : i32, i32
  }
  func.func @transform_25(%arg0: i32) -> (i32, i32) {
    %c0_i32 = arith.constant 0 : i32
    %c0_i32_0 = arith.constant 0 : i32
    return %c0_i32, %arg0 : i32, i32
  }
  func.func @transform_26(%arg0: i32) -> (i32, i32) {
    %c0_i32 = arith.constant 0 : i32
    %c0_i32_0 = arith.constant 0 : i32
    return %c0_i32, %arg0 : i32, i32
  }
  func.func @transform_27(%arg0: i32) -> (i32, i32) {
    %c0_i32 = arith.constant 0 : i32
    %c0_i32_0 = arith.constant 0 : i32
    return %arg0, %c0_i32 : i32, i32
  }
  func.func @transform_28(%arg0: i32) -> (i32, i32) {
    %c0_i32 = arith.constant 0 : i32
    %c0_i32_0 = arith.constant 0 : i32
    %c0_i32_1 = arith.constant 0 : i32
    return %c0_i32, %c0_i32_0 : i32, i32
  }
  func.func @transform_29(%arg0: i32) -> (i32, i32) {
    %c0_i32 = arith.constant 0 : i32
    %c0_i32_0 = arith.constant 0 : i32
    %c0_i32_1 = arith.constant 0 : i32
    return %c0_i32, %c0_i32_0 : i32, i32
  }
  func.func @transform_30(%arg0: i32) -> (i32, i32) {
    %c0_i32 = arith.constant 0 : i32
    %c0_i32_0 = arith.constant 0 : i32
    %c0_i32_1 = arith.constant 0 : i32
    return %c0_i32, %c0_i32_0 : i32, i32
  }
}

</mosaic_0001>

<llo_original>
// kernel: a_call__.2
$region0: #{a_call__.2}
  #allocation0 [shape = 'u32[]', space=smem, size = 0x4, offset = 0x4, fixed_abs, tag = 'smem constant byte address 0x4 - core index']
  #allocation1 [shape = 'u32[144,128]{1,0:T(1,128)}', space=vmem, size = 0x12000, scoped, tag = 'internal scratch']
  %s0 = inlined_call_operand.vmem [shape: f32[2,256], index: 0, kind: input, shape index: {}]
  %s1 = inlined_call_operand.vmem [shape: f32[32,2], index: 1, kind: input, shape index: {}]
  %s2 = inlined_call_operand.vmem [shape: f32[32,6], index: 2, kind: input, shape index: {}]
  %s3 = inlined_call_operand.vmem [shape: f32[32,32], index: 3, kind: input, shape index: {}]
  %s4 = inlined_call_operand.vmem [shape: f32[8,32], index: 4, kind: input, shape index: {}]
  %s5 = inlined_call_operand.vmem [shape: f32[8,1], index: 5, kind: input, shape index: {}]
  %s6 = inlined_call_operand.vmem [shape: f32[32,2], index: 6, kind: input, shape index: {}]
  %s7 = inlined_call_operand.vmem [shape: f32[32,6], index: 7, kind: input, shape index: {}]
  %s8 = inlined_call_operand.vmem [shape: f32[32,32], index: 8, kind: input, shape index: {}]
  %s9 = inlined_call_operand.vmem [shape: f32[8,32], index: 9, kind: input, shape index: {}]
  %s10 = inlined_call_operand.vmem [shape: f32[8,1], index: 10, kind: input, shape index: {}]
  %s11 = inlined_call_operand.vmem [shape: f32[4,256], index: 11, kind: input, shape index: {}]
  %s12 = inlined_call_operand.vmem [shape: f32[1,256], index: 12, kind: input, shape index: {}]
  %s13 = inlined_call_operand.vmem [shape: f32[3,256], index: 13, kind: input, shape index: {}]
  %s14 = inlined_call_operand.vmem [shape: f32[256,128], index: 14, kind: input, shape index: {}]
  %s15 = inlined_call_operand.vmem [shape: f32[1,128], index: 15, kind: input, shape index: {}]
  %s16 = inlined_call_operand.vmem [shape: f32[8,128], index: 16, kind: input, shape index: {}]
  %s17 = inlined_call_operand.vmem [shape: f32[8,128], index: 17, kind: output, shape index: {}]
  %s18 = sld [smem:[#allocation0]]
  $region86: #{a_call__.2} parent=0
    _
  %s20 = ssub.s32 1, %s18
  %s21 = scalar_select 0, %s20, %s18
  // Predicated region
  $region2: #{a_call__.2} parent=0 // pred_check
    _
  $region3: #{a_call__.2} parent=0 // pred_check_branch
    %23 = sbr.rel (0) target = $region5
  $region4: #{a_call__.2} parent=0 // pred_region
    _
  $region5: #{a_call__.2} parent=0 // pred_fallthru
    _
  // Predicated region
  $region6: #{a_call__.2} parent=0 // pred_check
    _
  $region7: #{a_call__.2} parent=0 // pred_check_branch
    %25 = sbr.rel (0) target = $region9
  $region8: #{a_call__.2} parent=0 // pred_region
    _
  $region9: #{a_call__.2} parent=0 // pred_fallthru
    _
  // Predicated region
  $region10: #{a_call__.2} parent=0 // pred_check
    _
  $region11: #{a_call__.2} parent=0 // pred_check_branch
    %27 = sbr.rel (0) target = $region13
  $region12: #{a_call__.2} parent=0 // pred_region
    _
  $region13: #{a_call__.2} parent=0 // pred_fallthru
    _
  // Predicated region
  $region14: #{a_call__.2} parent=0 // pred_check
    _
  $region15: #{a_call__.2} parent=0 // pred_check_branch
    %29 = sbr.rel (0) target = $region17
  $region16: #{a_call__.2} parent=0 // pred_region
    _
  $region17: #{a_call__.2} parent=0 // pred_fallthru
    _
  // Predicated region
  $region18: #{a_call__.2} parent=0 // pred_check
    _
  $region19: #{a_call__.2} parent=0 // pred_check_branch
    %31 = sbr.rel (0) target = $region21
  $region20: #{a_call__.2} parent=0 // pred_region
    _
  $region21: #{a_call__.2} parent=0 // pred_fallthru
    _
  // Predicated region
  $region22: #{a_call__.2} parent=0 // pred_check
    _
  $region23: #{a_call__.2} parent=0 // pred_check_branch
    %33 = sbr.rel (0) target = $region25
  $region24: #{a_call__.2} parent=0 // pred_region
    _
  $region25: #{a_call__.2} parent=0 // pred_fallthru
    _
  // Predicated region
  $region26: #{a_call__.2} parent=0 // pred_check
    _
  $region27: #{a_call__.2} parent=0 // pred_check_branch
    %35 = sbr.rel (0) target = $region29
  $region28: #{a_call__.2} parent=0 // pred_region
    _
  $region29: #{a_call__.2} parent=0 // pred_fallthru
    _
  // Predicated region
  $region30: #{a_call__.2} parent=0 // pred_check
    _
  $region31: #{a_call__.2} parent=0 // pred_check_branch
    %37 = sbr.rel (0) target = $region33
  $region32: #{a_call__.2} parent=0 // pred_region
    _
  $region33: #{a_call__.2} parent=0 // pred_fallthru
    _
  // Predicated region
  $region34: #{a_call__.2} parent=0 // pred_check
    _
  $region35: #{a_call__.2} parent=0 // pred_check_branch
    %39 = sbr.rel (0) target = $region37
  $region36: #{a_call__.2} parent=0 // pred_region
    _
  $region37: #{a_call__.2} parent=0 // pred_fallthru
    _
  // Predicated region
  $region38: #{a_call__.2} parent=0 // pred_check
    _
  $region39: #{a_call__.2} parent=0 // pred_check_branch
    %41 = sbr.rel (0) target = $region41
  $region40: #{a_call__.2} parent=0 // pred_region
    _
  $region41: #{a_call__.2} parent=0 // pred_fallthru
    _
  // Predicated region
  $region42: #{a_call__.2} parent=0 // pred_check
    _
  $region43: #{a_call__.2} parent=0 // pred_check_branch
    %43 = sbr.rel (0) target = $region45
  $region44: #{a_call__.2} parent=0 // pred_region
    _
  $region45: #{a_call__.2} parent=0 // pred_fallthru
    _
  // Predicated region
  $region46: #{a_call__.2} parent=0 // pred_check
    _
  $region47: #{a_call__.2} parent=0 // pred_check_branch
    %45 = sbr.rel (0) target = $region49
  $region48: #{a_call__.2} parent=0 // pred_region
    _
  $region49: #{a_call__.2} parent=0 // pred_fallthru
    _
  // Predicated region
  $region50: #{a_call__.2} parent=0 // pred_check
    _
  $region51: #{a_call__.2} parent=0 // pred_check_branch
    %47 = sbr.rel (0) target = $region53
  $region52: #{a_call__.2} parent=0 // pred_region
    _
  $region53: #{a_call__.2} parent=0 // pred_fallthru
    _
  // Predicated region
  $region54: #{a_call__.2} parent=0 // pred_check
    _
  $region55: #{a_call__.2} parent=0 // pred_check_branch
    %49 = sbr.rel (0) target = $region57
  $region56: #{a_call__.2} parent=0 // pred_region
    _
  $region57: #{a_call__.2} parent=0 // pred_fallthru
    _
  // Predicated region
  $region58: #{a_call__.2} parent=0 // pred_check
    _
  $region59: #{a_call__.2} parent=0 // pred_check_branch
    %51 = sbr.rel (0) target = $region61
  $region60: #{a_call__.2} parent=0 // pred_region
    _
  $region61: #{a_call__.2} parent=0 // pred_fallthru
    _
  // Predicated region
  $region62: #{a_call__.2} parent=0 // pred_check
    _
  $region63: #{a_call__.2} parent=0 // pred_check_branch
    %53 = sbr.rel (0) target = $region65
  $region64: #{a_call__.2} parent=0 // pred_region
    _
  $region65: #{a_call__.2} parent=0 // pred_fallthru
    _
  // Predicated region
  $region66: #{a_call__.2} parent=0 // pred_check
    _
  $region67: #{a_call__.2} parent=0 // pred_check_branch
    %55 = sbr.rel (0) target = $region69
  $region68: #{a_call__.2} parent=0 // pred_region
    _
  $region69: #{a_call__.2} parent=0 // pred_fallthru
    _
  %v56 = vld [vmem:[%s0] sm:$0xf]
  %v57 = vld [vmem:[%s11] sm:$0xff]
  %v58 = vld [vmem:[%s12] sm:$0x3]
  %v59 = vld [vmem:[%s13] sm:$0x77]
  %v60 = vld [vmem:[%s1] sm:$0xff]
  %v61 = vld [vmem:[%s1 + $0x8] sm:$0xff]
  %v62 = vld [vmem:[%s1 + $0x10] sm:$0xff]
  %v63 = vld [vmem:[%s1 + $0x18] sm:$0xff]
  %v64 = vld [vmem:[%s2] sm:$0xff]
  %v65 = vld [vmem:[%s2 + $0x8] sm:$0xff]
  %v66 = vld [vmem:[%s2 + $0x10] sm:$0xff]
  %v67 = vld [vmem:[%s2 + $0x18] sm:$0xff]
  %69 = vset.pattern.permute.xlu0 0
  %70 = vperm.xlu0 %69, %v60
  %v71 = vpop.permute.xlu0 %70
  %74 = vset.pattern.permute.xlu0 0
  %75 = vperm.xlu0 %74, %v61
  %v76 = vpop.permute.xlu0 %75
  %79 = vset.pattern.permute.xlu0 0
  %80 = vperm.xlu0 %79, %v62
  %v81 = vpop.permute.xlu0 %80
  %84 = vset.pattern.permute.xlu0 0
  %85 = vperm.xlu0 %84, %v63
  %v86 = vpop.permute.xlu0 %85
  %v89 = vlaneseq
  %v90 = vshrl.u32 %v89, 7
  %v91 = vsub.s32 0, %v90
  %v92 = vrot.slane %v56, %v91
  %v93 = vlaneseq
  %v94 = vshrl.u32 %v93, 7
  %v95 = vsub.s32 2, %v94
  %v96 = vrot.slane %v56, %v95
  %v99 = vlaneseq
  %v100 = vshrl.u32 %v99, 7
  %v101 = vsub.s32 0, %v100
  %v102 = vrot.slane %v92, %v101
  %v103 = vlaneseq
  %v104 = vshrl.u32 %v103, 7
  %v105 = vsub.s32 0, %v104
  %v106 = vrot.slane %v96, %v105
  %v107 = vmul.f32 %v71, %v102
  %v108 = vmul.f32 %v71, %v106
  %v109 = vmul.f32 %v76, %v102
  %v110 = vmul.f32 %v76, %v106
  %v111 = vmul.f32 %v81, %v102
  %v112 = vmul.f32 %v81, %v106
  %v113 = vmul.f32 %v86, %v102
  %v114 = vmul.f32 %v86, %v106
  %116 = vset.pattern.permute.xlu0 0
  %117 = vperm.xlu0 %116, %v64
  %v118 = vpop.permute.xlu0 %117
  %121 = vset.pattern.permute.xlu0 0
  %122 = vperm.xlu0 %121, %v65
  %v123 = vpop.permute.xlu0 %122
  %126 = vset.pattern.permute.xlu0 0
  %127 = vperm.xlu0 %126, %v66
  %v128 = vpop.permute.xlu0 %127
  %131 = vset.pattern.permute.xlu0 0
  %132 = vperm.xlu0 %131, %v67
  %v133 = vpop.permute.xlu0 %132
  %v135 = vadd.f32 %v118, %v107
  %v136 = vadd.f32 %v118, %v108
  %v137 = vadd.f32 %v123, %v109
  %v138 = vadd.f32 %v123, %v110
  %v139 = vadd.f32 %v128, %v111
  %v140 = vadd.f32 %v128, %v112
  %v141 = vadd.f32 %v133, %v113
  %v142 = vadd.f32 %v133, %v114
  %143 = vset.pattern.permute.xlu0 1
  %144 = vperm.xlu0 %143, %v60
  %v145 = vpop.permute.xlu0 %144
  %147 = vset.pattern.permute.xlu0 1
  %148 = vperm.xlu0 %147, %v61
  %v149 = vpop.permute.xlu0 %148
  %151 = vset.pattern.permute.xlu0 1
  %152 = vperm.xlu0 %151, %v62
  %v153 = vpop.permute.xlu0 %152
  %155 = vset.pattern.permute.xlu0 1
  %156 = vperm.xlu0 %155, %v63
  %v157 = vpop.permute.xlu0 %156
  %v159 = vlaneseq
  %v160 = vshrl.u32 %v159, 7
  %v161 = vsub.s32 1, %v160
  %v162 = vrot.slane %v56, %v161
  %v163 = vlaneseq
  %v164 = vshrl.u32 %v163, 7
  %v165 = vsub.s32 3, %v164
  %v166 = vrot.slane %v56, %v165
  %v169 = vlaneseq
  %v170 = vshrl.u32 %v169, 7
  %v171 = vsub.s32 1, %v170
  %v172 = vrot.slane %v162, %v171
  %v173 = vlaneseq
  %v174 = vshrl.u32 %v173, 7
  %v175 = vsub.s32 1, %v174
  %v176 = vrot.slane %v166, %v175
  %v177 = vmul.f32 %v145, %v172
  %v178 = vmul.f32 %v145, %v176
  %v179 = vmul.f32 %v149, %v172
  %v180 = vmul.f32 %v149, %v176
  %v181 = vmul.f32 %v153, %v172
  %v182 = vmul.f32 %v153, %v176
  %v183 = vmul.f32 %v157, %v172
  %v184 = vmul.f32 %v157, %v176
  %v185 = vadd.f32 %v135, %v177
  %v186 = vadd.f32 %v136, %v178
  %v187 = vadd.f32 %v137, %v179
  %v188 = vadd.f32 %v138, %v180
  %v189 = vadd.f32 %v139, %v181
  %v190 = vadd.f32 %v140, %v182
  %v191 = vadd.f32 %v141, %v183
  %v192 = vadd.f32 %v142, %v184
  %v193 = vadd.f32 %v185, %v187
  %v194 = vadd.f32 %v193, %v189
  %v195 = vadd.f32 %v194, %v191
  %v196 = vrot.slane %v195, 4
  %v197 = vadd.f32 %v195, %v196
  %v198 = vrot.slane %v197, 2
  %v199 = vadd.f32 %v197, %v198
  %v200 = vrot.slane %v199, 1
  %v201 = vadd.f32 %v199, %v200
  %v202 = vadd.f32 %v186, %v188
  %v203 = vadd.f32 %v202, %v190
  %v204 = vadd.f32 %v203, %v192
  %v205 = vrot.slane %v204, 4
  %v206 = vadd.f32 %v204, %v205
  %v207 = vrot.slane %v206, 2
  %v208 = vadd.f32 %v206, %v207
  %v209 = vrot.slane %v208, 1
  %v210 = vadd.f32 %v208, %v209
  %v211 = vrcp.pop 32.0
  %v212 = vmul.f32 %v201, %v211
  %v213 = vmul.f32 %v210, %v211
  %v214 = vsub.f32 %v185, %v212
  %v215 = vsub.f32 %v186, %v213
  %v216 = vsub.f32 %v187, %v212
  %v217 = vsub.f32 %v188, %v213
  %v218 = vsub.f32 %v189, %v212
  %v219 = vsub.f32 %v190, %v213
  %v220 = vsub.f32 %v191, %v212
  %v221 = vsub.f32 %v192, %v213
  %v222 = vmul.f32 %v214, %v214
  %v223 = vmul.f32 %v215, %v215
  %v224 = vmul.f32 %v216, %v216
  %v225 = vmul.f32 %v217, %v217
  %v226 = vmul.f32 %v218, %v218
  %v227 = vmul.f32 %v219, %v219
  %v228 = vmul.f32 %v220, %v220
  %v229 = vmul.f32 %v221, %v221
  %v230 = vadd.f32 %v222, %v224
  %v231 = vadd.f32 %v230, %v226
  %v232 = vadd.f32 %v231, %v228
  %v233 = vrot.slane %v232, 4
  %v234 = vadd.f32 %v232, %v233
  %v235 = vrot.slane %v234, 2
  %v236 = vadd.f32 %v234, %v235
  %v237 = vrot.slane %v236, 1
  %v238 = vadd.f32 %v236, %v237
  %v239 = vadd.f32 %v223, %v225
  %v240 = vadd.f32 %v239, %v227
  %v241 = vadd.f32 %v240, %v229
  %v242 = vrot.slane %v241, 4
  %v243 = vadd.f32 %v241, %v242
  %v244 = vrot.slane %v243, 2
  %v245 = vadd.f32 %v243, %v244
  %v246 = vrot.slane %v245, 1
  %v247 = vadd.f32 %v245, %v246
  %v248 = vmul.f32 %v238, %v211
  %v249 = vmul.f32 %v247, %v211
  %v250 = vadd.f32 %v248, 1e-05
  %v251 = vadd.f32 %v249, 1e-05
  %v252 = vrsqrt.pop %v250
  %v253 = vrsqrt.pop %v251
  %v254 = vmul.f32 %v214, %v252
  %v255 = vmul.f32 %v215, %v253
  %v256 = vmul.f32 %v216, %v252
  %v257 = vmul.f32 %v217, %v253
  %v258 = vmul.f32 %v218, %v252
  %v259 = vmul.f32 %v219, %v253
  %v260 = vmul.f32 %v220, %v252
  %v261 = vmul.f32 %v221, %v253
  %262 = vset.pattern.permute.xlu0 1
  %263 = vperm.xlu0 %262, %v64
  %v264 = vpop.permute.xlu0 %263
  %266 = vset.pattern.permute.xlu0 1
  %267 = vperm.xlu0 %266, %v65
  %v268 = vpop.permute.xlu0 %267
  %270 = vset.pattern.permute.xlu0 1
  %271 = vperm.xlu0 %270, %v66
  %v272 = vpop.permute.xlu0 %271
  %274 = vset.pattern.permute.xlu0 1
  %275 = vperm.xlu0 %274, %v67
  %v276 = vpop.permute.xlu0 %275
  %v278 = vmul.f32 %v254, %v264
  %v279 = vmul.f32 %v255, %v264
  %v280 = vmul.f32 %v256, %v268
  %v281 = vmul.f32 %v257, %v268
  %v282 = vmul.f32 %v258, %v272
  %v283 = vmul.f32 %v259, %v272
  %v284 = vmul.f32 %v260, %v276
  %v285 = vmul.f32 %v261, %v276
  %286 = vset.pattern.permute.xlu0 2
  %287 = vperm.xlu0 %286, %v64
  %v288 = vpop.permute.xlu0 %287
  %290 = vset.pattern.permute.xlu0 2
  %291 = vperm.xlu0 %290, %v65
  %v292 = vpop.permute.xlu0 %291
  %294 = vset.pattern.permute.xlu0 2
  %295 = vperm.xlu0 %294, %v66
  %v296 = vpop.permute.xlu0 %295
  %298 = vset.pattern.permute.xlu0 2
  %299 = vperm.xlu0 %298, %v67
  %v300 = vpop.permute.xlu0 %299
  %v302 = vadd.f32 %v278, %v288
  %v303 = vadd.f32 %v279, %v288
  %v304 = vadd.f32 %v280, %v292
  %v305 = vadd.f32 %v281, %v292
  %v306 = vadd.f32 %v282, %v296
  %v307 = vadd.f32 %v283, %v296
  %v308 = vadd.f32 %v284, %v300
  %v309 = vadd.f32 %v285, %v300
  %v310 = vmax.f32 %v302, 0.0
  %v311 = vmax.f32 %v303, 0.0
  %v312 = vmax.f32 %v304, 0.0
  %v313 = vmax.f32 %v305, 0.0
  %v314 = vmax.f32 %v306, 0.0
  %v315 = vmax.f32 %v307, 0.0
  %v316 = vmax.f32 %v308, 0.0
  %v317 = vmax.f32 %v309, 0.0
  %v318 = vld [vmem:[%s3] sm:$0xff]
  %v319 = vld [vmem:[%s3 + $0x8] sm:$0xff]
  %v320 = vld [vmem:[%s3 + $0x10] sm:$0xff]
  %v321 = vld [vmem:[%s3 + $0x18] sm:$0xff]
  %322 = vset.pattern.permute.xlu0 3
  %323 = vperm.xlu0 %322, %v64
  %v324 = vpop.permute.xlu0 %323
  %326 = vset.pattern.permute.xlu0 3
  %327 = vperm.xlu0 %326, %v65
  %v328 = vpop.permute.xlu0 %327
  %330 = vset.pattern.permute.xlu0 3
  %331 = vperm.xlu0 %330, %v66
  %v332 = vpop.permute.xlu0 %331
  %334 = vset.pattern.permute.xlu0 3
  %335 = vperm.xlu0 %334, %v67
  %v336 = vpop.permute.xlu0 %335
  %vm338 = vcmask 261120
  %v340 = vsel %vm338, %v318, 0
  %v343 = vsel %vm338, %v319, 0
  %v346 = vsel %vm338, %v320, 0
  %v349 = vsel %vm338, %v321, 0
  %351 = vmatprep.subr.mxu0 0.0
  %352 = vmatpush1.msra.mxu0 0.0
  %353 = vmatprep.subr.mxu0 0.0
  %354 = vmatpush1.msra.mxu0 0.0
  %355 = vmatprep.subr.mxu0 0.0
  %356 = vmatpush1.msra.mxu0 0.0
  %357 = vmatprep.subr.mxu0 0.0
  %358 = vmatpush1.msra.mxu0 0.0
  %359 = vmatprep.subr.mxu0 0.0
  %360 = vmatpush1.msra.mxu0 0.0
  %361 = vmatprep.subr.mxu0 0.0
  %362 = vmatpush1.msra.mxu0 0.0
  %363 = vmatprep.subr.mxu0 0.0
  %364 = vmatpush1.msra.mxu0 0.0
  %365 = vmatprep.subr.mxu0 0.0
  %366 = vmatpush1.msra.mxu0 0.0
  %367 = vmatprep.subr.mxu0 0.0
  %368 = vmatpush1.msra.mxu0 0.0
  %369 = vmatprep.subr.mxu0 0.0
  %370 = vmatpush1.msra.mxu0 0.0
  %371 = vmatprep.subr.mxu0 0.0
  %372 = vmatpush1.msra.mxu0 0.0
  %373 = vmatprep.subr.mxu0 0.0
  %374 = vmatpush1.msra.mxu0 0.0
  %375 = vmatprep.subr.mxu0 %v317
  %376 = vmatpush1.msra.mxu0 %v316
  %377 = vmatprep.subr.mxu0 %v315
  %378 = vmatpush1.msra.mxu0 %v314
  %379 = vmatprep.subr.mxu0 %v313
  %380 = vmatpush1.msra.mxu0 %v312
  %381 = vmatprep.subr.mxu0 %v311
  %382 = vmatpush1.msra.mxu0 %v310
  %383 = vmatprep.subr.mxu0 0.0
  %384 = vmatpush2.msra.mxu0 0.0
  %385 = vmatprep.subr.mxu0 0.0
  %386 = vmatpush2.msra.mxu0 0.0
  %387 = vmatprep.subr.mxu0 0.0
  %388 = vmatpush2.msra.mxu0 0.0
  %389 = vmatprep.subr.mxu0 0.0
  %390 = vmatpush2.msra.mxu0 0.0
  %391 = vmatprep.subr.mxu0 0.0
  %392 = vmatpush2.msra.mxu0 0.0
  %393 = vmatprep.subr.mxu0 0.0
  %394 = vmatpush2.msra.mxu0 0.0
  %395 = vmatprep.subr.mxu0 0.0
  %396 = vmatpush2.msra.mxu0 0.0
  %397 = vmatprep.subr.mxu0 0.0
  %398 = vmatpush2.msra.mxu0 0.0
  %399 = vmatprep.subr.mxu0 0.0
  %400 = vmatpush2.msra.mxu0 0.0
  %401 = vmatprep.subr.mxu0 0.0
  %402 = vmatpush2.msra.mxu0 0.0
  %403 = vmatprep.subr.mxu0 0.0
  %404 = vmatpush2.msra.mxu0 0.0
  %405 = vmatprep.subr.mxu0 0.0
  %406 = vmatpush2.msra.mxu0 0.0
  %407 = vmatprep.subr.mxu0 0.0
  %408 = vmatpush2.msra.mxu0 0.0
  %409 = vmatprep.subr.mxu0 0.0
  %410 = vmatpush2.msra.mxu0 0.0
  %411 = vmatprep.subr.mxu0 0.0
  %412 = vmatpush2.msra.mxu0 0.0
  %413 = vmatprep.subr.mxu0 0.0
  %414 = vmatpush2.msra.mxu0 0.0
  %415 = vmatprep.mubr.f32.mxu0 0.0
  %416 = vmatmul.mubr.f32.gmra.mxu0 %v340
  %v417 = vpop.f32.mrf.mxu0
  %v418 = vadd.f32 %v324, %v417
  %v419 = vpop.f32.mrf.mxu0
  %v420 = vadd.f32 %v324, %v419
  %421 = vmatprep.mubr.f32.mxu0 0.0
  %422 = vmatmul.mubr.f32.gmra.mxu0 %v343
  %v423 = vpop.f32.mrf.mxu0
  %v424 = vadd.f32 %v328, %v423
  %v425 = vpop.f32.mrf.mxu0
  %v426 = vadd.f32 %v328, %v425
  %427 = vmatprep.mubr.f32.mxu0 0.0
  %428 = vmatmul.mubr.f32.gmra.mxu0 %v346
  %v429 = vpop.f32.mrf.mxu0
  %v430 = vadd.f32 %v332, %v429
  %v431 = vpop.f32.mrf.mxu0
  %v432 = vadd.f32 %v332, %v431
  %433 = vmatprep.mubr.f32.mxu0 0.0
  %434 = vmatmul.mubr.f32.gmra.mxu0 %v349
  %v435 = vpop.f32.mrf.mxu0
  %v436 = vadd.f32 %v336, %v435
  %v437 = vpop.f32.mrf.mxu0
  %v438 = vadd.f32 %v336, %v437
  %439 = vdwg.mxu0
  %v440 = vadd.f32 %v418, %v424
  %v441 = vadd.f32 %v440, %v430
  %v442 = vadd.f32 %v441, %v436
  %v443 = vrot.slane %v442, 4
  %v444 = vadd.f32 %v442, %v443
  %v445 = vrot.slane %v444, 2
  %v446 = vadd.f32 %v444, %v445
  %v447 = vrot.slane %v446, 1
  %v448 = vadd.f32 %v446, %v447
  %v449 = vadd.f32 %v420, %v426
  %v450 = vadd.f32 %v449, %v432
  %v451 = vadd.f32 %v450, %v438
  %v452 = vrot.slane %v451, 4
  %v453 = vadd.f32 %v451, %v452
  %v454 = vrot.slane %v453, 2
  %v455 = vadd.f32 %v453, %v454
  %v456 = vrot.slane %v455, 1
  %v457 = vadd.f32 %v455, %v456
  %v458 = vmul.f32 %v448, %v211
  %v459 = vmul.f32 %v457, %v211
  %v460 = vsub.f32 %v418, %v458
  %v461 = vsub.f32 %v420, %v459
  %v462 = vsub.f32 %v424, %v458
  %v463 = vsub.f32 %v426, %v459
  %v464 = vsub.f32 %v430, %v458
  %v465 = vsub.f32 %v432, %v459
  %v466 = vsub.f32 %v436, %v458
  %v467 = vsub.f32 %v438, %v459
  %v468 = vmul.f32 %v460, %v460
  %v469 = vmul.f32 %v461, %v461
  %v470 = vmul.f32 %v462, %v462
  %v471 = vmul.f32 %v463, %v463
  %v472 = vmul.f32 %v464, %v464
  %v473 = vmul.f32 %v465, %v465
  %v474 = vmul.f32 %v466, %v466
  %v475 = vmul.f32 %v467, %v467
  %v476 = vadd.f32 %v468, %v470
  %v477 = vadd.f32 %v476, %v472
  %v478 = vadd.f32 %v477, %v474
  %v479 = vrot.slane %v478, 4
  %v480 = vadd.f32 %v478, %v479
  %v481 = vrot.slane %v480, 2
  %v482 = vadd.f32 %v480, %v481
  %v483 = vrot.slane %v482, 1
  %v484 = vadd.f32 %v482, %v483
  %v485 = vadd.f32 %v469, %v471
  %v486 = vadd.f32 %v485, %v473
  %v487 = vadd.f32 %v486, %v475
  %v488 = vrot.slane %v487, 4
  %v489 = vadd.f32 %v487, %v488
  %v490 = vrot.slane %v489, 2
  %v491 = vadd.f32 %v489, %v490
  %v492 = vrot.slane %v491, 1
  %v493 = vadd.f32 %v491, %v492
  %v494 = vmul.f32 %v484, %v211
  %v495 = vmul.f32 %v493, %v211
  %v496 = vadd.f32 %v494, 1e-05
  %v497 = vadd.f32 %v495, 1e-05
  %v498 = vrsqrt.pop %v496
  %v499 = vrsqrt.pop %v497
  %v500 = vmul.f32 %v460, %v498
  %v501 = vmul.f32 %v461, %v499
  %v502 = vmul.f32 %v462, %v498
  %v503 = vmul.f32 %v463, %v499
  %v504 = vmul.f32 %v464, %v498
  %v505 = vmul.f32 %v465, %v499
  %v506 = vmul.f32 %v466, %v498
  %v507 = vmul.f32 %v467, %v499
  %508 = vset.pattern.permute.xlu0 4
  %509 = vperm.xlu0 %508, %v64
  %v510 = vpop.permute.xlu0 %509
  %512 = vset.pattern.permute.xlu0 4
  %513 = vperm.xlu0 %512, %v65
  %v514 = vpop.permute.xlu0 %513
  %516 = vset.pattern.permute.xlu0 4
  %517 = vperm.xlu0 %516, %v66
  %v518 = vpop.permute.xlu0 %517
  %520 = vset.pattern.permute.xlu0 4
  %521 = vperm.xlu0 %520, %v67
  %v522 = vpop.permute.xlu0 %521
  %v524 = vmul.f32 %v500, %v510
  %v525 = vmul.f32 %v501, %v510
  %v526 = vmul.f32 %v502, %v514
  %v527 = vmul.f32 %v503, %v514
  %v528 = vmul.f32 %v504, %v518
  %v529 = vmul.f32 %v505, %v518
  %v530 = vmul.f32 %v506, %v522
  %v531 = vmul.f32 %v507, %v522
  %532 = vset.pattern.permute.xlu0 5
  %533 = vperm.xlu0 %532, %v64
  %v534 = vpop.permute.xlu0 %533
  %536 = vset.pattern.permute.xlu0 5
  %537 = vperm.xlu0 %536, %v65
  %v538 = vpop.permute.xlu0 %537
  %540 = vset.pattern.permute.xlu0 5
  %541 = vperm.xlu0 %540, %v66
  %v542 = vpop.permute.xlu0 %541
  %544 = vset.pattern.permute.xlu0 5
  %545 = vperm.xlu0 %544, %v67
  %v546 = vpop.permute.xlu0 %545
  %v548 = vadd.f32 %v524, %v534
  %v549 = vadd.f32 %v525, %v534
  %v550 = vadd.f32 %v526, %v538
  %v551 = vadd.f32 %v527, %v538
  %v552 = vadd.f32 %v528, %v542
  %v553 = vadd.f32 %v529, %v542
  %v554 = vadd.f32 %v530, %v546
  %v555 = vadd.f32 %v531, %v546
  %v556 = vmax.f32 %v548, 0.0
  %v557 = vmax.f32 %v549, 0.0
  %v558 = vmax.f32 %v550, 0.0
  %v559 = vmax.f32 %v551, 0.0
  %v560 = vmax.f32 %v552, 0.0
  %v561 = vmax.f32 %v553, 0.0
  %v562 = vmax.f32 %v554, 0.0
  %v563 = vmax.f32 %v555, 0.0
  %v564 = vld [vmem:[%s4] sm:$0xff]
  %v565 = vld [vmem:[%s5] sm:$0xff]
  %567 = vset.pattern.permute.xlu0 0
  %568 = vperm.xlu0 %567, %v565
  %v569 = vpop.permute.xlu0 %568
  %v572 = vsel %vm338, %v564, 0
  %574 = vmatprep.subr.mxu0 0.0
  %575 = vmatpush1.msra.mxu0 0.0
  %576 = vmatprep.subr.mxu0 0.0
  %577 = vmatpush1.msra.mxu0 0.0
  %578 = vmatprep.subr.mxu0 0.0
  %579 = vmatpush1.msra.mxu0 0.0
  %580 = vmatprep.subr.mxu0 0.0
  %581 = vmatpush1.msra.mxu0 0.0
  %582 = vmatprep.subr.mxu0 0.0
  %583 = vmatpush1.msra.mxu0 0.0
  %584 = vmatprep.subr.mxu0 0.0
  %585 = vmatpush1.msra.mxu0 0.0
  %586 = vmatprep.subr.mxu0 0.0
  %587 = vmatpush1.msra.mxu0 0.0
  %588 = vmatprep.subr.mxu0 0.0
  %589 = vmatpush1.msra.mxu0 0.0
  %590 = vmatprep.subr.mxu0 0.0
  %591 = vmatpush1.msra.mxu0 0.0
  %592 = vmatprep.subr.mxu0 0.0
  %593 = vmatpush1.msra.mxu0 0.0
  %594 = vmatprep.subr.mxu0 0.0
  %595 = vmatpush1.msra.mxu0 0.0
  %596 = vmatprep.subr.mxu0 0.0
  %597 = vmatpush1.msra.mxu0 0.0
  %598 = vmatprep.subr.mxu0 %v563
  %599 = vmatpush1.msra.mxu0 %v562
  %600 = vmatprep.subr.mxu0 %v561
  %601 = vmatpush1.msra.mxu0 %v560
  %602 = vmatprep.subr.mxu0 %v559
  %603 = vmatpush1.msra.mxu0 %v558
  %604 = vmatprep.subr.mxu0 %v557
  %605 = vmatpush1.msra.mxu0 %v556
  %606 = vmatprep.subr.mxu0 0.0
  %607 = vmatpush2.msra.mxu0 0.0
  %608 = vmatprep.subr.mxu0 0.0
  %609 = vmatpush2.msra.mxu0 0.0
  %610 = vmatprep.subr.mxu0 0.0
  %611 = vmatpush2.msra.mxu0 0.0
  %612 = vmatprep.subr.mxu0 0.0
  %613 = vmatpush2.msra.mxu0 0.0
  %614 = vmatprep.subr.mxu0 0.0
  %615 = vmatpush2.msra.mxu0 0.0
  %616 = vmatprep.subr.mxu0 0.0
  %617 = vmatpush2.msra.mxu0 0.0
  %618 = vmatprep.subr.mxu0 0.0
  %619 = vmatpush2.msra.mxu0 0.0
  %620 = vmatprep.subr.mxu0 0.0
  %621 = vmatpush2.msra.mxu0 0.0
  %622 = vmatprep.subr.mxu0 0.0
  %623 = vmatpush2.msra.mxu0 0.0
  %624 = vmatprep.subr.mxu0 0.0
  %625 = vmatpush2.msra.mxu0 0.0
  %626 = vmatprep.subr.mxu0 0.0
  %627 = vmatpush2.msra.mxu0 0.0
  %628 = vmatprep.subr.mxu0 0.0
  %629 = vmatpush2.msra.mxu0 0.0
  %630 = vmatprep.subr.mxu0 0.0
  %631 = vmatpush2.msra.mxu0 0.0
  %632 = vmatprep.subr.mxu0 0.0
  %633 = vmatpush2.msra.mxu0 0.0
  %634 = vmatprep.subr.mxu0 0.0
  %635 = vmatpush2.msra.mxu0 0.0
  %636 = vmatprep.subr.mxu0 0.0
  %637 = vmatpush2.msra.mxu0 0.0
  %638 = vmatprep.mubr.f32.mxu0 0.0
  %639 = vmatmul.mubr.f32.gmra.mxu0 %v572
  %v640 = vpop.f32.mrf.mxu0
  %v641 = vadd.f32 %v569, %v640
  %v642 = vpop.f32.mrf.mxu0
  %v643 = vadd.f32 %v569, %v642
  %644 = vdwg.mxu0
  %v645 = vld [vmem:[%s6] sm:$0xff]
  %v646 = vld [vmem:[%s6 + $0x8] sm:$0xff]
  %v647 = vld [vmem:[%s6 + $0x10] sm:$0xff]
  %v648 = vld [vmem:[%s6 + $0x18] sm:$0xff]
  %v649 = vld [vmem:[%s7] sm:$0xff]
  %v650 = vld [vmem:[%s7 + $0x8] sm:$0xff]
  %v651 = vld [vmem:[%s7 + $0x10] sm:$0xff]
  %v652 = vld [vmem:[%s7 + $0x18] sm:$0xff]
  %654 = vset.pattern.permute.xlu0 0
  %655 = vperm.xlu0 %654, %v645
  %v656 = vpop.permute.xlu0 %655
  %659 = vset.pattern.permute.xlu0 0
  %660 = vperm.xlu0 %659, %v646
  %v661 = vpop.permute.xlu0 %660
  %664 = vset.pattern.permute.xlu0 0
  %665 = vperm.xlu0 %664, %v647
  %v666 = vpop.permute.xlu0 %665
  %669 = vset.pattern.permute.xlu0 0
  %670 = vperm.xlu0 %669, %v648
  %v671 = vpop.permute.xlu0 %670
  %v673 = vmul.f32 %v656, %v102
  %v674 = vmul.f32 %v656, %v106
  %v675 = vmul.f32 %v661, %v102
  %v676 = vmul.f32 %v661, %v106
  %v677 = vmul.f32 %v666, %v102
  %v678 = vmul.f32 %v666, %v106
  %v679 = vmul.f32 %v671, %v102
  %v680 = vmul.f32 %v671, %v106
  %682 = vset.pattern.permute.xlu0 0
  %683 = vperm.xlu0 %682, %v649
  %v684 = vpop.permute.xlu0 %683
  %687 = vset.pattern.permute.xlu0 0
  %688 = vperm.xlu0 %687, %v650
  %v689 = vpop.permute.xlu0 %688
  %692 = vset.pattern.permute.xlu0 0
  %693 = vperm.xlu0 %692, %v651
  %v694 = vpop.permute.xlu0 %693
  %697 = vset.pattern.permute.xlu0 0
  %698 = vperm.xlu0 %697, %v652
  %v699 = vpop.permute.xlu0 %698
  %v701 = vadd.f32 %v684, %v673
  %v702 = vadd.f32 %v684, %v674
  %v703 = vadd.f32 %v689, %v675
  %v704 = vadd.f32 %v689, %v676
  %v705 = vadd.f32 %v694, %v677
  %v706 = vadd.f32 %v694, %v678
  %v707 = vadd.f32 %v699, %v679
  %v708 = vadd.f32 %v699, %v680
  %709 = vset.pattern.permute.xlu0 1
  %710 = vperm.xlu0 %709, %v645
  %v711 = vpop.permute.xlu0 %710
  %713 = vset.pattern.permute.xlu0 1
  %714 = vperm.xlu0 %713, %v646
  %v715 = vpop.permute.xlu0 %714
  %717 = vset.pattern.permute.xlu0 1
  %718 = vperm.xlu0 %717, %v647
  %v719 = vpop.permute.xlu0 %718
  %721 = vset.pattern.permute.xlu0 1
  %722 = vperm.xlu0 %721, %v648
  %v723 = vpop.permute.xlu0 %722
  %v725 = vmul.f32 %v711, %v172
  %v726 = vmul.f32 %v711, %v176
  %v727 = vmul.f32 %v715, %v172
  %v728 = vmul.f32 %v715, %v176
  %v729 = vmul.f32 %v719, %v172
  %v730 = vmul.f32 %v719, %v176
  %v731 = vmul.f32 %v723, %v172
  %v732 = vmul.f32 %v723, %v176
  %v733 = vadd.f32 %v701, %v725
  %v734 = vadd.f32 %v702, %v726
  %v735 = vadd.f32 %v703, %v727
  %v736 = vadd.f32 %v704, %v728
  %v737 = vadd.f32 %v705, %v729
  %v738 = vadd.f32 %v706, %v730
  %v739 = vadd.f32 %v707, %v731
  %v740 = vadd.f32 %v708, %v732
  %v741 = vadd.f32 %v733, %v735
  %v742 = vadd.f32 %v741, %v737
  %v743 = vadd.f32 %v742, %v739
  %v744 = vrot.slane %v743, 4
  %v745 = vadd.f32 %v743, %v744
  %v746 = vrot.slane %v745, 2
  %v747 = vadd.f32 %v745, %v746
  %v748 = vrot.slane %v747, 1
  %v749 = vadd.f32 %v747, %v748
  %v750 = vadd.f32 %v734, %v736
  %v751 = vadd.f32 %v750, %v738
  %v752 = vadd.f32 %v751, %v740
  %v753 = vrot.slane %v752, 4
  %v754 = vadd.f32 %v752, %v753
  %v755 = vrot.slane %v754, 2
  %v756 = vadd.f32 %v754, %v755
  %v757 = vrot.slane %v756, 1
  %v758 = vadd.f32 %v756, %v757
  %v759 = vmul.f32 %v749, %v211
  %v760 = vmul.f32 %v758, %v211
  %v761 = vsub.f32 %v733, %v759
  %v762 = vsub.f32 %v734, %v760
  %v763 = vsub.f32 %v735, %v759
  %v764 = vsub.f32 %v736, %v760
  %v765 = vsub.f32 %v737, %v759
  %v766 = vsub.f32 %v738, %v760
  %v767 = vsub.f32 %v739, %v759
  %v768 = vsub.f32 %v740, %v760
  %v769 = vmul.f32 %v761, %v761
  %v770 = vmul.f32 %v762, %v762
  %v771 = vmul.f32 %v763, %v763
  %v772 = vmul.f32 %v764, %v764
  %v773 = vmul.f32 %v765, %v765
  %v774 = vmul.f32 %v766, %v766
  %v775 = vmul.f32 %v767, %v767
  %v776 = vmul.f32 %v768, %v768
  %v777 = vadd.f32 %v769, %v771
  %v778 = vadd.f32 %v777, %v773
  %v779 = vadd.f32 %v778, %v775
  %v780 = vrot.slane %v779, 4
  %v781 = vadd.f32 %v779, %v780
  %v782 = vrot.slane %v781, 2
  %v783 = vadd.f32 %v781, %v782
  %v784 = vrot.slane %v783, 1
  %v785 = vadd.f32 %v783, %v784
  %v786 = vadd.f32 %v770, %v772
  %v787 = vadd.f32 %v786, %v774
  %v788 = vadd.f32 %v787, %v776
  %v789 = vrot.slane %v788, 4
  %v790 = vadd.f32 %v788, %v789
  %v791 = vrot.slane %v790, 2
  %v792 = vadd.f32 %v790, %v791
  %v793 = vrot.slane %v792, 1
  %v794 = vadd.f32 %v792, %v793
  %v795 = vmul.f32 %v785, %v211
  %v796 = vmul.f32 %v794, %v211
  %v797 = vadd.f32 %v795, 1e-05
  %v798 = vadd.f32 %v796, 1e-05
  %v799 = vrsqrt.pop %v797
  %v800 = vrsqrt.pop %v798
  %v801 = vmul.f32 %v761, %v799
  %v802 = vmul.f32 %v762, %v800
  %v803 = vmul.f32 %v763, %v799
  %v804 = vmul.f32 %v764, %v800
  %v805 = vmul.f32 %v765, %v799
  %v806 = vmul.f32 %v766, %v800
  %v807 = vmul.f32 %v767, %v799
  %v808 = vmul.f32 %v768, %v800
  %809 = vset.pattern.permute.xlu0 1
  %810 = vperm.xlu0 %809, %v649
  %v811 = vpop.permute.xlu0 %810
  %813 = vset.pattern.permute.xlu0 1
  %814 = vperm.xlu0 %813, %v650
  %v815 = vpop.permute.xlu0 %814
  %817 = vset.pattern.permute.xlu0 1
  %818 = vperm.xlu0 %817, %v651
  %v819 = vpop.permute.xlu0 %818
  %821 = vset.pattern.permute.xlu0 1
  %822 = vperm.xlu0 %821, %v652
  %v823 = vpop.permute.xlu0 %822
  %v825 = vmul.f32 %v801, %v811
  %v826 = vmul.f32 %v802, %v811
  %v827 = vmul.f32 %v803, %v815
  %v828 = vmul.f32 %v804, %v815
  %v829 = vmul.f32 %v805, %v819
  %v830 = vmul.f32 %v806, %v819
  %v831 = vmul.f32 %v807, %v823
  %v832 = vmul.f32 %v808, %v823
  %833 = vset.pattern.permute.xlu0 2
  %834 = vperm.xlu0 %833, %v649
  %v835 = vpop.permute.xlu0 %834
  %837 = vset.pattern.permute.xlu0 2
  %838 = vperm.xlu0 %837, %v650
  %v839 = vpop.permute.xlu0 %838
  %841 = vset.pattern.permute.xlu0 2
  %842 = vperm.xlu0 %841, %v651
  %v843 = vpop.permute.xlu0 %842
  %845 = vset.pattern.permute.xlu0 2
  %846 = vperm.xlu0 %845, %v652
  %v847 = vpop.permute.xlu0 %846
  %v849 = vadd.f32 %v825, %v835
  %v850 = vadd.f32 %v826, %v835
  %v851 = vadd.f32 %v827, %v839
  %v852 = vadd.f32 %v828, %v839
  %v853 = vadd.f32 %v829, %v843
  %v854 = vadd.f32 %v830, %v843
  %v855 = vadd.f32 %v831, %v847
  %v856 = vadd.f32 %v832, %v847
  %v857 = vmax.f32 %v849, 0.0
  %v858 = vmax.f32 %v850, 0.0
  %v859 = vmax.f32 %v851, 0.0
  %v860 = vmax.f32 %v852, 0.0
  %v861 = vmax.f32 %v853, 0.0
  %v862 = vmax.f32 %v854, 0.0
  %v863 = vmax.f32 %v855, 0.0
  %v864 = vmax.f32 %v856, 0.0
  %v865 = vld [vmem:[%s8] sm:$0xff]
  %v866 = vld [vmem:[%s8 + $0x8] sm:$0xff]
  %v867 = vld [vmem:[%s8 + $0x10] sm:$0xff]
  %v868 = vld [vmem:[%s8 + $0x18] sm:$0xff]
  %869 = vset.pattern.permute.xlu0 3
  %870 = vperm.xlu0 %869, %v649
  %v871 = vpop.permute.xlu0 %870
  %873 = vset.pattern.permute.xlu0 3
  %874 = vperm.xlu0 %873, %v650
  %v875 = vpop.permute.xlu0 %874
  %877 = vset.pattern.permute.xlu0 3
  %878 = vperm.xlu0 %877, %v651
  %v879 = vpop.permute.xlu0 %878
  %881 = vset.pattern.permute.xlu0 3
  %882 = vperm.xlu0 %881, %v652
  %v883 = vpop.permute.xlu0 %882
  %v886 = vsel %vm338, %v865, 0
  %v889 = vsel %vm338, %v866, 0
  %v892 = vsel %vm338, %v867, 0
  %v895 = vsel %vm338, %v868, 0
  %897 = vmatprep.subr.mxu0 0.0
  %898 = vmatpush1.msra.mxu0 0.0
  %899 = vmatprep.subr.mxu0 0.0
  %900 = vmatpush1.msra.mxu0 0.0
  %901 = vmatprep.subr.mxu0 0.0
  %902 = vmatpush1.msra.mxu0 0.0
  %903 = vmatprep.subr.mxu0 0.0
  %904 = vmatpush1.msra.mxu0 0.0
  %905 = vmatprep.subr.mxu0 0.0
  %906 = vmatpush1.msra.mxu0 0.0
  %907 = vmatprep.subr.mxu0 0.0
  %908 = vmatpush1.msra.mxu0 0.0
  %909 = vmatprep.subr.mxu0 0.0
  %910 = vmatpush1.msra.mxu0 0.0
  %911 = vmatprep.subr.mxu0 0.0
  %912 = vmatpush1.msra.mxu0 0.0
  %913 = vmatprep.subr.mxu0 0.0
  %914 = vmatpush1.msra.mxu0 0.0
  %915 = vmatprep.subr.mxu0 0.0
  %916 = vmatpush1.msra.mxu0 0.0
  %917 = vmatprep.subr.mxu0 0.0
  %918 = vmatpush1.msra.mxu0 0.0
  %919 = vmatprep.subr.mxu0 0.0
  %920 = vmatpush1.msra.mxu0 0.0
  %921 = vmatprep.subr.mxu0 %v864
  %922 = vmatpush1.msra.mxu0 %v863
  %923 = vmatprep.subr.mxu0 %v862
  %924 = vmatpush1.msra.mxu0 %v861
  %925 = vmatprep.subr.mxu0 %v860
  %926 = vmatpush1.msra.mxu0 %v859
  %927 = vmatprep.subr.mxu0 %v858
  %928 = vmatpush1.msra.mxu0 %v857
  %929 = vmatprep.subr.mxu0 0.0
  %930 = vmatpush2.msra.mxu0 0.0
  %931 = vmatprep.subr.mxu0 0.0
  %932 = vmatpush2.msra.mxu0 0.0
  %933 = vmatprep.subr.mxu0 0.0
  %934 = vmatpush2.msra.mxu0 0.0
  %935 = vmatprep.subr.mxu0 0.0
  %936 = vmatpush2.msra.mxu0 0.0
  %937 = vmatprep.subr.mxu0 0.0
  %938 = vmatpush2.msra.mxu0 0.0
  %939 = vmatprep.subr.mxu0 0.0
  %940 = vmatpush2.msra.mxu0 0.0
  %941 = vmatprep.subr.mxu0 0.0
  %942 = vmatpush2.msra.mxu0 0.0
  %943 = vmatprep.subr.mxu0 0.0
  %944 = vmatpush2.msra.mxu0 0.0
  %945 = vmatprep.subr.mxu0 0.0
  %946 = vmatpush2.msra.mxu0 0.0
  %947 = vmatprep.subr.mxu0 0.0
  %948 = vmatpush2.msra.mxu0 0.0
  %949 = vmatprep.subr.mxu0 0.0
  %950 = vmatpush2.msra.mxu0 0.0
  %951 = vmatprep.subr.mxu0 0.0
  %952 = vmatpush2.msra.mxu0 0.0
  %953 = vmatprep.subr.mxu0 0.0
  %954 = vmatpush2.msra.mxu0 0.0
  %955 = vmatprep.subr.mxu0 0.0
  %956 = vmatpush2.msra.mxu0 0.0
  %957 = vmatprep.subr.mxu0 0.0
  %958 = vmatpush2.msra.mxu0 0.0
  %959 = vmatprep.subr.mxu0 0.0
  %960 = vmatpush2.msra.mxu0 0.0
  %961 = vmatprep.mubr.f32.mxu0 0.0
  %962 = vmatmul.mubr.f32.gmra.mxu0 %v886
  %v963 = vpop.f32.mrf.mxu0
  %v964 = vadd.f32 %v871, %v963
  %v965 = vpop.f32.mrf.mxu0
  %v966 = vadd.f32 %v871, %v965
  %967 = vmatprep.mubr.f32.mxu0 0.0
  %968 = vmatmul.mubr.f32.gmra.mxu0 %v889
  %v969 = vpop.f32.mrf.mxu0
  %v970 = vadd.f32 %v875, %v969
  %v971 = vpop.f32.mrf.mxu0
  %v972 = vadd.f32 %v875, %v971
  %973 = vmatprep.mubr.f32.mxu0 0.0
  %974 = vmatmul.mubr.f32.gmra.mxu0 %v892
  %v975 = vpop.f32.mrf.mxu0
  %v976 = vadd.f32 %v879, %v975
  %v977 = vpop.f32.mrf.mxu0
  %v978 = vadd.f32 %v879, %v977
  %979 = vmatprep.mubr.f32.mxu0 0.0
  %980 = vmatmul.mubr.f32.gmra.mxu0 %v895
  %v981 = vpop.f32.mrf.mxu0
  %v982 = vadd.f32 %v883, %v981
  %v983 = vpop.f32.mrf.mxu0
  %v984 = vadd.f32 %v883, %v983
  %985 = vdwg.mxu0
  %v986 = vadd.f32 %v964, %v970
  %v987 = vadd.f32 %v986, %v976
  %v988 = vadd.f32 %v987, %v982
  %v989 = vrot.slane %v988, 4
  %v990 = vadd.f32 %v988, %v989
  %v991 = vrot.slane %v990, 2
  %v992 = vadd.f32 %v990, %v991
  %v993 = vrot.slane %v992, 1
  %v994 = vadd.f32 %v992, %v993
  %v995 = vadd.f32 %v966, %v972
  %v996 = vadd.f32 %v995, %v978
  %v997 = vadd.f32 %v996, %v984
  %v998 = vrot.slane %v997, 4
  %v999 = vadd.f32 %v997, %v998
  %v1000 = vrot.slane %v999, 2
  %v1001 = vadd.f32 %v999, %v1000
  %v1002 = vrot.slane %v1001, 1
  %v1003 = vadd.f32 %v1001, %v1002
  %v1004 = vmul.f32 %v994, %v211
  %v1005 = vmul.f32 %v1003, %v211
  %v1006 = vsub.f32 %v964, %v1004
  %v1007 = vsub.f32 %v966, %v1005
  %v1008 = vsub.f32 %v970, %v1004
  %v1009 = vsub.f32 %v972, %v1005
  %v1010 = vsub.f32 %v976, %v1004
  %v1011 = vsub.f32 %v978, %v1005
  %v1012 = vsub.f32 %v982, %v1004
  %v1013 = vsub.f32 %v984, %v1005
  %v1014 = vmul.f32 %v1006, %v1006
  %v1015 = vmul.f32 %v1007, %v1007
  %v1016 = vmul.f32 %v1008, %v1008
  %v1017 = vmul.f32 %v1009, %v1009
  %v1018 = vmul.f32 %v1010, %v1010
  %v1019 = vmul.f32 %v1011, %v1011
  %v1020 = vmul.f32 %v1012, %v1012
  %v1021 = vmul.f32 %v1013, %v1013
  %v1022 = vadd.f32 %v1014, %v1016
  %v1023 = vadd.f32 %v1022, %v1018
  %v1024 = vadd.f32 %v1023, %v1020
  %v1025 = vrot.slane %v1024, 4
  %v1026 = vadd.f32 %v1024, %v1025
  %v1027 = vrot.slane %v1026, 2
  %v1028 = vadd.f32 %v1026, %v1027
  %v1029 = vrot.slane %v1028, 1
  %v1030 = vadd.f32 %v1028, %v1029
  %v1031 = vadd.f32 %v1015, %v1017
  %v1032 = vadd.f32 %v1031, %v1019
  %v1033 = vadd.f32 %v1032, %v1021
  %v1034 = vrot.slane %v1033, 4
  %v1035 = vadd.f32 %v1033, %v1034
  %v1036 = vrot.slane %v1035, 2
  %v1037 = vadd.f32 %v1035, %v1036
  %v1038 = vrot.slane %v1037, 1
  %v1039 = vadd.f32 %v1037, %v1038
  %v1040 = vmul.f32 %v1030, %v211
  %v1041 = vmul.f32 %v1039, %v211
  %v1042 = vadd.f32 %v1040, 1e-05
  %v1043 = vadd.f32 %v1041, 1e-05
  %v1044 = vrsqrt.pop %v1042
  %v1045 = vrsqrt.pop %v1043
  %v1046 = vmul.f32 %v1006, %v1044
  %v1047 = vmul.f32 %v1007, %v1045
  %v1048 = vmul.f32 %v1008, %v1044
  %v1049 = vmul.f32 %v1009, %v1045
  %v1050 = vmul.f32 %v1010, %v1044
  %v1051 = vmul.f32 %v1011, %v1045
  %v1052 = vmul.f32 %v1012, %v1044
  %v1053 = vmul.f32 %v1013, %v1045
  %1054 = vset.pattern.permute.xlu0 4
  %1055 = vperm.xlu0 %1054, %v649
  %v1056 = vpop.permute.xlu0 %1055
  %1058 = vset.pattern.permute.xlu0 4
  %1059 = vperm.xlu0 %1058, %v650
  %v1060 = vpop.permute.xlu0 %1059
  %1062 = vset.pattern.permute.xlu0 4
  %1063 = vperm.xlu0 %1062, %v651
  %v1064 = vpop.permute.xlu0 %1063
  %1066 = vset.pattern.permute.xlu0 4
  %1067 = vperm.xlu0 %1066, %v652
  %v1068 = vpop.permute.xlu0 %1067
  %v1070 = vmul.f32 %v1046, %v1056
  %v1071 = vmul.f32 %v1047, %v1056
  %v1072 = vmul.f32 %v1048, %v1060
  %v1073 = vmul.f32 %v1049, %v1060
  %v1074 = vmul.f32 %v1050, %v1064
  %v1075 = vmul.f32 %v1051, %v1064
  %v1076 = vmul.f32 %v1052, %v1068
  %v1077 = vmul.f32 %v1053, %v1068
  %1078 = vset.pattern.permute.xlu0 5
  %1079 = vperm.xlu0 %1078, %v649
  %v1080 = vpop.permute.xlu0 %1079
  %1082 = vset.pattern.permute.xlu0 5
  %1083 = vperm.xlu0 %1082, %v650
  %v1084 = vpop.permute.xlu0 %1083
  %1086 = vset.pattern.permute.xlu0 5
  %1087 = vperm.xlu0 %1086, %v651
  %v1088 = vpop.permute.xlu0 %1087
  %1090 = vset.pattern.permute.xlu0 5
  %1091 = vperm.xlu0 %1090, %v652
  %v1092 = vpop.permute.xlu0 %1091
  %v1094 = vadd.f32 %v1070, %v1080
  %v1095 = vadd.f32 %v1071, %v1080
  %v1096 = vadd.f32 %v1072, %v1084
  %v1097 = vadd.f32 %v1073, %v1084
  %v1098 = vadd.f32 %v1074, %v1088
  %v1099 = vadd.f32 %v1075, %v1088
  %v1100 = vadd.f32 %v1076, %v1092
  %v1101 = vadd.f32 %v1077, %v1092
  %v1102 = vmax.f32 %v1094, 0.0
  %v1103 = vmax.f32 %v1095, 0.0
  %v1104 = vmax.f32 %v1096, 0.0
  %v1105 = vmax.f32 %v1097, 0.0
  %v1106 = vmax.f32 %v1098, 0.0
  %v1107 = vmax.f32 %v1099, 0.0
  %v1108 = vmax.f32 %v1100, 0.0
  %v1109 = vmax.f32 %v1101, 0.0
  %v1110 = vld [vmem:[%s9] sm:$0xff]
  %v1111 = vld [vmem:[%s10] sm:$0xff]
  %1113 = vset.pattern.permute.xlu0 0
  %1114 = vperm.xlu0 %1113, %v1111
  %v1115 = vpop.permute.xlu0 %1114
  %v1118 = vsel %vm338, %v1110, 0
  %1120 = vmatprep.subr.mxu0 0.0
  %1121 = vmatpush1.msra.mxu0 0.0
  %1122 = vmatprep.subr.mxu0 0.0
  %1123 = vmatpush1.msra.mxu0 0.0
  %1124 = vmatprep.subr.mxu0 0.0
  %1125 = vmatpush1.msra.mxu0 0.0
  %1126 = vmatprep.subr.mxu0 0.0
  %1127 = vmatpush1.msra.mxu0 0.0
  %1128 = vmatprep.subr.mxu0 0.0
  %1129 = vmatpush1.msra.mxu0 0.0
  %1130 = vmatprep.subr.mxu0 0.0
  %1131 = vmatpush1.msra.mxu0 0.0
  %1132 = vmatprep.subr.mxu0 0.0
  %1133 = vmatpush1.msra.mxu0 0.0
  %1134 = vmatprep.subr.mxu0 0.0
  %1135 = vmatpush1.msra.mxu0 0.0
  %1136 = vmatprep.subr.mxu0 0.0
  %1137 = vmatpush1.msra.mxu0 0.0
  %1138 = vmatprep.subr.mxu0 0.0
  %1139 = vmatpush1.msra.mxu0 0.0
  %1140 = vmatprep.subr.mxu0 0.0
  %1141 = vmatpush1.msra.mxu0 0.0
  %1142 = vmatprep.subr.mxu0 0.0
  %1143 = vmatpush1.msra.mxu0 0.0
  %1144 = vmatprep.subr.mxu0 %v1109
  %1145 = vmatpush1.msra.mxu0 %v1108
  %1146 = vmatprep.subr.mxu0 %v1107
  %1147 = vmatpush1.msra.mxu0 %v1106
  %1148 = vmatprep.subr.mxu0 %v1105
  %1149 = vmatpush1.msra.mxu0 %v1104
  %1150 = vmatprep.subr.mxu0 %v1103
  %1151 = vmatpush1.msra.mxu0 %v1102
  %1152 = vmatprep.subr.mxu0 0.0
  %1153 = vmatpush2.msra.mxu0 0.0
  %1154 = vmatprep.subr.mxu0 0.0
  %1155 = vmatpush2.msra.mxu0 0.0
  %1156 = vmatprep.subr.mxu0 0.0
  %1157 = vmatpush2.msra.mxu0 0.0
  %1158 = vmatprep.subr.mxu0 0.0
  %1159 = vmatpush2.msra.mxu0 0.0
  %1160 = vmatprep.subr.mxu0 0.0
  %1161 = vmatpush2.msra.mxu0 0.0
  %1162 = vmatprep.subr.mxu0 0.0
  %1163 = vmatpush2.msra.mxu0 0.0
  %1164 = vmatprep.subr.mxu0 0.0
  %1165 = vmatpush2.msra.mxu0 0.0
  %1166 = vmatprep.subr.mxu0 0.0
  %1167 = vmatpush2.msra.mxu0 0.0
  %1168 = vmatprep.subr.mxu0 0.0
  %1169 = vmatpush2.msra.mxu0 0.0
  %1170 = vmatprep.subr.mxu0 0.0
  %1171 = vmatpush2.msra.mxu0 0.0
  %1172 = vmatprep.subr.mxu0 0.0
  %1173 = vmatpush2.msra.mxu0 0.0
  %1174 = vmatprep.subr.mxu0 0.0
  %1175 = vmatpush2.msra.mxu0 0.0
  %1176 = vmatprep.subr.mxu0 0.0
  %1177 = vmatpush2.msra.mxu0 0.0
  %1178 = vmatprep.subr.mxu0 0.0
  %1179 = vmatpush2.msra.mxu0 0.0
  %1180 = vmatprep.subr.mxu0 0.0
  %1181 = vmatpush2.msra.mxu0 0.0
  %1182 = vmatprep.subr.mxu0 0.0
  %1183 = vmatpush2.msra.mxu0 0.0
  %1184 = vmatprep.mubr.f32.mxu0 0.0
  %1185 = vmatmul.mubr.f32.gmra.mxu0 %v1118
  %v1186 = vpop.f32.mrf.mxu0
  %v1187 = vadd.f32 %v1115, %v1186
  %v1188 = vpop.f32.mrf.mxu0
  %v1189 = vadd.f32 %v1115, %v1188
  %1190 = vdwg.mxu0
  %v1192 = vlaneseq
  %v1193 = vshrl.u32 %v1192, 7
  %v1194 = vsub.s32 0, %v1193
  %v1195 = vrot.slane %v58, %v1194
  %v1196 = vlaneseq
  %v1197 = vshrl.u32 %v1196, 7
  %v1198 = vsub.s32 1, %v1197
  %v1199 = vrot.slane %v58, %v1198
  %v1202 = vmul.f32 %v641, %v1195
  %v1203 = vmul.f32 %v643, %v1199
  %v1205 = vlaneseq
  %v1206 = vshrl.u32 %v1205, 7
  %v1207 = vsub.s32 0, %v1206
  %v1208 = vrot.slane %v57, %v1207
  %v1209 = vlaneseq
  %v1210 = vshrl.u32 %v1209, 7
  %v1211 = vsub.s32 4, %v1210
  %v1212 = vrot.slane %v57, %v1211
  %v1215 = vmul.f32 %v1202, %v1208
  %v1216 = vmul.f32 %v1203, %v1212
  %v1217 = vlaneseq
  %v1218 = vshrl.u32 %v1217, 7
  %v1219 = vsub.s32 1, %v1218
  %v1220 = vrot.slane %v57, %v1219
  %v1221 = vlaneseq
  %v1222 = vshrl.u32 %v1221, 7
  %v1223 = vsub.s32 5, %v1222
  %v1224 = vrot.slane %v57, %v1223
  %v1227 = vmul.f32 %v1202, %v1220
  %v1228 = vmul.f32 %v1203, %v1224
  %v1231 = vrot.slane %v1227, 1
  %v1232 = vrot.slane %v1228, 1
  %v1235 = vadd.f32 %v1215, %v1231
  %v1236 = vadd.f32 %v1216, %v1232
  %v1237 = vlaneseq
  %v1238 = vshrl.u32 %v1237, 7
  %v1239 = vsub.s32 2, %v1238
  %v1240 = vrot.slane %v57, %v1239
  %v1241 = vlaneseq
  %v1242 = vshrl.u32 %v1241, 7
  %v1243 = vsub.s32 6, %v1242
  %v1244 = vrot.slane %v57, %v1243
  %v1247 = vmul.f32 %v1202, %v1240
  %v1248 = vmul.f32 %v1203, %v1244
  %v1251 = vrot.slane %v1247, 2
  %v1252 = vrot.slane %v1248, 2
  %v1255 = vadd.f32 %v1235, %v1251
  %v1256 = vadd.f32 %v1236, %v1252
  %v1257 = vlaneseq
  %v1258 = vshrl.u32 %v1257, 7
  %v1259 = vsub.s32 3, %v1258
  %v1260 = vrot.slane %v57, %v1259
  %v1261 = vlaneseq
  %v1262 = vshrl.u32 %v1261, 7
  %v1263 = vsub.s32 7, %v1262
  %v1264 = vrot.slane %v57, %v1263
  %v1267 = vmul.f32 %v1202, %v1260
  %v1268 = vmul.f32 %v1203, %v1264
  %v1271 = vrot.slane %v1267, 3
  %v1272 = vrot.slane %v1268, 3
  %v1275 = vadd.f32 %v1255, %v1271
  %v1276 = vadd.f32 %v1256, %v1272
  %v1278 = vlaneseq
  %v1279 = vshrl.u32 %v1278, 7
  %v1280 = vsub.s32 0, %v1279
  %v1281 = vrot.slane %v59, %v1280
  %v1282 = vlaneseq
  %v1283 = vshrl.u32 %v1282, 7
  %v1284 = vsub.s32 4, %v1283
  %v1285 = vrot.slane %v59, %v1284
  %v1288 = vmul.f32 %v1187, %v1281
  %v1289 = vmul.f32 %v1189, %v1285
  %v1290 = vmul.f32 %v1288, %v1208
  %v1291 = vmul.f32 %v1289, %v1212
  %v1292 = vmul.f32 %v1288, %v1220
  %v1293 = vmul.f32 %v1289, %v1224
  %v1296 = vrot.slane %v1292, 1
  %v1297 = vrot.slane %v1293, 1
  %v1300 = vadd.f32 %v1290, %v1296
  %v1301 = vadd.f32 %v1291, %v1297
  %v1302 = vmul.f32 %v1288, %v1240
  %v1303 = vmul.f32 %v1289, %v1244
  %v1306 = vrot.slane %v1302, 2
  %v1307 = vrot.slane %v1303, 2
  %v1310 = vadd.f32 %v1300, %v1306
  %v1311 = vadd.f32 %v1301, %v1307
  %v1312 = vmul.f32 %v1288, %v1260
  %v1313 = vmul.f32 %v1289, %v1264
  %v1316 = vrot.slane %v1312, 3
  %v1317 = vrot.slane %v1313, 3
  %v1320 = vadd.f32 %v1310, %v1316
  %v1321 = vadd.f32 %v1311, %v1317
  %v1322 = vlaneseq
  %v1323 = vshrl.u32 %v1322, 7
  %v1324 = vsub.s32 1, %v1323
  %v1325 = vrot.slane %v59, %v1324
  %v1326 = vlaneseq
  %v1327 = vshrl.u32 %v1326, 7
  %v1328 = vsub.s32 5, %v1327
  %v1329 = vrot.slane %v59, %v1328
  %v1332 = vmul.f32 %v1187, %v1325
  %v1333 = vmul.f32 %v1189, %v1329
  %v1334 = vmul.f32 %v1332, %v1208
  %v1335 = vmul.f32 %v1333, %v1212
  %v1336 = vmul.f32 %v1332, %v1220
  %v1337 = vmul.f32 %v1333, %v1224
  %v1340 = vrot.slane %v1336, 1
  %v1341 = vrot.slane %v1337, 1
  %v1344 = vadd.f32 %v1334, %v1340
  %v1345 = vadd.f32 %v1335, %v1341
  %v1346 = vmul.f32 %v1332, %v1240
  %v1347 = vmul.f32 %v1333, %v1244
  %v1350 = vrot.slane %v1346, 2
  %v1351 = vrot.slane %v1347, 2
  %v1354 = vadd.f32 %v1344, %v1350
  %v1355 = vadd.f32 %v1345, %v1351
  %v1356 = vmul.f32 %v1332, %v1260
  %v1357 = vmul.f32 %v1333, %v1264
  %v1360 = vrot.slane %v1356, 3
  %v1361 = vrot.slane %v1357, 3
  %v1364 = vadd.f32 %v1354, %v1360
  %v1365 = vadd.f32 %v1355, %v1361
  %v1366 = vlaneseq
  %v1367 = vshrl.u32 %v1366, 7
  %v1368 = vsub.s32 2, %v1367
  %v1369 = vrot.slane %v59, %v1368
  %v1370 = vlaneseq
  %v1371 = vshrl.u32 %v1370, 7
  %v1372 = vsub.s32 6, %v1371
  %v1373 = vrot.slane %v59, %v1372
  %v1376 = vmul.f32 %v1187, %v1369
  %v1377 = vmul.f32 %v1189, %v1373
  %v1378 = vmul.f32 %v1376, %v1208
  %v1379 = vmul.f32 %v1377, %v1212
  %v1380 = vmul.f32 %v1376, %v1220
  %v1381 = vmul.f32 %v1377, %v1224
  %v1384 = vrot.slane %v1380, 1
  %v1385 = vrot.slane %v1381, 1
  %v1388 = vadd.f32 %v1378, %v1384
  %v1389 = vadd.f32 %v1379, %v1385
  %v1390 = vmul.f32 %v1376, %v1240
  %v1391 = vmul.f32 %v1377, %v1244
  %v1394 = vrot.slane %v1390, 2
  %v1395 = vrot.slane %v1391, 2
  %v1398 = vadd.f32 %v1388, %v1394
  %v1399 = vadd.f32 %v1389, %v1395
  %v1400 = vmul.f32 %v1376, %v1260
  %v1401 = vmul.f32 %v1377, %v1264
  %v1404 = vrot.slane %v1400, 3
  %v1405 = vrot.slane %v1401, 3
  %v1408 = vadd.f32 %v1398, %v1404
  %v1409 = vadd.f32 %v1399, %v1405
  %v1412 = vrot.slane %v1320, 7
  %v1413 = vrot.slane %v1321, 7
  %v1418 = vrot.slane %v1364, 6
  %v1419 = vrot.slane %v1365, 6
  %v1424 = vrot.slane %v1408, 5
  %v1425 = vrot.slane %v1409, 5
  %vm1428 = vcmask 1040384
  %v1429 = vsel %vm1428, %v1275, %v1412
  %v1430 = vsel %vm1428, %v1276, %v1413
  %vm1431 = vcmask 1041408
  %v1432 = vsel %vm1431, %v1429, %v1418
  %v1433 = vsel %vm1431, %v1430, %v1419
  %vm1434 = vcmask 1042432
  %v1435 = vsel %vm1434, %v1432, %v1424
  %v1436 = vsel %vm1434, %v1433, %v1425
  %vm1437 = vcmask 1043456
  %v1438 = vsel %vm1437, %v1435, 0.0
  %v1439 = vsel %vm1437, %v1436, 0.0
  %p1440 = scmp.eq.s32.totalorder 0, 0
  // Predicated region
  $region70: #{a_call__.2} parent=0 // pred_check
    %p1441 = pneg %p1440
  $region71: #{a_call__.2} parent=0 // pred_check_branch
    %1443 = sbr.rel (%p1441) target = $region73
  $region72: #{a_call__.2} parent=0 // pred_region
    %1444 = vst [vmem:[%s17] sm:$0xff] 0.0
  $region73: #{a_call__.2} parent=0 // pred_fallthru
    _
  %v1445 = vld [vmem:[%s17] sm:$0xff]
  %v1446 = vld [vmem:[%s14] sm:$0xff]
  %v1447 = vld [vmem:[%s14 + $0x8] sm:$0xff]
  %v1448 = vld [vmem:[%s14 + $0x10] sm:$0xff]
  %v1449 = vld [vmem:[%s14 + $0x18] sm:$0xff]
  %v1450 = vld [vmem:[%s14 + $0x20] sm:$0xff]
  %v1451 = vld [vmem:[%s14 + $0x28] sm:$0xff]
  %v1452 = vld [vmem:[%s14 + $0x30] sm:$0xff]
  %v1453 = vld [vmem:[%s14 + $0x38] sm:$0xff]
  %v1454 = vld [vmem:[%s14 + $0x40] sm:$0xff]
  %v1455 = vld [vmem:[%s14 + $0x48] sm:$0xff]
  %v1456 = vld [vmem:[%s14 + $0x50] sm:$0xff]
  %v1457 = vld [vmem:[%s14 + $0x58] sm:$0xff]
  %v1458 = vld [vmem:[%s14 + $0x60] sm:$0xff]
  %v1459 = vld [vmem:[%s14 + $0x68] sm:$0xff]
  %v1460 = vld [vmem:[%s14 + $0x70] sm:$0xff]
  %v1461 = vld [vmem:[%s14 + $0x78] sm:$0xff]
  %v1462 = vld [vmem:[%s14 + $0x80] sm:$0xff]
  %v1463 = vld [vmem:[%s14 + $0x88] sm:$0xff]
  %v1464 = vld [vmem:[%s14 + $0x90] sm:$0xff]
  %v1465 = vld [vmem:[%s14 + $0x98] sm:$0xff]
  %v1466 = vld [vmem:[%s14 + $0xa0] sm:$0xff]
  %v1467 = vld [vmem:[%s14 + $0xa8] sm:$0xff]
  %v1468 = vld [vmem:[%s14 + $0xb0] sm:$0xff]
  %v1469 = vld [vmem:[%s14 + $0xb8] sm:$0xff]
  %v1470 = vld [vmem:[%s14 + $0xc0] sm:$0xff]
  %v1471 = vld [vmem:[%s14 + $0xc8] sm:$0xff]
  %v1472 = vld [vmem:[%s14 + $0xd0] sm:$0xff]
  %v1473 = vld [vmem:[%s14 + $0xd8] sm:$0xff]
  %v1474 = vld [vmem:[%s14 + $0xe0] sm:$0xff]
  %v1475 = vld [vmem:[%s14 + $0xe8] sm:$0xff]
  %v1476 = vld [vmem:[%s14 + $0xf0] sm:$0xff]
  %v1477 = vld [vmem:[%s14 + $0xf8] sm:$0xff]
  %1478 = vmatprep.subr.mxu0 0.0
  %1479 = vmatpush1.msra.mxu0 %v1461
  %1480 = vmatprep.subr.mxu0 0.0
  %1481 = vmatpush1.msra.mxu0 %v1460
  %1482 = vmatprep.subr.mxu0 0.0
  %1483 = vmatpush1.msra.mxu0 %v1459
  %1484 = vmatprep.subr.mxu0 0.0
  %1485 = vmatpush1.msra.mxu0 %v1458
  %1486 = vmatprep.subr.mxu0 0.0
  %1487 = vmatpush1.msra.mxu0 %v1457
  %1488 = vmatprep.subr.mxu0 0.0
  %1489 = vmatpush1.msra.mxu0 %v1456
  %1490 = vmatprep.subr.mxu0 0.0
  %1491 = vmatpush1.msra.mxu0 %v1455
  %1492 = vmatprep.subr.mxu0 0.0
  %1493 = vmatpush1.msra.mxu0 %v1454
  %1494 = vmatprep.subr.mxu0 0.0
  %1495 = vmatpush1.msra.mxu0 %v1453
  %1496 = vmatprep.subr.mxu0 0.0
  %1497 = vmatpush1.msra.mxu0 %v1452
  %1498 = vmatprep.subr.mxu0 0.0
  %1499 = vmatpush1.msra.mxu0 %v1451
  %1500 = vmatprep.subr.mxu0 0.0
  %1501 = vmatpush1.msra.mxu0 %v1450
  %1502 = vmatprep.subr.mxu0 0.0
  %1503 = vmatpush1.msra.mxu0 %v1449
  %1504 = vmatprep.subr.mxu0 0.0
  %1505 = vmatpush1.msra.mxu0 %v1448
  %1506 = vmatprep.subr.mxu0 0.0
  %1507 = vmatpush1.msra.mxu0 %v1447
  %1508 = vmatprep.subr.mxu0 0.0
  %1509 = vmatpush1.msra.mxu0 %v1446
  %1510 = vmatprep.subr.mxu0 0.0
  %1511 = vmatpush2.msra.mxu0 %v1477
  %1512 = vmatprep.subr.mxu0 0.0
  %1513 = vmatpush2.msra.mxu0 %v1476
  %1514 = vmatprep.subr.mxu0 0.0
  %1515 = vmatpush2.msra.mxu0 %v1475
  %1516 = vmatprep.subr.mxu0 0.0
  %1517 = vmatpush2.msra.mxu0 %v1474
  %1518 = vmatprep.subr.mxu0 0.0
  %1519 = vmatpush2.msra.mxu0 %v1473
  %1520 = vmatprep.subr.mxu0 0.0
  %1521 = vmatpush2.msra.mxu0 %v1472
  %1522 = vmatprep.subr.mxu0 0.0
  %1523 = vmatpush2.msra.mxu0 %v1471
  %1524 = vmatprep.subr.mxu0 0.0
  %1525 = vmatpush2.msra.mxu0 %v1470
  %1526 = vmatprep.subr.mxu0 0.0
  %1527 = vmatpush2.msra.mxu0 %v1469
  %1528 = vmatprep.subr.mxu0 0.0
  %1529 = vmatpush2.msra.mxu0 %v1468
  %1530 = vmatprep.subr.mxu0 0.0
  %1531 = vmatpush2.msra.mxu0 %v1467
  %1532 = vmatprep.subr.mxu0 0.0
  %1533 = vmatpush2.msra.mxu0 %v1466
  %1534 = vmatprep.subr.mxu0 0.0
  %1535 = vmatpush2.msra.mxu0 %v1465
  %1536 = vmatprep.subr.mxu0 0.0
  %1537 = vmatpush2.msra.mxu0 %v1464
  %1538 = vmatprep.subr.mxu0 0.0
  %1539 = vmatpush2.msra.mxu0 %v1463
  %1540 = vmatprep.subr.mxu0 0.0
  %1541 = vmatpush2.msra.mxu0 %v1462
  %1542 = vmatprep.mubr.f32.mxu0 %v1439
  %1543 = vmatmul.mubr.f32.gmra.mxu0 %v1438
  %v1544 = vpop.f32.mrf.mxu0
  %v1545 = vadd.f32 0.0, %v1544
  %v1546 = vpop.f32.mrf.mxu0
  %1547 = vdwg.mxu0
  %v1548 = vadd.f32 %v1445, %v1545
  %1549 = vst [vmem:[%s17] sm:$0xff] %v1548
  // Predicated region
  $region74: #{a_call__.2} parent=0 // pred_check
    %p1550 = pneg %p1440
  $region75: #{a_call__.2} parent=0 // pred_check_branch
    %1552 = sbr.rel (%p1550) target = $region77
  $region76: #{a_call__.2} parent=0 // pred_region
    %v1553 = vld [vmem:[%s17] sm:$0xff]
    %v1554 = vld [vmem:[%s15] sm:$0x1]
    %v1556 = vlaneseq
    %v1557 = vshrl.u32 %v1556, 7
    %v1558 = vsub.s32 0, %v1557
    %v1559 = vrot.slane %v1554, %v1558
    %v1561 = vmul.f32 %v1553, %v1559
    %v1562 = vld [vmem:[%s16] sm:$0xff]
    %v1563 = vadd.f32 %v1561, %v1562
    %1564 = vst [vmem:[%s17] sm:$0xff] %v1563
  $region77: #{a_call__.2} parent=0 // pred_fallthru
    _
  // Predicated region
  $region78: #{a_call__.2} parent=0 // pred_check
    _
  $region79: #{a_call__.2} parent=0 // pred_check_branch
    %1566 = sbr.rel (0) target = $region81
  $region80: #{a_call__.2} parent=0 // pred_region
    _
  $region81: #{a_call__.2} parent=0 // pred_fallthru
    _
  // Predicated region
  $region82: #{a_call__.2} parent=0 // pred_check
    _
  $region83: #{a_call__.2} parent=0 // pred_check_branch
    %1568 = sbr.rel (0) target = $region85
  $region84: #{a_call__.2} parent=0 // pred_region
    _
  $region85: #{a_call__.2} parent=0 // pred_fallthru
    _

// kernel: a_call__.3
$region0: #{a_call__.3}
  #allocation0 [shape = 'u32[]', space=smem, size = 0x4, offset = 0x4, fixed_abs, tag = 'smem constant byte address 0x4 - core index']
  #allocation1 [shape = 'u32[144,128]{1,0:T(1,128)}', space=vmem, size = 0x12000, scoped, tag = 'internal scratch']
  %s0 = inlined_call_operand.smem [shape: u32[31], index: -1, kind: input, shape index: {}]
  %s1 = sld [smem:[%s0]]
  %s2 = scalar_lea.smem %s0, 1
  %s3 = sld [smem:[%s2]]
  %s4 = scalar_lea.smem %s0, 2
  %s5 = sld [smem:[%s4]]
  %s6 = scalar_lea.smem %s0, 3
  %s7 = sld [smem:[%s6]]
  %s8 = scalar_lea.smem %s0, 4
  %s9 = sld [smem:[%s8]]
  %s10 = scalar_lea.smem %s0, 5
  %s11 = sld [smem:[%s10]]
  %s12 = scalar_lea.smem %s0, 6
  %s13 = sld [smem:[%s12]]
  %s14 = scalar_lea.smem %s0, 7
  %s15 = sld [smem:[%s14]]
  %s16 = scalar_lea.smem %s0, 8
  %s17 = sld [smem:[%s16]]
  %s18 = scalar_lea.smem %s0, 9
  %s19 = sld [smem:[%s18]]
  %s20 = scalar_lea.smem %s0, 10
  %s21 = sld [smem:[%s20]]
  %s22 = scalar_lea.smem %s0, 11
  %s23 = sld [smem:[%s22]]
  %s24 = scalar_lea.smem %s0, 12
  %s25 = sld [smem:[%s24]]
  %s26 = scalar_lea.smem %s0, 13
  %s27 = sld [smem:[%s26]]
  %s28 = scalar_lea.smem %s0, 14
  %s29 = sld [smem:[%s28]]
  %s30 = scalar_lea.smem %s0, 15
  %s31 = sld [smem:[%s30]]
  %s32 = scalar_lea.smem %s0, 16
  %s33 = sld [smem:[%s32]]
  %s34 = scalar_lea.smem %s0, 17
  %s35 = sld [smem:[%s34]]
  %s36 = scalar_lea.smem %s0, 18
  %s37 = sld [smem:[%s36]]
  %s38 = scalar_lea.smem %s0, 19
  %s39 = sld [smem:[%s38]]
  %s40 = scalar_lea.smem %s0, 20
  %s41 = sld [smem:[%s40]]
  %s42 = scalar_lea.smem %s0, 21
  %s43 = sld [smem:[%s42]]
  %s44 = scalar_lea.smem %s0, 22
  %s45 = sld [smem:[%s44]]
  %s46 = scalar_lea.smem %s0, 23
  %s47 = sld [smem:[%s46]]
  %s48 = scalar_lea.smem %s0, 24
  %s49 = sld [smem:[%s48]]
  %s50 = scalar_lea.smem %s0, 25
  %s51 = sld [smem:[%s50]]
  %s52 = scalar_lea.smem %s0, 26
  %s53 = sld [smem:[%s52]]
  %s54 = scalar_lea.smem %s0, 27
  %s55 = sld [smem:[%s54]]
  %s56 = scalar_lea.smem %s0, 28
  %s57 = sld [smem:[%s56]]
  %s58 = scalar_lea.smem %s0, 29
  %s59 = sld [smem:[%s58]]
  %s60 = scalar_lea.smem %s0, 30
  %s61 = sld [smem:[%s60]]
  %s62 = sld [smem:[#allocation0]]
  $region138: #{a_call__.3} parent=0
    _
  %s64 = ssub.s32 1, %s62
  %s65 = scalar_select 0, %s64, %s62
  // Predicated region
  $region2: #{a_call__.3} parent=0 // pred_check
    _
  $region3: #{a_call__.3} parent=0 // pred_check_branch
    %67 = sbr.rel (0) target = $region5
  $region4: #{a_call__.3} parent=0 // pred_region
    _
  $region5: #{a_call__.3} parent=0 // pred_fallthru
    _
  // Predicated region
  $region6: #{a_call__.3} parent=0 // pred_check
    _
  $region7: #{a_call__.3} parent=0 // pred_check_branch
    %69 = sbr.rel (0) target = $region9
  $region8: #{a_call__.3} parent=0 // pred_region
    _
  $region9: #{a_call__.3} parent=0 // pred_fallthru
    _
  // Predicated region
  $region10: #{a_call__.3} parent=0 // pred_check
    _
  $region11: #{a_call__.3} parent=0 // pred_check_branch
    %71 = sbr.rel (0) target = $region13
  $region12: #{a_call__.3} parent=0 // pred_region
    _
  $region13: #{a_call__.3} parent=0 // pred_fallthru
    _
  // Predicated region
  $region14: #{a_call__.3} parent=0 // pred_check
    _
  $region15: #{a_call__.3} parent=0 // pred_check_branch
    %73 = sbr.rel (0) target = $region17
  $region16: #{a_call__.3} parent=0 // pred_region
    _
  $region17: #{a_call__.3} parent=0 // pred_fallthru
    _
  // Predicated region
  $region18: #{a_call__.3} parent=0 // pred_check
    _
  $region19: #{a_call__.3} parent=0 // pred_check_branch
    %75 = sbr.rel (0) target = $region21
  $region20: #{a_call__.3} parent=0 // pred_region
    _
  $region21: #{a_call__.3} parent=0 // pred_fallthru
    _
  // Predicated region
  $region22: #{a_call__.3} parent=0 // pred_check
    _
  $region23: #{a_call__.3} parent=0 // pred_check_branch
    %77 = sbr.rel (0) target = $region25
  $region24: #{a_call__.3} parent=0 // pred_region
    _
  $region25: #{a_call__.3} parent=0 // pred_fallthru
    _
  // Predicated region
  $region26: #{a_call__.3} parent=0 // pred_check
    _
  $region27: #{a_call__.3} parent=0 // pred_check_branch
    %79 = sbr.rel (0) target = $region29
  $region28: #{a_call__.3} parent=0 // pred_region
    _
  $region29: #{a_call__.3} parent=0 // pred_fallthru
    _
  // Predicated region
  $region30: #{a_call__.3} parent=0 // pred_check
    _
  $region31: #{a_call__.3} parent=0 // pred_check_branch
    %81 = sbr.rel (0) target = $region33
  $region32: #{a_call__.3} parent=0 // pred_region
    _
  $region33: #{a_call__.3} parent=0 // pred_fallthru
    _
  // Predicated region
  $region34: #{a_call__.3} parent=0 // pred_check
    _
  $region35: #{a_call__.3} parent=0 // pred_check_branch
    %83 = sbr.rel (0) target = $region37
  $region36: #{a_call__.3} parent=0 // pred_region
    _
  $region37: #{a_call__.3} parent=0 // pred_fallthru
    _
  // Predicated region
  $region38: #{a_call__.3} parent=0 // pred_check
    _
  $region39: #{a_call__.3} parent=0 // pred_check_branch
    %85 = sbr.rel (0) target = $region41
  $region40: #{a_call__.3} parent=0 // pred_region
    _
  $region41: #{a_call__.3} parent=0 // pred_fallthru
    _
  // Predicated region
  $region42: #{a_call__.3} parent=0 // pred_check
    _
  $region43: #{a_call__.3} parent=0 // pred_check_branch
    %87 = sbr.rel (0) target = $region45
  $region44: #{a_call__.3} parent=0 // pred_region
    _
  $region45: #{a_call__.3} parent=0 // pred_fallthru
    _
  // Predicated region
  $region46: #{a_call__.3} parent=0 // pred_check
    _
  $region47: #{a_call__.3} parent=0 // pred_check_branch
    %89 = sbr.rel (0) target = $region49
  $region48: #{a_call__.3} parent=0 // pred_region
    _
  $region49: #{a_call__.3} parent=0 // pred_fallthru
    _
  // Predicated region
  $region50: #{a_call__.3} parent=0 // pred_check
    _
  $region51: #{a_call__.3} parent=0 // pred_check_branch
    %91 = sbr.rel (0) target = $region53
  $region52: #{a_call__.3} parent=0 // pred_region
    _
  $region53: #{a_call__.3} parent=0 // pred_fallthru
    _
  // Predicated region
  $region54: #{a_call__.3} parent=0 // pred_check
    _
  $region55: #{a_call__.3} parent=0 // pred_check_branch
    %93 = sbr.rel (0) target = $region57
  $region56: #{a_call__.3} parent=0 // pred_region
    _
  $region57: #{a_call__.3} parent=0 // pred_fallthru
    _
  // Predicated region
  $region58: #{a_call__.3} parent=0 // pred_check
    _
  $region59: #{a_call__.3} parent=0 // pred_check_branch
    %95 = sbr.rel (0) target = $region61
  $region60: #{a_call__.3} parent=0 // pred_region
    _
  $region61: #{a_call__.3} parent=0 // pred_fallthru
    _
  // Predicated region
  $region62: #{a_call__.3} parent=0 // pred_check
    _
  $region63: #{a_call__.3} parent=0 // pred_check_branch
    %97 = sbr.rel (0) target = $region65
  $region64: #{a_call__.3} parent=0 // pred_region
    _
  $region65: #{a_call__.3} parent=0 // pred_fallthru
    _
  // Predicated region
  $region66: #{a_call__.3} parent=0 // pred_check
    _
  $region67: #{a_call__.3} parent=0 // pred_check_branch
    %99 = sbr.rel (0) target = $region69
  $region68: #{a_call__.3} parent=0 // pred_region
    _
  $region69: #{a_call__.3} parent=0 // pred_fallthru
    _
  // Predicated region
  $region70: #{a_call__.3} parent=0 // pred_check
    _
  $region71: #{a_call__.3} parent=0 // pred_check_branch
    %101 = sbr.rel (0) target = $region73
  $region72: #{a_call__.3} parent=0 // pred_region
    _
  $region73: #{a_call__.3} parent=0 // pred_fallthru
    _
  // Predicated region
  $region74: #{a_call__.3} parent=0 // pred_check
    _
  $region75: #{a_call__.3} parent=0 // pred_check_branch
    %103 = sbr.rel (0) target = $region77
  $region76: #{a_call__.3} parent=0 // pred_region
    _
  $region77: #{a_call__.3} parent=0 // pred_fallthru
    _
  // Predicated region
  $region78: #{a_call__.3} parent=0 // pred_check
    _
  $region79: #{a_call__.3} parent=0 // pred_check_branch
    %105 = sbr.rel (0) target = $region81
  $region80: #{a_call__.3} parent=0 // pred_region
    _
  $region81: #{a_call__.3} parent=0 // pred_fallthru
    _
  // Predicated region
  $region82: #{a_call__.3} parent=0 // pred_check
    _
  $region83: #{a_call__.3} parent=0 // pred_check_branch
    %107 = sbr.rel (0) target = $region85
  $region84: #{a_call__.3} parent=0 // pred_region
    _
  $region85: #{a_call__.3} parent=0 // pred_fallthru
    _
  // Predicated region
  $region86: #{a_call__.3} parent=0 // pred_check
    _
  $region87: #{a_call__.3} parent=0 // pred_check_branch
    %109 = sbr.rel (0) target = $region89
  $region88: #{a_call__.3} parent=0 // pred_region
    _
  $region89: #{a_call__.3} parent=0 // pred_fallthru
    _
  // Predicated region
  $region90: #{a_call__.3} parent=0 // pred_check
    _
  $region91: #{a_call__.3} parent=0 // pred_check_branch
    %111 = sbr.rel (0) target = $region93
  $region92: #{a_call__.3} parent=0 // pred_region
    _
  $region93: #{a_call__.3} parent=0 // pred_fallthru
    _
  // Predicated region
  $region94: #{a_call__.3} parent=0 // pred_check
    _
  $region95: #{a_call__.3} parent=0 // pred_check_branch
    %113 = sbr.rel (0) target = $region97
  $region96: #{a_call__.3} parent=0 // pred_region
    _
  $region97: #{a_call__.3} parent=0 // pred_fallthru
    _
  // Predicated region
  $region98: #{a_call__.3} parent=0 // pred_check
    _
  $region99: #{a_call__.3} parent=0 // pred_check_branch
    %115 = sbr.rel (0) target = $region101
  $region100: #{a_call__.3} parent=0 // pred_region
    _
  $region101: #{a_call__.3} parent=0 // pred_fallthru
    _
  // Predicated region
  $region102: #{a_call__.3} parent=0 // pred_check
    _
  $region103: #{a_call__.3} parent=0 // pred_check_branch
    %117 = sbr.rel (0) target = $region105
  $region104: #{a_call__.3} parent=0 // pred_region
    _
  $region105: #{a_call__.3} parent=0 // pred_fallthru
    _
  // Predicated region
  $region106: #{a_call__.3} parent=0 // pred_check
    _
  $region107: #{a_call__.3} parent=0 // pred_check_branch
    %119 = sbr.rel (0) target = $region109
  $region108: #{a_call__.3} parent=0 // pred_region
    _
  $region109: #{a_call__.3} parent=0 // pred_fallthru
    _
  // Predicated region
  $region110: #{a_call__.3} parent=0 // pred_check
    _
  $region111: #{a_call__.3} parent=0 // pred_check_branch
    %121 = sbr.rel (0) target = $region113
  $region112: #{a_call__.3} parent=0 // pred_region
    _
  $region113: #{a_call__.3} parent=0 // pred_fallthru
    _
  // Predicated region
  $region114: #{a_call__.3} parent=0 // pred_check
    _
  $region115: #{a_call__.3} parent=0 // pred_check_branch
    %123 = sbr.rel (0) target = $region117
  $region116: #{a_call__.3} parent=0 // pred_region
    _
  $region117: #{a_call__.3} parent=0 // pred_fallthru
    _
  // Predicated region
  $region118: #{a_call__.3} parent=0 // pred_check
    _
  $region119: #{a_call__.3} parent=0 // pred_check_branch
    %125 = sbr.rel (0) target = $region121
  $region120: #{a_call__.3} parent=0 // pred_region
    _
  $region121: #{a_call__.3} parent=0 // pred_fallthru
    _
  %v126 = vld [vmem:[%s1] sm:$0xf]
  %v127 = vld [vmem:[%s43] sm:$0x3]
  %v128 = vld [vmem:[%s45] sm:$0x77]
  %v129 = vld [vmem:[%s47] sm:$0x3]
  %v130 = vld [vmem:[%s49] sm:$0x77]
  %v131 = vld [vmem:[%s51] sm:$0x77]
  %v132 = vld [vmem:[%s53] sm:$0xff]
  %v133 = vld [vmem:[%s53 + $0x8] sm:$0xff]
  %v134 = vld [vmem:[%s53 + $0x10] sm:$0xff]
  %v135 = vld [vmem:[%s53 + $0x18] sm:$0xff]
  %v136 = vld [vmem:[%s53 + $0x20] sm:$0xff]
  %v137 = vld [vmem:[%s53 + $0x28] sm:$0xff]
  %v138 = vld [vmem:[%s53 + $0x30] sm:$0x7]
  %v139 = vld [vmem:[%s53 + $0x38] sm:$0x7]
  %v140 = vld [vmem:[%s3] sm:$0xff]
  %v141 = vld [vmem:[%s3 + $0x8] sm:$0xff]
  %v142 = vld [vmem:[%s3 + $0x10] sm:$0xff]
  %v143 = vld [vmem:[%s3 + $0x18] sm:$0xff]
  %v144 = vld [vmem:[%s5] sm:$0xff]
  %v145 = vld [vmem:[%s5 + $0x8] sm:$0xff]
  %v146 = vld [vmem:[%s5 + $0x10] sm:$0xff]
  %v147 = vld [vmem:[%s5 + $0x18] sm:$0xff]
  %149 = vset.pattern.permute.xlu0 0
  %150 = vperm.xlu0 %149, %v140
  %v151 = vpop.permute.xlu0 %150
  %154 = vset.pattern.permute.xlu0 0
  %155 = vperm.xlu0 %154, %v141
  %v156 = vpop.permute.xlu0 %155
  %159 = vset.pattern.permute.xlu0 0
  %160 = vperm.xlu0 %159, %v142
  %v161 = vpop.permute.xlu0 %160
  %164 = vset.pattern.permute.xlu0 0
  %165 = vperm.xlu0 %164, %v143
  %v166 = vpop.permute.xlu0 %165
  %v169 = vlaneseq
  %v170 = vshrl.u32 %v169, 7
  %v171 = vsub.s32 0, %v170
  %v172 = vrot.slane %v126, %v171
  %v173 = vlaneseq
  %v174 = vshrl.u32 %v173, 7
  %v175 = vsub.s32 2, %v174
  %v176 = vrot.slane %v126, %v175
  %v179 = vlaneseq
  %v180 = vshrl.u32 %v179, 7
  %v181 = vsub.s32 0, %v180
  %v182 = vrot.slane %v172, %v181
  %v183 = vlaneseq
  %v184 = vshrl.u32 %v183, 7
  %v185 = vsub.s32 0, %v184
  %v186 = vrot.slane %v176, %v185
  %v187 = vmul.f32 %v151, %v182
  %v188 = vmul.f32 %v151, %v186
  %v189 = vmul.f32 %v156, %v182
  %v190 = vmul.f32 %v156, %v186
  %v191 = vmul.f32 %v161, %v182
  %v192 = vmul.f32 %v161, %v186
  %v193 = vmul.f32 %v166, %v182
  %v194 = vmul.f32 %v166, %v186
  %196 = vset.pattern.permute.xlu0 0
  %197 = vperm.xlu0 %196, %v144
  %v198 = vpop.permute.xlu0 %197
  %201 = vset.pattern.permute.xlu0 0
  %202 = vperm.xlu0 %201, %v145
  %v203 = vpop.permute.xlu0 %202
  %206 = vset.pattern.permute.xlu0 0
  %207 = vperm.xlu0 %206, %v146
  %v208 = vpop.permute.xlu0 %207
  %211 = vset.pattern.permute.xlu0 0
  %212 = vperm.xlu0 %211, %v147
  %v213 = vpop.permute.xlu0 %212
  %v215 = vadd.f32 %v198, %v187
  %v216 = vadd.f32 %v198, %v188
  %v217 = vadd.f32 %v203, %v189
  %v218 = vadd.f32 %v203, %v190
  %v219 = vadd.f32 %v208, %v191
  %v220 = vadd.f32 %v208, %v192
  %v221 = vadd.f32 %v213, %v193
  %v222 = vadd.f32 %v213, %v194
  %223 = vset.pattern.permute.xlu0 1
  %224 = vperm.xlu0 %223, %v140
  %v225 = vpop.permute.xlu0 %224
  %227 = vset.pattern.permute.xlu0 1
  %228 = vperm.xlu0 %227, %v141
  %v229 = vpop.permute.xlu0 %228
  %231 = vset.pattern.permute.xlu0 1
  %232 = vperm.xlu0 %231, %v142
  %v233 = vpop.permute.xlu0 %232
  %235 = vset.pattern.permute.xlu0 1
  %236 = vperm.xlu0 %235, %v143
  %v237 = vpop.permute.xlu0 %236
  %v239 = vlaneseq
  %v240 = vshrl.u32 %v239, 7
  %v241 = vsub.s32 1, %v240
  %v242 = vrot.slane %v126, %v241
  %v243 = vlaneseq
  %v244 = vshrl.u32 %v243, 7
  %v245 = vsub.s32 3, %v244
  %v246 = vrot.slane %v126, %v245
  %v249 = vlaneseq
  %v250 = vshrl.u32 %v249, 7
  %v251 = vsub.s32 1, %v250
  %v252 = vrot.slane %v242, %v251
  %v253 = vlaneseq
  %v254 = vshrl.u32 %v253, 7
  %v255 = vsub.s32 1, %v254
  %v256 = vrot.slane %v246, %v255
  %v257 = vmul.f32 %v225, %v252
  %v258 = vmul.f32 %v225, %v256
  %v259 = vmul.f32 %v229, %v252
  %v260 = vmul.f32 %v229, %v256
  %v261 = vmul.f32 %v233, %v252
  %v262 = vmul.f32 %v233, %v256
  %v263 = vmul.f32 %v237, %v252
  %v264 = vmul.f32 %v237, %v256
  %v265 = vadd.f32 %v215, %v257
  %v266 = vadd.f32 %v216, %v258
  %v267 = vadd.f32 %v217, %v259
  %v268 = vadd.f32 %v218, %v260
  %v269 = vadd.f32 %v219, %v261
  %v270 = vadd.f32 %v220, %v262
  %v271 = vadd.f32 %v221, %v263
  %v272 = vadd.f32 %v222, %v264
  %v273 = vadd.f32 %v265, %v267
  %v274 = vadd.f32 %v273, %v269
  %v275 = vadd.f32 %v274, %v271
  %v276 = vrot.slane %v275, 4
  %v277 = vadd.f32 %v275, %v276
  %v278 = vrot.slane %v277, 2
  %v279 = vadd.f32 %v277, %v278
  %v280 = vrot.slane %v279, 1
  %v281 = vadd.f32 %v279, %v280
  %v282 = vadd.f32 %v266, %v268
  %v283 = vadd.f32 %v282, %v270
  %v284 = vadd.f32 %v283, %v272
  %v285 = vrot.slane %v284, 4
  %v286 = vadd.f32 %v284, %v285
  %v287 = vrot.slane %v286, 2
  %v288 = vadd.f32 %v286, %v287
  %v289 = vrot.slane %v288, 1
  %v290 = vadd.f32 %v288, %v289
  %v291 = vrcp.pop 32.0
  %v292 = vmul.f32 %v281, %v291
  %v293 = vmul.f32 %v290, %v291
  %v294 = vsub.f32 %v265, %v292
  %v295 = vsub.f32 %v266, %v293
  %v296 = vsub.f32 %v267, %v292
  %v297 = vsub.f32 %v268, %v293
  %v298 = vsub.f32 %v269, %v292
  %v299 = vsub.f32 %v270, %v293
  %v300 = vsub.f32 %v271, %v292
  %v301 = vsub.f32 %v272, %v293
  %v302 = vmul.f32 %v294, %v294
  %v303 = vmul.f32 %v295, %v295
  %v304 = vmul.f32 %v296, %v296
  %v305 = vmul.f32 %v297, %v297
  %v306 = vmul.f32 %v298, %v298
  %v307 = vmul.f32 %v299, %v299
  %v308 = vmul.f32 %v300, %v300
  %v309 = vmul.f32 %v301, %v301
  %v310 = vadd.f32 %v302, %v304
  %v311 = vadd.f32 %v310, %v306
  %v312 = vadd.f32 %v311, %v308
  %v313 = vrot.slane %v312, 4
  %v314 = vadd.f32 %v312, %v313
  %v315 = vrot.slane %v314, 2
  %v316 = vadd.f32 %v314, %v315
  %v317 = vrot.slane %v316, 1
  %v318 = vadd.f32 %v316, %v317
  %v319 = vadd.f32 %v303, %v305
  %v320 = vadd.f32 %v319, %v307
  %v321 = vadd.f32 %v320, %v309
  %v322 = vrot.slane %v321, 4
  %v323 = vadd.f32 %v321, %v322
  %v324 = vrot.slane %v323, 2
  %v325 = vadd.f32 %v323, %v324
  %v326 = vrot.slane %v325, 1
  %v327 = vadd.f32 %v325, %v326
  %v328 = vmul.f32 %v318, %v291
  %v329 = vmul.f32 %v327, %v291
  %v330 = vadd.f32 %v328, 1e-05
  %v331 = vadd.f32 %v329, 1e-05
  %v332 = vrsqrt.pop %v330
  %v333 = vrsqrt.pop %v331
  %v334 = vmul.f32 %v294, %v332
  %v335 = vmul.f32 %v295, %v333
  %v336 = vmul.f32 %v296, %v332
  %v337 = vmul.f32 %v297, %v333
  %v338 = vmul.f32 %v298, %v332
  %v339 = vmul.f32 %v299, %v333
  %v340 = vmul.f32 %v300, %v332
  %v341 = vmul.f32 %v301, %v333
  %342 = vset.pattern.permute.xlu0 1
  %343 = vperm.xlu0 %342, %v144
  %v344 = vpop.permute.xlu0 %343
  %346 = vset.pattern.permute.xlu0 1
  %347 = vperm.xlu0 %346, %v145
  %v348 = vpop.permute.xlu0 %347
  %350 = vset.pattern.permute.xlu0 1
  %351 = vperm.xlu0 %350, %v146
  %v352 = vpop.permute.xlu0 %351
  %354 = vset.pattern.permute.xlu0 1
  %355 = vperm.xlu0 %354, %v147
  %v356 = vpop.permute.xlu0 %355
  %v358 = vmul.f32 %v334, %v344
  %v359 = vmul.f32 %v335, %v344
  %v360 = vmul.f32 %v336, %v348
  %v361 = vmul.f32 %v337, %v348
  %v362 = vmul.f32 %v338, %v352
  %v363 = vmul.f32 %v339, %v352
  %v364 = vmul.f32 %v340, %v356
  %v365 = vmul.f32 %v341, %v356
  %366 = vset.pattern.permute.xlu0 2
  %367 = vperm.xlu0 %366, %v144
  %v368 = vpop.permute.xlu0 %367
  %370 = vset.pattern.permute.xlu0 2
  %371 = vperm.xlu0 %370, %v145
  %v372 = vpop.permute.xlu0 %371
  %374 = vset.pattern.permute.xlu0 2
  %375 = vperm.xlu0 %374, %v146
  %v376 = vpop.permute.xlu0 %375
  %378 = vset.pattern.permute.xlu0 2
  %379 = vperm.xlu0 %378, %v147
  %v380 = vpop.permute.xlu0 %379
  %v382 = vadd.f32 %v358, %v368
  %v383 = vadd.f32 %v359, %v368
  %v384 = vadd.f32 %v360, %v372
  %v385 = vadd.f32 %v361, %v372
  %v386 = vadd.f32 %v362, %v376
  %v387 = vadd.f32 %v363, %v376
  %v388 = vadd.f32 %v364, %v380
  %v389 = vadd.f32 %v365, %v380
  %v390 = vmax.f32 %v382, 0.0
  %v391 = vmax.f32 %v383, 0.0
  %v392 = vmax.f32 %v384, 0.0
  %v393 = vmax.f32 %v385, 0.0
  %v394 = vmax.f32 %v386, 0.0
  %v395 = vmax.f32 %v387, 0.0
  %v396 = vmax.f32 %v388, 0.0
  %v397 = vmax.f32 %v389, 0.0
  %v398 = vld [vmem:[%s7] sm:$0xff]
  %v399 = vld [vmem:[%s7 + $0x8] sm:$0xff]
  %v400 = vld [vmem:[%s7 + $0x10] sm:$0xff]
  %v401 = vld [vmem:[%s7 + $0x18] sm:$0xff]
  %402 = vset.pattern.permute.xlu0 3
  %403 = vperm.xlu0 %402, %v144
  %v404 = vpop.permute.xlu0 %403
  %406 = vset.pattern.permute.xlu0 3
  %407 = vperm.xlu0 %406, %v145
  %v408 = vpop.permute.xlu0 %407
  %410 = vset.pattern.permute.xlu0 3
  %411 = vperm.xlu0 %410, %v146
  %v412 = vpop.permute.xlu0 %411
  %414 = vset.pattern.permute.xlu0 3
  %415 = vperm.xlu0 %414, %v147
  %v416 = vpop.permute.xlu0 %415
  %vm418 = vcmask 261120
  %v420 = vsel %vm418, %v398, 0
  %v423 = vsel %vm418, %v399, 0
  %v426 = vsel %vm418, %v400, 0
  %v429 = vsel %vm418, %v401, 0
  %431 = vmatprep.subr.mxu0 0.0
  %432 = vmatpush1.msra.mxu0 0.0
  %433 = vmatprep.subr.mxu0 0.0
  %434 = vmatpush1.msra.mxu0 0.0
  %435 = vmatprep.subr.mxu0 0.0
  %436 = vmatpush1.msra.mxu0 0.0
  %437 = vmatprep.subr.mxu0 0.0
  %438 = vmatpush1.msra.mxu0 0.0
  %439 = vmatprep.subr.mxu0 0.0
  %440 = vmatpush1.msra.mxu0 0.0
  %441 = vmatprep.subr.mxu0 0.0
  %442 = vmatpush1.msra.mxu0 0.0
  %443 = vmatprep.subr.mxu0 0.0
  %444 = vmatpush1.msra.mxu0 0.0
  %445 = vmatprep.subr.mxu0 0.0
  %446 = vmatpush1.msra.mxu0 0.0
  %447 = vmatprep.subr.mxu0 0.0
  %448 = vmatpush1.msra.mxu0 0.0
  %449 = vmatprep.subr.mxu0 0.0
  %450 = vmatpush1.msra.mxu0 0.0
  %451 = vmatprep.subr.mxu0 0.0
  %452 = vmatpush1.msra.mxu0 0.0
  %453 = vmatprep.subr.mxu0 0.0
  %454 = vmatpush1.msra.mxu0 0.0
  %455 = vmatprep.subr.mxu0 %v397
  %456 = vmatpush1.msra.mxu0 %v396
  %457 = vmatprep.subr.mxu0 %v395
  %458 = vmatpush1.msra.mxu0 %v394
  %459 = vmatprep.subr.mxu0 %v393
  %460 = vmatpush1.msra.mxu0 %v392
  %461 = vmatprep.subr.mxu0 %v391
  %462 = vmatpush1.msra.mxu0 %v390
  %463 = vmatprep.subr.mxu0 0.0
  %464 = vmatpush2.msra.mxu0 0.0
  %465 = vmatprep.subr.mxu0 0.0
  %466 = vmatpush2.msra.mxu0 0.0
  %467 = vmatprep.subr.mxu0 0.0
  %468 = vmatpush2.msra.mxu0 0.0
  %469 = vmatprep.subr.mxu0 0.0
  %470 = vmatpush2.msra.mxu0 0.0
  %471 = vmatprep.subr.mxu0 0.0
  %472 = vmatpush2.msra.mxu0 0.0
  %473 = vmatprep.subr.mxu0 0.0
  %474 = vmatpush2.msra.mxu0 0.0
  %475 = vmatprep.subr.mxu0 0.0
  %476 = vmatpush2.msra.mxu0 0.0
  %477 = vmatprep.subr.mxu0 0.0
  %478 = vmatpush2.msra.mxu0 0.0
  %479 = vmatprep.subr.mxu0 0.0
  %480 = vmatpush2.msra.mxu0 0.0
  %481 = vmatprep.subr.mxu0 0.0
  %482 = vmatpush2.msra.mxu0 0.0
  %483 = vmatprep.subr.mxu0 0.0
  %484 = vmatpush2.msra.mxu0 0.0
  %485 = vmatprep.subr.mxu0 0.0
  %486 = vmatpush2.msra.mxu0 0.0
  %487 = vmatprep.subr.mxu0 0.0
  %488 = vmatpush2.msra.mxu0 0.0
  %489 = vmatprep.subr.mxu0 0.0
  %490 = vmatpush2.msra.mxu0 0.0
  %491 = vmatprep.subr.mxu0 0.0
  %492 = vmatpush2.msra.mxu0 0.0
  %493 = vmatprep.subr.mxu0 0.0
  %494 = vmatpush2.msra.mxu0 0.0
  %495 = vmatprep.mubr.f32.mxu0 0.0
  %496 = vmatmul.mubr.f32.gmra.mxu0 %v420
  %v497 = vpop.f32.mrf.mxu0
  %v498 = vadd.f32 %v404, %v497
  %v499 = vpop.f32.mrf.mxu0
  %v500 = vadd.f32 %v404, %v499
  %501 = vmatprep.mubr.f32.mxu0 0.0
  %502 = vmatmul.mubr.f32.gmra.mxu0 %v423
  %v503 = vpop.f32.mrf.mxu0
  %v504 = vadd.f32 %v408, %v503
  %v505 = vpop.f32.mrf.mxu0
  %v506 = vadd.f32 %v408, %v505
  %507 = vmatprep.mubr.f32.mxu0 0.0
  %508 = vmatmul.mubr.f32.gmra.mxu0 %v426
  %v509 = vpop.f32.mrf.mxu0
  %v510 = vadd.f32 %v412, %v509
  %v511 = vpop.f32.mrf.mxu0
  %v512 = vadd.f32 %v412, %v511
  %513 = vmatprep.mubr.f32.mxu0 0.0
  %514 = vmatmul.mubr.f32.gmra.mxu0 %v429
  %v515 = vpop.f32.mrf.mxu0
  %v516 = vadd.f32 %v416, %v515
  %v517 = vpop.f32.mrf.mxu0
  %v518 = vadd.f32 %v416, %v517
  %519 = vdwg.mxu0
  %v520 = vadd.f32 %v498, %v504
  %v521 = vadd.f32 %v520, %v510
  %v522 = vadd.f32 %v521, %v516
  %v523 = vrot.slane %v522, 4
  %v524 = vadd.f32 %v522, %v523
  %v525 = vrot.slane %v524, 2
  %v526 = vadd.f32 %v524, %v525
  %v527 = vrot.slane %v526, 1
  %v528 = vadd.f32 %v526, %v527
  %v529 = vadd.f32 %v500, %v506
  %v530 = vadd.f32 %v529, %v512
  %v531 = vadd.f32 %v530, %v518
  %v532 = vrot.slane %v531, 4
  %v533 = vadd.f32 %v531, %v532
  %v534 = vrot.slane %v533, 2
  %v535 = vadd.f32 %v533, %v534
  %v536 = vrot.slane %v535, 1
  %v537 = vadd.f32 %v535, %v536
  %v538 = vmul.f32 %v528, %v291
  %v539 = vmul.f32 %v537, %v291
  %v540 = vsub.f32 %v498, %v538
  %v541 = vsub.f32 %v500, %v539
  %v542 = vsub.f32 %v504, %v538
  %v543 = vsub.f32 %v506, %v539
  %v544 = vsub.f32 %v510, %v538
  %v545 = vsub.f32 %v512, %v539
  %v546 = vsub.f32 %v516, %v538
  %v547 = vsub.f32 %v518, %v539
  %v548 = vmul.f32 %v540, %v540
  %v549 = vmul.f32 %v541, %v541
  %v550 = vmul.f32 %v542, %v542
  %v551 = vmul.f32 %v543, %v543
  %v552 = vmul.f32 %v544, %v544
  %v553 = vmul.f32 %v545, %v545
  %v554 = vmul.f32 %v546, %v546
  %v555 = vmul.f32 %v547, %v547
  %v556 = vadd.f32 %v548, %v550
  %v557 = vadd.f32 %v556, %v552
  %v558 = vadd.f32 %v557, %v554
  %v559 = vrot.slane %v558, 4
  %v560 = vadd.f32 %v558, %v559
  %v561 = vrot.slane %v560, 2
  %v562 = vadd.f32 %v560, %v561
  %v563 = vrot.slane %v562, 1
  %v564 = vadd.f32 %v562, %v563
  %v565 = vadd.f32 %v549, %v551
  %v566 = vadd.f32 %v565, %v553
  %v567 = vadd.f32 %v566, %v555
  %v568 = vrot.slane %v567, 4
  %v569 = vadd.f32 %v567, %v568
  %v570 = vrot.slane %v569, 2
  %v571 = vadd.f32 %v569, %v570
  %v572 = vrot.slane %v571, 1
  %v573 = vadd.f32 %v571, %v572
  %v574 = vmul.f32 %v564, %v291
  %v575 = vmul.f32 %v573, %v291
  %v576 = vadd.f32 %v574, 1e-05
  %v577 = vadd.f32 %v575, 1e-05
  %v578 = vrsqrt.pop %v576
  %v579 = vrsqrt.pop %v577
  %v580 = vmul.f32 %v540, %v578
  %v581 = vmul.f32 %v541, %v579
  %v582 = vmul.f32 %v542, %v578
  %v583 = vmul.f32 %v543, %v579
  %v584 = vmul.f32 %v544, %v578
  %v585 = vmul.f32 %v545, %v579
  %v586 = vmul.f32 %v546, %v578
  %v587 = vmul.f32 %v547, %v579
  %588 = vset.pattern.permute.xlu0 4
  %589 = vperm.xlu0 %588, %v144
  %v590 = vpop.permute.xlu0 %589
  %592 = vset.pattern.permute.xlu0 4
  %593 = vperm.xlu0 %592, %v145
  %v594 = vpop.permute.xlu0 %593
  %596 = vset.pattern.permute.xlu0 4
  %597 = vperm.xlu0 %596, %v146
  %v598 = vpop.permute.xlu0 %597
  %600 = vset.pattern.permute.xlu0 4
  %601 = vperm.xlu0 %600, %v147
  %v602 = vpop.permute.xlu0 %601
  %v604 = vmul.f32 %v580, %v590
  %v605 = vmul.f32 %v581, %v590
  %v606 = vmul.f32 %v582, %v594
  %v607 = vmul.f32 %v583, %v594
  %v608 = vmul.f32 %v584, %v598
  %v609 = vmul.f32 %v585, %v598
  %v610 = vmul.f32 %v586, %v602
  %v611 = vmul.f32 %v587, %v602
  %612 = vset.pattern.permute.xlu0 5
  %613 = vperm.xlu0 %612, %v144
  %v614 = vpop.permute.xlu0 %613
  %616 = vset.pattern.permute.xlu0 5
  %617 = vperm.xlu0 %616, %v145
  %v618 = vpop.permute.xlu0 %617
  %620 = vset.pattern.permute.xlu0 5
  %621 = vperm.xlu0 %620, %v146
  %v622 = vpop.permute.xlu0 %621
  %624 = vset.pattern.permute.xlu0 5
  %625 = vperm.xlu0 %624, %v147
  %v626 = vpop.permute.xlu0 %625
  %v628 = vadd.f32 %v604, %v614
  %v629 = vadd.f32 %v605, %v614
  %v630 = vadd.f32 %v606, %v618
  %v631 = vadd.f32 %v607, %v618
  %v632 = vadd.f32 %v608, %v622
  %v633 = vadd.f32 %v609, %v622
  %v634 = vadd.f32 %v610, %v626
  %v635 = vadd.f32 %v611, %v626
  %v636 = vmax.f32 %v628, 0.0
  %v637 = vmax.f32 %v629, 0.0
  %v638 = vmax.f32 %v630, 0.0
  %v639 = vmax.f32 %v631, 0.0
  %v640 = vmax.f32 %v632, 0.0
  %v641 = vmax.f32 %v633, 0.0
  %v642 = vmax.f32 %v634, 0.0
  %v643 = vmax.f32 %v635, 0.0
  %v644 = vld [vmem:[%s9] sm:$0xff]
  %v645 = vld [vmem:[%s11] sm:$0xff]
  %647 = vset.pattern.permute.xlu0 0
  %648 = vperm.xlu0 %647, %v645
  %v649 = vpop.permute.xlu0 %648
  %v652 = vsel %vm418, %v644, 0
  %654 = vmatprep.subr.mxu0 0.0
  %655 = vmatpush1.msra.mxu0 0.0
  %656 = vmatprep.subr.mxu0 0.0
  %657 = vmatpush1.msra.mxu0 0.0
  %658 = vmatprep.subr.mxu0 0.0
  %659 = vmatpush1.msra.mxu0 0.0
  %660 = vmatprep.subr.mxu0 0.0
  %661 = vmatpush1.msra.mxu0 0.0
  %662 = vmatprep.subr.mxu0 0.0
  %663 = vmatpush1.msra.mxu0 0.0
  %664 = vmatprep.subr.mxu0 0.0
  %665 = vmatpush1.msra.mxu0 0.0
  %666 = vmatprep.subr.mxu0 0.0
  %667 = vmatpush1.msra.mxu0 0.0
  %668 = vmatprep.subr.mxu0 0.0
  %669 = vmatpush1.msra.mxu0 0.0
  %670 = vmatprep.subr.mxu0 0.0
  %671 = vmatpush1.msra.mxu0 0.0
  %672 = vmatprep.subr.mxu0 0.0
  %673 = vmatpush1.msra.mxu0 0.0
  %674 = vmatprep.subr.mxu0 0.0
  %675 = vmatpush1.msra.mxu0 0.0
  %676 = vmatprep.subr.mxu0 0.0
  %677 = vmatpush1.msra.mxu0 0.0
  %678 = vmatprep.subr.mxu0 %v643
  %679 = vmatpush1.msra.mxu0 %v642
  %680 = vmatprep.subr.mxu0 %v641
  %681 = vmatpush1.msra.mxu0 %v640
  %682 = vmatprep.subr.mxu0 %v639
  %683 = vmatpush1.msra.mxu0 %v638
  %684 = vmatprep.subr.mxu0 %v637
  %685 = vmatpush1.msra.mxu0 %v636
  %686 = vmatprep.subr.mxu0 0.0
  %687 = vmatpush2.msra.mxu0 0.0
  %688 = vmatprep.subr.mxu0 0.0
  %689 = vmatpush2.msra.mxu0 0.0
  %690 = vmatprep.subr.mxu0 0.0
  %691 = vmatpush2.msra.mxu0 0.0
  %692 = vmatprep.subr.mxu0 0.0
  %693 = vmatpush2.msra.mxu0 0.0
  %694 = vmatprep.subr.mxu0 0.0
  %695 = vmatpush2.msra.mxu0 0.0
  %696 = vmatprep.subr.mxu0 0.0
  %697 = vmatpush2.msra.mxu0 0.0
  %698 = vmatprep.subr.mxu0 0.0
  %699 = vmatpush2.msra.mxu0 0.0
  %700 = vmatprep.subr.mxu0 0.0
  %701 = vmatpush2.msra.mxu0 0.0
  %702 = vmatprep.subr.mxu0 0.0
  %703 = vmatpush2.msra.mxu0 0.0
  %704 = vmatprep.subr.mxu0 0.0
  %705 = vmatpush2.msra.mxu0 0.0
  %706 = vmatprep.subr.mxu0 0.0
  %707 = vmatpush2.msra.mxu0 0.0
  %708 = vmatprep.subr.mxu0 0.0
  %709 = vmatpush2.msra.mxu0 0.0
  %710 = vmatprep.subr.mxu0 0.0
  %711 = vmatpush2.msra.mxu0 0.0
  %712 = vmatprep.subr.mxu0 0.0
  %713 = vmatpush2.msra.mxu0 0.0
  %714 = vmatprep.subr.mxu0 0.0
  %715 = vmatpush2.msra.mxu0 0.0
  %716 = vmatprep.subr.mxu0 0.0
  %717 = vmatpush2.msra.mxu0 0.0
  %718 = vmatprep.mubr.f32.mxu0 0.0
  %719 = vmatmul.mubr.f32.gmra.mxu0 %v652
  %v720 = vpop.f32.mrf.mxu0
  %v721 = vadd.f32 %v649, %v720
  %v722 = vpop.f32.mrf.mxu0
  %v723 = vadd.f32 %v649, %v722
  %724 = vdwg.mxu0
  %v725 = vld [vmem:[%s13] sm:$0xff]
  %v726 = vld [vmem:[%s13 + $0x8] sm:$0xff]
  %v727 = vld [vmem:[%s13 + $0x10] sm:$0xff]
  %v728 = vld [vmem:[%s13 + $0x18] sm:$0xff]
  %v729 = vld [vmem:[%s15] sm:$0xff]
  %v730 = vld [vmem:[%s15 + $0x8] sm:$0xff]
  %v731 = vld [vmem:[%s15 + $0x10] sm:$0xff]
  %v732 = vld [vmem:[%s15 + $0x18] sm:$0xff]
  %734 = vset.pattern.permute.xlu0 0
  %735 = vperm.xlu0 %734, %v725
  %v736 = vpop.permute.xlu0 %735
  %739 = vset.pattern.permute.xlu0 0
  %740 = vperm.xlu0 %739, %v726
  %v741 = vpop.permute.xlu0 %740
  %744 = vset.pattern.permute.xlu0 0
  %745 = vperm.xlu0 %744, %v727
  %v746 = vpop.permute.xlu0 %745
  %749 = vset.pattern.permute.xlu0 0
  %750 = vperm.xlu0 %749, %v728
  %v751 = vpop.permute.xlu0 %750
  %v753 = vmul.f32 %v736, %v182
  %v754 = vmul.f32 %v736, %v186
  %v755 = vmul.f32 %v741, %v182
  %v756 = vmul.f32 %v741, %v186
  %v757 = vmul.f32 %v746, %v182
  %v758 = vmul.f32 %v746, %v186
  %v759 = vmul.f32 %v751, %v182
  %v760 = vmul.f32 %v751, %v186
  %762 = vset.pattern.permute.xlu0 0
  %763 = vperm.xlu0 %762, %v729
  %v764 = vpop.permute.xlu0 %763
  %767 = vset.pattern.permute.xlu0 0
  %768 = vperm.xlu0 %767, %v730
  %v769 = vpop.permute.xlu0 %768
  %772 = vset.pattern.permute.xlu0 0
  %773 = vperm.xlu0 %772, %v731
  %v774 = vpop.permute.xlu0 %773
  %777 = vset.pattern.permute.xlu0 0
  %778 = vperm.xlu0 %777, %v732
  %v779 = vpop.permute.xlu0 %778
  %v781 = vadd.f32 %v764, %v753
  %v782 = vadd.f32 %v764, %v754
  %v783 = vadd.f32 %v769, %v755
  %v784 = vadd.f32 %v769, %v756
  %v785 = vadd.f32 %v774, %v757
  %v786 = vadd.f32 %v774, %v758
  %v787 = vadd.f32 %v779, %v759
  %v788 = vadd.f32 %v779, %v760
  %789 = vset.pattern.permute.xlu0 1
  %790 = vperm.xlu0 %789, %v725
  %v791 = vpop.permute.xlu0 %790
  %793 = vset.pattern.permute.xlu0 1
  %794 = vperm.xlu0 %793, %v726
  %v795 = vpop.permute.xlu0 %794
  %797 = vset.pattern.permute.xlu0 1
  %798 = vperm.xlu0 %797, %v727
  %v799 = vpop.permute.xlu0 %798
  %801 = vset.pattern.permute.xlu0 1
  %802 = vperm.xlu0 %801, %v728
  %v803 = vpop.permute.xlu0 %802
  %v805 = vmul.f32 %v791, %v252
  %v806 = vmul.f32 %v791, %v256
  %v807 = vmul.f32 %v795, %v252
  %v808 = vmul.f32 %v795, %v256
  %v809 = vmul.f32 %v799, %v252
  %v810 = vmul.f32 %v799, %v256
  %v811 = vmul.f32 %v803, %v252
  %v812 = vmul.f32 %v803, %v256
  %v813 = vadd.f32 %v781, %v805
  %v814 = vadd.f32 %v782, %v806
  %v815 = vadd.f32 %v783, %v807
  %v816 = vadd.f32 %v784, %v808
  %v817 = vadd.f32 %v785, %v809
  %v818 = vadd.f32 %v786, %v810
  %v819 = vadd.f32 %v787, %v811
  %v820 = vadd.f32 %v788, %v812
  %v821 = vadd.f32 %v813, %v815
  %v822 = vadd.f32 %v821, %v817
  %v823 = vadd.f32 %v822, %v819
  %v824 = vrot.slane %v823, 4
  %v825 = vadd.f32 %v823, %v824
  %v826 = vrot.slane %v825, 2
  %v827 = vadd.f32 %v825, %v826
  %v828 = vrot.slane %v827, 1
  %v829 = vadd.f32 %v827, %v828
  %v830 = vadd.f32 %v814, %v816
  %v831 = vadd.f32 %v830, %v818
  %v832 = vadd.f32 %v831, %v820
  %v833 = vrot.slane %v832, 4
  %v834 = vadd.f32 %v832, %v833
  %v835 = vrot.slane %v834, 2
  %v836 = vadd.f32 %v834, %v835
  %v837 = vrot.slane %v836, 1
  %v838 = vadd.f32 %v836, %v837
  %v839 = vmul.f32 %v829, %v291
  %v840 = vmul.f32 %v838, %v291
  %v841 = vsub.f32 %v813, %v839
  %v842 = vsub.f32 %v814, %v840
  %v843 = vsub.f32 %v815, %v839
  %v844 = vsub.f32 %v816, %v840
  %v845 = vsub.f32 %v817, %v839
  %v846 = vsub.f32 %v818, %v840
  %v847 = vsub.f32 %v819, %v839
  %v848 = vsub.f32 %v820, %v840
  %v849 = vmul.f32 %v841, %v841
  %v850 = vmul.f32 %v842, %v842
  %v851 = vmul.f32 %v843, %v843
  %v852 = vmul.f32 %v844, %v844
  %v853 = vmul.f32 %v845, %v845
  %v854 = vmul.f32 %v846, %v846
  %v855 = vmul.f32 %v847, %v847
  %v856 = vmul.f32 %v848, %v848
  %v857 = vadd.f32 %v849, %v851
  %v858 = vadd.f32 %v857, %v853
  %v859 = vadd.f32 %v858, %v855
  %v860 = vrot.slane %v859, 4
  %v861 = vadd.f32 %v859, %v860
  %v862 = vrot.slane %v861, 2
  %v863 = vadd.f32 %v861, %v862
  %v864 = vrot.slane %v863, 1
  %v865 = vadd.f32 %v863, %v864
  %v866 = vadd.f32 %v850, %v852
  %v867 = vadd.f32 %v866, %v854
  %v868 = vadd.f32 %v867, %v856
  %v869 = vrot.slane %v868, 4
  %v870 = vadd.f32 %v868, %v869
  %v871 = vrot.slane %v870, 2
  %v872 = vadd.f32 %v870, %v871
  %v873 = vrot.slane %v872, 1
  %v874 = vadd.f32 %v872, %v873
  %v875 = vmul.f32 %v865, %v291
  %v876 = vmul.f32 %v874, %v291
  %v877 = vadd.f32 %v875, 1e-05
  %v878 = vadd.f32 %v876, 1e-05
  %v879 = vrsqrt.pop %v877
  %v880 = vrsqrt.pop %v878
  %v881 = vmul.f32 %v841, %v879
  %v882 = vmul.f32 %v842, %v880
  %v883 = vmul.f32 %v843, %v879
  %v884 = vmul.f32 %v844, %v880
  %v885 = vmul.f32 %v845, %v879
  %v886 = vmul.f32 %v846, %v880
  %v887 = vmul.f32 %v847, %v879
  %v888 = vmul.f32 %v848, %v880
  %889 = vset.pattern.permute.xlu0 1
  %890 = vperm.xlu0 %889, %v729
  %v891 = vpop.permute.xlu0 %890
  %893 = vset.pattern.permute.xlu0 1
  %894 = vperm.xlu0 %893, %v730
  %v895 = vpop.permute.xlu0 %894
  %897 = vset.pattern.permute.xlu0 1
  %898 = vperm.xlu0 %897, %v731
  %v899 = vpop.permute.xlu0 %898
  %901 = vset.pattern.permute.xlu0 1
  %902 = vperm.xlu0 %901, %v732
  %v903 = vpop.permute.xlu0 %902
  %v905 = vmul.f32 %v881, %v891
  %v906 = vmul.f32 %v882, %v891
  %v907 = vmul.f32 %v883, %v895
  %v908 = vmul.f32 %v884, %v895
  %v909 = vmul.f32 %v885, %v899
  %v910 = vmul.f32 %v886, %v899
  %v911 = vmul.f32 %v887, %v903
  %v912 = vmul.f32 %v888, %v903
  %913 = vset.pattern.permute.xlu0 2
  %914 = vperm.xlu0 %913, %v729
  %v915 = vpop.permute.xlu0 %914
  %917 = vset.pattern.permute.xlu0 2
  %918 = vperm.xlu0 %917, %v730
  %v919 = vpop.permute.xlu0 %918
  %921 = vset.pattern.permute.xlu0 2
  %922 = vperm.xlu0 %921, %v731
  %v923 = vpop.permute.xlu0 %922
  %925 = vset.pattern.permute.xlu0 2
  %926 = vperm.xlu0 %925, %v732
  %v927 = vpop.permute.xlu0 %926
  %v929 = vadd.f32 %v905, %v915
  %v930 = vadd.f32 %v906, %v915
  %v931 = vadd.f32 %v907, %v919
  %v932 = vadd.f32 %v908, %v919
  %v933 = vadd.f32 %v909, %v923
  %v934 = vadd.f32 %v910, %v923
  %v935 = vadd.f32 %v911, %v927
  %v936 = vadd.f32 %v912, %v927
  %v937 = vmax.f32 %v929, 0.0
  %v938 = vmax.f32 %v930, 0.0
  %v939 = vmax.f32 %v931, 0.0
  %v940 = vmax.f32 %v932, 0.0
  %v941 = vmax.f32 %v933, 0.0
  %v942 = vmax.f32 %v934, 0.0
  %v943 = vmax.f32 %v935, 0.0
  %v944 = vmax.f32 %v936, 0.0
  %v945 = vld [vmem:[%s17] sm:$0xff]
  %v946 = vld [vmem:[%s17 + $0x8] sm:$0xff]
  %v947 = vld [vmem:[%s17 + $0x10] sm:$0xff]
  %v948 = vld [vmem:[%s17 + $0x18] sm:$0xff]
  %949 = vset.pattern.permute.xlu0 3
  %950 = vperm.xlu0 %949, %v729
  %v951 = vpop.permute.xlu0 %950
  %953 = vset.pattern.permute.xlu0 3
  %954 = vperm.xlu0 %953, %v730
  %v955 = vpop.permute.xlu0 %954
  %957 = vset.pattern.permute.xlu0 3
  %958 = vperm.xlu0 %957, %v731
  %v959 = vpop.permute.xlu0 %958
  %961 = vset.pattern.permute.xlu0 3
  %962 = vperm.xlu0 %961, %v732
  %v963 = vpop.permute.xlu0 %962
  %v966 = vsel %vm418, %v945, 0
  %v969 = vsel %vm418, %v946, 0
  %v972 = vsel %vm418, %v947, 0
  %v975 = vsel %vm418, %v948, 0
  %977 = vmatprep.subr.mxu0 0.0
  %978 = vmatpush1.msra.mxu0 0.0
  %979 = vmatprep.subr.mxu0 0.0
  %980 = vmatpush1.msra.mxu0 0.0
  %981 = vmatprep.subr.mxu0 0.0
  %982 = vmatpush1.msra.mxu0 0.0
  %983 = vmatprep.subr.mxu0 0.0
  %984 = vmatpush1.msra.mxu0 0.0
  %985 = vmatprep.subr.mxu0 0.0
  %986 = vmatpush1.msra.mxu0 0.0
  %987 = vmatprep.subr.mxu0 0.0
  %988 = vmatpush1.msra.mxu0 0.0
  %989 = vmatprep.subr.mxu0 0.0
  %990 = vmatpush1.msra.mxu0 0.0
  %991 = vmatprep.subr.mxu0 0.0
  %992 = vmatpush1.msra.mxu0 0.0
  %993 = vmatprep.subr.mxu0 0.0
  %994 = vmatpush1.msra.mxu0 0.0
  %995 = vmatprep.subr.mxu0 0.0
  %996 = vmatpush1.msra.mxu0 0.0
  %997 = vmatprep.subr.mxu0 0.0
  %998 = vmatpush1.msra.mxu0 0.0
  %999 = vmatprep.subr.mxu0 0.0
  %1000 = vmatpush1.msra.mxu0 0.0
  %1001 = vmatprep.subr.mxu0 %v944
  %1002 = vmatpush1.msra.mxu0 %v943
  %1003 = vmatprep.subr.mxu0 %v942
  %1004 = vmatpush1.msra.mxu0 %v941
  %1005 = vmatprep.subr.mxu0 %v940
  %1006 = vmatpush1.msra.mxu0 %v939
  %1007 = vmatprep.subr.mxu0 %v938
  %1008 = vmatpush1.msra.mxu0 %v937
  %1009 = vmatprep.subr.mxu0 0.0
  %1010 = vmatpush2.msra.mxu0 0.0
  %1011 = vmatprep.subr.mxu0 0.0
  %1012 = vmatpush2.msra.mxu0 0.0
  %1013 = vmatprep.subr.mxu0 0.0
  %1014 = vmatpush2.msra.mxu0 0.0
  %1015 = vmatprep.subr.mxu0 0.0
  %1016 = vmatpush2.msra.mxu0 0.0
  %1017 = vmatprep.subr.mxu0 0.0
  %1018 = vmatpush2.msra.mxu0 0.0
  %1019 = vmatprep.subr.mxu0 0.0
  %1020 = vmatpush2.msra.mxu0 0.0
  %1021 = vmatprep.subr.mxu0 0.0
  %1022 = vmatpush2.msra.mxu0 0.0
  %1023 = vmatprep.subr.mxu0 0.0
  %1024 = vmatpush2.msra.mxu0 0.0
  %1025 = vmatprep.subr.mxu0 0.0
  %1026 = vmatpush2.msra.mxu0 0.0
  %1027 = vmatprep.subr.mxu0 0.0
  %1028 = vmatpush2.msra.mxu0 0.0
  %1029 = vmatprep.subr.mxu0 0.0
  %1030 = vmatpush2.msra.mxu0 0.0
  %1031 = vmatprep.subr.mxu0 0.0
  %1032 = vmatpush2.msra.mxu0 0.0
  %1033 = vmatprep.subr.mxu0 0.0
  %1034 = vmatpush2.msra.mxu0 0.0
  %1035 = vmatprep.subr.mxu0 0.0
  %1036 = vmatpush2.msra.mxu0 0.0
  %1037 = vmatprep.subr.mxu0 0.0
  %1038 = vmatpush2.msra.mxu0 0.0
  %1039 = vmatprep.subr.mxu0 0.0
  %1040 = vmatpush2.msra.mxu0 0.0
  %1041 = vmatprep.mubr.f32.mxu0 0.0
  %1042 = vmatmul.mubr.f32.gmra.mxu0 %v966
  %v1043 = vpop.f32.mrf.mxu0
  %v1044 = vadd.f32 %v951, %v1043
  %v1045 = vpop.f32.mrf.mxu0
  %v1046 = vadd.f32 %v951, %v1045
  %1047 = vmatprep.mubr.f32.mxu0 0.0
  %1048 = vmatmul.mubr.f32.gmra.mxu0 %v969
  %v1049 = vpop.f32.mrf.mxu0
  %v1050 = vadd.f32 %v955, %v1049
  %v1051 = vpop.f32.mrf.mxu0
  %v1052 = vadd.f32 %v955, %v1051
  %1053 = vmatprep.mubr.f32.mxu0 0.0
  %1054 = vmatmul.mubr.f32.gmra.mxu0 %v972
  %v1055 = vpop.f32.mrf.mxu0
  %v1056 = vadd.f32 %v959, %v1055
  %v1057 = vpop.f32.mrf.mxu0
  %v1058 = vadd.f32 %v959, %v1057
  %1059 = vmatprep.mubr.f32.mxu0 0.0
  %1060 = vmatmul.mubr.f32.gmra.mxu0 %v975
  %v1061 = vpop.f32.mrf.mxu0
  %v1062 = vadd.f32 %v963, %v1061
  %v1063 = vpop.f32.mrf.mxu0
  %v1064 = vadd.f32 %v963, %v1063
  %1065 = vdwg.mxu0
  %v1066 = vadd.f32 %v1044, %v1050
  %v1067 = vadd.f32 %v1066, %v1056
  %v1068 = vadd.f32 %v1067, %v1062
  %v1069 = vrot.slane %v1068, 4
  %v1070 = vadd.f32 %v1068, %v1069
  %v1071 = vrot.slane %v1070, 2
  %v1072 = vadd.f32 %v1070, %v1071
  %v1073 = vrot.slane %v1072, 1
  %v1074 = vadd.f32 %v1072, %v1073
  %v1075 = vadd.f32 %v1046, %v1052
  %v1076 = vadd.f32 %v1075, %v1058
  %v1077 = vadd.f32 %v1076, %v1064
  %v1078 = vrot.slane %v1077, 4
  %v1079 = vadd.f32 %v1077, %v1078
  %v1080 = vrot.slane %v1079, 2
  %v1081 = vadd.f32 %v1079, %v1080
  %v1082 = vrot.slane %v1081, 1
  %v1083 = vadd.f32 %v1081, %v1082
  %v1084 = vmul.f32 %v1074, %v291
  %v1085 = vmul.f32 %v1083, %v291
  %v1086 = vsub.f32 %v1044, %v1084
  %v1087 = vsub.f32 %v1046, %v1085
  %v1088 = vsub.f32 %v1050, %v1084
  %v1089 = vsub.f32 %v1052, %v1085
  %v1090 = vsub.f32 %v1056, %v1084
  %v1091 = vsub.f32 %v1058, %v1085
  %v1092 = vsub.f32 %v1062, %v1084
  %v1093 = vsub.f32 %v1064, %v1085
  %v1094 = vmul.f32 %v1086, %v1086
  %v1095 = vmul.f32 %v1087, %v1087
  %v1096 = vmul.f32 %v1088, %v1088
  %v1097 = vmul.f32 %v1089, %v1089
  %v1098 = vmul.f32 %v1090, %v1090
  %v1099 = vmul.f32 %v1091, %v1091
  %v1100 = vmul.f32 %v1092, %v1092
  %v1101 = vmul.f32 %v1093, %v1093
  %v1102 = vadd.f32 %v1094, %v1096
  %v1103 = vadd.f32 %v1102, %v1098
  %v1104 = vadd.f32 %v1103, %v1100
  %v1105 = vrot.slane %v1104, 4
  %v1106 = vadd.f32 %v1104, %v1105
  %v1107 = vrot.slane %v1106, 2
  %v1108 = vadd.f32 %v1106, %v1107
  %v1109 = vrot.slane %v1108, 1
  %v1110 = vadd.f32 %v1108, %v1109
  %v1111 = vadd.f32 %v1095, %v1097
  %v1112 = vadd.f32 %v1111, %v1099
  %v1113 = vadd.f32 %v1112, %v1101
  %v1114 = vrot.slane %v1113, 4
  %v1115 = vadd.f32 %v1113, %v1114
  %v1116 = vrot.slane %v1115, 2
  %v1117 = vadd.f32 %v1115, %v1116
  %v1118 = vrot.slane %v1117, 1
  %v1119 = vadd.f32 %v1117, %v1118
  %v1120 = vmul.f32 %v1110, %v291
  %v1121 = vmul.f32 %v1119, %v291
  %v1122 = vadd.f32 %v1120, 1e-05
  %v1123 = vadd.f32 %v1121, 1e-05
  %v1124 = vrsqrt.pop %v1122
  %v1125 = vrsqrt.pop %v1123
  %v1126 = vmul.f32 %v1086, %v1124
  %v1127 = vmul.f32 %v1087, %v1125
  %v1128 = vmul.f32 %v1088, %v1124
  %v1129 = vmul.f32 %v1089, %v1125
  %v1130 = vmul.f32 %v1090, %v1124
  %v1131 = vmul.f32 %v1091, %v1125
  %v1132 = vmul.f32 %v1092, %v1124
  %v1133 = vmul.f32 %v1093, %v1125
  %1134 = vset.pattern.permute.xlu0 4
  %1135 = vperm.xlu0 %1134, %v729
  %v1136 = vpop.permute.xlu0 %1135
  %1138 = vset.pattern.permute.xlu0 4
  %1139 = vperm.xlu0 %1138, %v730
  %v1140 = vpop.permute.xlu0 %1139
  %1142 = vset.pattern.permute.xlu0 4
  %1143 = vperm.xlu0 %1142, %v731
  %v1144 = vpop.permute.xlu0 %1143
  %1146 = vset.pattern.permute.xlu0 4
  %1147 = vperm.xlu0 %1146, %v732
  %v1148 = vpop.permute.xlu0 %1147
  %v1150 = vmul.f32 %v1126, %v1136
  %v1151 = vmul.f32 %v1127, %v1136
  %v1152 = vmul.f32 %v1128, %v1140
  %v1153 = vmul.f32 %v1129, %v1140
  %v1154 = vmul.f32 %v1130, %v1144
  %v1155 = vmul.f32 %v1131, %v1144
  %v1156 = vmul.f32 %v1132, %v1148
  %v1157 = vmul.f32 %v1133, %v1148
  %1158 = vset.pattern.permute.xlu0 5
  %1159 = vperm.xlu0 %1158, %v729
  %v1160 = vpop.permute.xlu0 %1159
  %1162 = vset.pattern.permute.xlu0 5
  %1163 = vperm.xlu0 %1162, %v730
  %v1164 = vpop.permute.xlu0 %1163
  %1166 = vset.pattern.permute.xlu0 5
  %1167 = vperm.xlu0 %1166, %v731
  %v1168 = vpop.permute.xlu0 %1167
  %1170 = vset.pattern.permute.xlu0 5
  %1171 = vperm.xlu0 %1170, %v732
  %v1172 = vpop.permute.xlu0 %1171
  %v1174 = vadd.f32 %v1150, %v1160
  %v1175 = vadd.f32 %v1151, %v1160
  %v1176 = vadd.f32 %v1152, %v1164
  %v1177 = vadd.f32 %v1153, %v1164
  %v1178 = vadd.f32 %v1154, %v1168
  %v1179 = vadd.f32 %v1155, %v1168
  %v1180 = vadd.f32 %v1156, %v1172
  %v1181 = vadd.f32 %v1157, %v1172
  %v1182 = vmax.f32 %v1174, 0.0
  %v1183 = vmax.f32 %v1175, 0.0
  %v1184 = vmax.f32 %v1176, 0.0
  %v1185 = vmax.f32 %v1177, 0.0
  %v1186 = vmax.f32 %v1178, 0.0
  %v1187 = vmax.f32 %v1179, 0.0
  %v1188 = vmax.f32 %v1180, 0.0
  %v1189 = vmax.f32 %v1181, 0.0
  %v1190 = vld [vmem:[%s19] sm:$0xff]
  %v1191 = vld [vmem:[%s21] sm:$0xff]
  %1193 = vset.pattern.permute.xlu0 0
  %1194 = vperm.xlu0 %1193, %v1191
  %v1195 = vpop.permute.xlu0 %1194
  %v1198 = vsel %vm418, %v1190, 0
  %1200 = vmatprep.subr.mxu0 0.0
  %1201 = vmatpush1.msra.mxu0 0.0
  %1202 = vmatprep.subr.mxu0 0.0
  %1203 = vmatpush1.msra.mxu0 0.0
  %1204 = vmatprep.subr.mxu0 0.0
  %1205 = vmatpush1.msra.mxu0 0.0
  %1206 = vmatprep.subr.mxu0 0.0
  %1207 = vmatpush1.msra.mxu0 0.0
  %1208 = vmatprep.subr.mxu0 0.0
  %1209 = vmatpush1.msra.mxu0 0.0
  %1210 = vmatprep.subr.mxu0 0.0
  %1211 = vmatpush1.msra.mxu0 0.0
  %1212 = vmatprep.subr.mxu0 0.0
  %1213 = vmatpush1.msra.mxu0 0.0
  %1214 = vmatprep.subr.mxu0 0.0
  %1215 = vmatpush1.msra.mxu0 0.0
  %1216 = vmatprep.subr.mxu0 0.0
  %1217 = vmatpush1.msra.mxu0 0.0
  %1218 = vmatprep.subr.mxu0 0.0
  %1219 = vmatpush1.msra.mxu0 0.0
  %1220 = vmatprep.subr.mxu0 0.0
  %1221 = vmatpush1.msra.mxu0 0.0
  %1222 = vmatprep.subr.mxu0 0.0
  %1223 = vmatpush1.msra.mxu0 0.0
  %1224 = vmatprep.subr.mxu0 %v1189
  %1225 = vmatpush1.msra.mxu0 %v1188
  %1226 = vmatprep.subr.mxu0 %v1187
  %1227 = vmatpush1.msra.mxu0 %v1186
  %1228 = vmatprep.subr.mxu0 %v1185
  %1229 = vmatpush1.msra.mxu0 %v1184
  %1230 = vmatprep.subr.mxu0 %v1183
  %1231 = vmatpush1.msra.mxu0 %v1182
  %1232 = vmatprep.subr.mxu0 0.0
  %1233 = vmatpush2.msra.mxu0 0.0
  %1234 = vmatprep.subr.mxu0 0.0
  %1235 = vmatpush2.msra.mxu0 0.0
  %1236 = vmatprep.subr.mxu0 0.0
  %1237 = vmatpush2.msra.mxu0 0.0
  %1238 = vmatprep.subr.mxu0 0.0
  %1239 = vmatpush2.msra.mxu0 0.0
  %1240 = vmatprep.subr.mxu0 0.0
  %1241 = vmatpush2.msra.mxu0 0.0
  %1242 = vmatprep.subr.mxu0 0.0
  %1243 = vmatpush2.msra.mxu0 0.0
  %1244 = vmatprep.subr.mxu0 0.0
  %1245 = vmatpush2.msra.mxu0 0.0
  %1246 = vmatprep.subr.mxu0 0.0
  %1247 = vmatpush2.msra.mxu0 0.0
  %1248 = vmatprep.subr.mxu0 0.0
  %1249 = vmatpush2.msra.mxu0 0.0
  %1250 = vmatprep.subr.mxu0 0.0
  %1251 = vmatpush2.msra.mxu0 0.0
  %1252 = vmatprep.subr.mxu0 0.0
  %1253 = vmatpush2.msra.mxu0 0.0
  %1254 = vmatprep.subr.mxu0 0.0
  %1255 = vmatpush2.msra.mxu0 0.0
  %1256 = vmatprep.subr.mxu0 0.0
  %1257 = vmatpush2.msra.mxu0 0.0
  %1258 = vmatprep.subr.mxu0 0.0
  %1259 = vmatpush2.msra.mxu0 0.0
  %1260 = vmatprep.subr.mxu0 0.0
  %1261 = vmatpush2.msra.mxu0 0.0
  %1262 = vmatprep.subr.mxu0 0.0
  %1263 = vmatpush2.msra.mxu0 0.0
  %1264 = vmatprep.mubr.f32.mxu0 0.0
  %1265 = vmatmul.mubr.f32.gmra.mxu0 %v1198
  %v1266 = vpop.f32.mrf.mxu0
  %v1267 = vadd.f32 %v1195, %v1266
  %v1268 = vpop.f32.mrf.mxu0
  %v1269 = vadd.f32 %v1195, %v1268
  %1270 = vdwg.mxu0
  %v1271 = vld [vmem:[%s23] sm:$0xff]
  %v1272 = vld [vmem:[%s23 + $0x8] sm:$0xff]
  %v1273 = vld [vmem:[%s23 + $0x10] sm:$0xff]
  %v1274 = vld [vmem:[%s23 + $0x18] sm:$0xff]
  %v1275 = vld [vmem:[%s25] sm:$0xff]
  %v1276 = vld [vmem:[%s25 + $0x8] sm:$0xff]
  %v1277 = vld [vmem:[%s25 + $0x10] sm:$0xff]
  %v1278 = vld [vmem:[%s25 + $0x18] sm:$0xff]
  %1280 = vset.pattern.permute.xlu0 0
  %1281 = vperm.xlu0 %1280, %v1271
  %v1282 = vpop.permute.xlu0 %1281
  %1285 = vset.pattern.permute.xlu0 0
  %1286 = vperm.xlu0 %1285, %v1272
  %v1287 = vpop.permute.xlu0 %1286
  %1290 = vset.pattern.permute.xlu0 0
  %1291 = vperm.xlu0 %1290, %v1273
  %v1292 = vpop.permute.xlu0 %1291
  %1295 = vset.pattern.permute.xlu0 0
  %1296 = vperm.xlu0 %1295, %v1274
  %v1297 = vpop.permute.xlu0 %1296
  %v1299 = vmul.f32 %v1282, %v182
  %v1300 = vmul.f32 %v1282, %v186
  %v1301 = vmul.f32 %v1287, %v182
  %v1302 = vmul.f32 %v1287, %v186
  %v1303 = vmul.f32 %v1292, %v182
  %v1304 = vmul.f32 %v1292, %v186
  %v1305 = vmul.f32 %v1297, %v182
  %v1306 = vmul.f32 %v1297, %v186
  %1308 = vset.pattern.permute.xlu0 0
  %1309 = vperm.xlu0 %1308, %v1275
  %v1310 = vpop.permute.xlu0 %1309
  %1313 = vset.pattern.permute.xlu0 0
  %1314 = vperm.xlu0 %1313, %v1276
  %v1315 = vpop.permute.xlu0 %1314
  %1318 = vset.pattern.permute.xlu0 0
  %1319 = vperm.xlu0 %1318, %v1277
  %v1320 = vpop.permute.xlu0 %1319
  %1323 = vset.pattern.permute.xlu0 0
  %1324 = vperm.xlu0 %1323, %v1278
  %v1325 = vpop.permute.xlu0 %1324
  %v1327 = vadd.f32 %v1310, %v1299
  %v1328 = vadd.f32 %v1310, %v1300
  %v1329 = vadd.f32 %v1315, %v1301
  %v1330 = vadd.f32 %v1315, %v1302
  %v1331 = vadd.f32 %v1320, %v1303
  %v1332 = vadd.f32 %v1320, %v1304
  %v1333 = vadd.f32 %v1325, %v1305
  %v1334 = vadd.f32 %v1325, %v1306
  %1335 = vset.pattern.permute.xlu0 1
  %1336 = vperm.xlu0 %1335, %v1271
  %v1337 = vpop.permute.xlu0 %1336
  %1339 = vset.pattern.permute.xlu0 1
  %1340 = vperm.xlu0 %1339, %v1272
  %v1341 = vpop.permute.xlu0 %1340
  %1343 = vset.pattern.permute.xlu0 1
  %1344 = vperm.xlu0 %1343, %v1273
  %v1345 = vpop.permute.xlu0 %1344
  %1347 = vset.pattern.permute.xlu0 1
  %1348 = vperm.xlu0 %1347, %v1274
  %v1349 = vpop.permute.xlu0 %1348
  %v1351 = vmul.f32 %v1337, %v252
  %v1352 = vmul.f32 %v1337, %v256
  %v1353 = vmul.f32 %v1341, %v252
  %v1354 = vmul.f32 %v1341, %v256
  %v1355 = vmul.f32 %v1345, %v252
  %v1356 = vmul.f32 %v1345, %v256
  %v1357 = vmul.f32 %v1349, %v252
  %v1358 = vmul.f32 %v1349, %v256
  %v1359 = vadd.f32 %v1327, %v1351
  %v1360 = vadd.f32 %v1328, %v1352
  %v1361 = vadd.f32 %v1329, %v1353
  %v1362 = vadd.f32 %v1330, %v1354
  %v1363 = vadd.f32 %v1331, %v1355
  %v1364 = vadd.f32 %v1332, %v1356
  %v1365 = vadd.f32 %v1333, %v1357
  %v1366 = vadd.f32 %v1334, %v1358
  %v1367 = vadd.f32 %v1359, %v1361
  %v1368 = vadd.f32 %v1367, %v1363
  %v1369 = vadd.f32 %v1368, %v1365
  %v1370 = vrot.slane %v1369, 4
  %v1371 = vadd.f32 %v1369, %v1370
  %v1372 = vrot.slane %v1371, 2
  %v1373 = vadd.f32 %v1371, %v1372
  %v1374 = vrot.slane %v1373, 1
  %v1375 = vadd.f32 %v1373, %v1374
  %v1376 = vadd.f32 %v1360, %v1362
  %v1377 = vadd.f32 %v1376, %v1364
  %v1378 = vadd.f32 %v1377, %v1366
  %v1379 = vrot.slane %v1378, 4
  %v1380 = vadd.f32 %v1378, %v1379
  %v1381 = vrot.slane %v1380, 2
  %v1382 = vadd.f32 %v1380, %v1381
  %v1383 = vrot.slane %v1382, 1
  %v1384 = vadd.f32 %v1382, %v1383
  %v1385 = vmul.f32 %v1375, %v291
  %v1386 = vmul.f32 %v1384, %v291
  %v1387 = vsub.f32 %v1359, %v1385
  %v1388 = vsub.f32 %v1360, %v1386
  %v1389 = vsub.f32 %v1361, %v1385
  %v1390 = vsub.f32 %v1362, %v1386
  %v1391 = vsub.f32 %v1363, %v1385
  %v1392 = vsub.f32 %v1364, %v1386
  %v1393 = vsub.f32 %v1365, %v1385
  %v1394 = vsub.f32 %v1366, %v1386
  %v1395 = vmul.f32 %v1387, %v1387
  %v1396 = vmul.f32 %v1388, %v1388
  %v1397 = vmul.f32 %v1389, %v1389
  %v1398 = vmul.f32 %v1390, %v1390
  %v1399 = vmul.f32 %v1391, %v1391
  %v1400 = vmul.f32 %v1392, %v1392
  %v1401 = vmul.f32 %v1393, %v1393
  %v1402 = vmul.f32 %v1394, %v1394
  %v1403 = vadd.f32 %v1395, %v1397
  %v1404 = vadd.f32 %v1403, %v1399
  %v1405 = vadd.f32 %v1404, %v1401
  %v1406 = vrot.slane %v1405, 4
  %v1407 = vadd.f32 %v1405, %v1406
  %v1408 = vrot.slane %v1407, 2
  %v1409 = vadd.f32 %v1407, %v1408
  %v1410 = vrot.slane %v1409, 1
  %v1411 = vadd.f32 %v1409, %v1410
  %v1412 = vadd.f32 %v1396, %v1398
  %v1413 = vadd.f32 %v1412, %v1400
  %v1414 = vadd.f32 %v1413, %v1402
  %v1415 = vrot.slane %v1414, 4
  %v1416 = vadd.f32 %v1414, %v1415
  %v1417 = vrot.slane %v1416, 2
  %v1418 = vadd.f32 %v1416, %v1417
  %v1419 = vrot.slane %v1418, 1
  %v1420 = vadd.f32 %v1418, %v1419
  %v1421 = vmul.f32 %v1411, %v291
  %v1422 = vmul.f32 %v1420, %v291
  %v1423 = vadd.f32 %v1421, 1e-05
  %v1424 = vadd.f32 %v1422, 1e-05
  %v1425 = vrsqrt.pop %v1423
  %v1426 = vrsqrt.pop %v1424
  %v1427 = vmul.f32 %v1387, %v1425
  %v1428 = vmul.f32 %v1388, %v1426
  %v1429 = vmul.f32 %v1389, %v1425
  %v1430 = vmul.f32 %v1390, %v1426
  %v1431 = vmul.f32 %v1391, %v1425
  %v1432 = vmul.f32 %v1392, %v1426
  %v1433 = vmul.f32 %v1393, %v1425
  %v1434 = vmul.f32 %v1394, %v1426
  %1435 = vset.pattern.permute.xlu0 1
  %1436 = vperm.xlu0 %1435, %v1275
  %v1437 = vpop.permute.xlu0 %1436
  %1439 = vset.pattern.permute.xlu0 1
  %1440 = vperm.xlu0 %1439, %v1276
  %v1441 = vpop.permute.xlu0 %1440
  %1443 = vset.pattern.permute.xlu0 1
  %1444 = vperm.xlu0 %1443, %v1277
  %v1445 = vpop.permute.xlu0 %1444
  %1447 = vset.pattern.permute.xlu0 1
  %1448 = vperm.xlu0 %1447, %v1278
  %v1449 = vpop.permute.xlu0 %1448
  %v1451 = vmul.f32 %v1427, %v1437
  %v1452 = vmul.f32 %v1428, %v1437
  %v1453 = vmul.f32 %v1429, %v1441
  %v1454 = vmul.f32 %v1430, %v1441
  %v1455 = vmul.f32 %v1431, %v1445
  %v1456 = vmul.f32 %v1432, %v1445
  %v1457 = vmul.f32 %v1433, %v1449
  %v1458 = vmul.f32 %v1434, %v1449
  %1459 = vset.pattern.permute.xlu0 2
  %1460 = vperm.xlu0 %1459, %v1275
  %v1461 = vpop.permute.xlu0 %1460
  %1463 = vset.pattern.permute.xlu0 2
  %1464 = vperm.xlu0 %1463, %v1276
  %v1465 = vpop.permute.xlu0 %1464
  %1467 = vset.pattern.permute.xlu0 2
  %1468 = vperm.xlu0 %1467, %v1277
  %v1469 = vpop.permute.xlu0 %1468
  %1471 = vset.pattern.permute.xlu0 2
  %1472 = vperm.xlu0 %1471, %v1278
  %v1473 = vpop.permute.xlu0 %1472
  %v1475 = vadd.f32 %v1451, %v1461
  %v1476 = vadd.f32 %v1452, %v1461
  %v1477 = vadd.f32 %v1453, %v1465
  %v1478 = vadd.f32 %v1454, %v1465
  %v1479 = vadd.f32 %v1455, %v1469
  %v1480 = vadd.f32 %v1456, %v1469
  %v1481 = vadd.f32 %v1457, %v1473
  %v1482 = vadd.f32 %v1458, %v1473
  %v1483 = vmax.f32 %v1475, 0.0
  %v1484 = vmax.f32 %v1476, 0.0
  %v1485 = vmax.f32 %v1477, 0.0
  %v1486 = vmax.f32 %v1478, 0.0
  %v1487 = vmax.f32 %v1479, 0.0
  %v1488 = vmax.f32 %v1480, 0.0
  %v1489 = vmax.f32 %v1481, 0.0
  %v1490 = vmax.f32 %v1482, 0.0
  %v1491 = vld [vmem:[%s27] sm:$0xff]
  %v1492 = vld [vmem:[%s27 + $0x8] sm:$0xff]
  %v1493 = vld [vmem:[%s27 + $0x10] sm:$0xff]
  %v1494 = vld [vmem:[%s27 + $0x18] sm:$0xff]
  %1495 = vset.pattern.permute.xlu0 3
  %1496 = vperm.xlu0 %1495, %v1275
  %v1497 = vpop.permute.xlu0 %1496
  %1499 = vset.pattern.permute.xlu0 3
  %1500 = vperm.xlu0 %1499, %v1276
  %v1501 = vpop.permute.xlu0 %1500
  %1503 = vset.pattern.permute.xlu0 3
  %1504 = vperm.xlu0 %1503, %v1277
  %v1505 = vpop.permute.xlu0 %1504
  %1507 = vset.pattern.permute.xlu0 3
  %1508 = vperm.xlu0 %1507, %v1278
  %v1509 = vpop.permute.xlu0 %1508
  %v1512 = vsel %vm418, %v1491, 0
  %v1515 = vsel %vm418, %v1492, 0
  %v1518 = vsel %vm418, %v1493, 0
  %v1521 = vsel %vm418, %v1494, 0
  %1523 = vmatprep.subr.mxu0 0.0
  %1524 = vmatpush1.msra.mxu0 0.0
  %1525 = vmatprep.subr.mxu0 0.0
  %1526 = vmatpush1.msra.mxu0 0.0
  %1527 = vmatprep.subr.mxu0 0.0
  %1528 = vmatpush1.msra.mxu0 0.0
  %1529 = vmatprep.subr.mxu0 0.0
  %1530 = vmatpush1.msra.mxu0 0.0
  %1531 = vmatprep.subr.mxu0 0.0
  %1532 = vmatpush1.msra.mxu0 0.0
  %1533 = vmatprep.subr.mxu0 0.0
  %1534 = vmatpush1.msra.mxu0 0.0
  %1535 = vmatprep.subr.mxu0 0.0
  %1536 = vmatpush1.msra.mxu0 0.0
  %1537 = vmatprep.subr.mxu0 0.0
  %1538 = vmatpush1.msra.mxu0 0.0
  %1539 = vmatprep.subr.mxu0 0.0
  %1540 = vmatpush1.msra.mxu0 0.0
  %1541 = vmatprep.subr.mxu0 0.0
  %1542 = vmatpush1.msra.mxu0 0.0
  %1543 = vmatprep.subr.mxu0 0.0
  %1544 = vmatpush1.msra.mxu0 0.0
  %1545 = vmatprep.subr.mxu0 0.0
  %1546 = vmatpush1.msra.mxu0 0.0
  %1547 = vmatprep.subr.mxu0 %v1490
  %1548 = vmatpush1.msra.mxu0 %v1489
  %1549 = vmatprep.subr.mxu0 %v1488
  %1550 = vmatpush1.msra.mxu0 %v1487
  %1551 = vmatprep.subr.mxu0 %v1486
  %1552 = vmatpush1.msra.mxu0 %v1485
  %1553 = vmatprep.subr.mxu0 %v1484
  %1554 = vmatpush1.msra.mxu0 %v1483
  %1555 = vmatprep.subr.mxu0 0.0
  %1556 = vmatpush2.msra.mxu0 0.0
  %1557 = vmatprep.subr.mxu0 0.0
  %1558 = vmatpush2.msra.mxu0 0.0
  %1559 = vmatprep.subr.mxu0 0.0
  %1560 = vmatpush2.msra.mxu0 0.0
  %1561 = vmatprep.subr.mxu0 0.0
  %1562 = vmatpush2.msra.mxu0 0.0
  %1563 = vmatprep.subr.mxu0 0.0
  %1564 = vmatpush2.msra.mxu0 0.0
  %1565 = vmatprep.subr.mxu0 0.0
  %1566 = vmatpush2.msra.mxu0 0.0
  %1567 = vmatprep.subr.mxu0 0.0
  %1568 = vmatpush2.msra.mxu0 0.0
  %1569 = vmatprep.subr.mxu0 0.0
  %1570 = vmatpush2.msra.mxu0 0.0
  %1571 = vmatprep.subr.mxu0 0.0
  %1572 = vmatpush2.msra.mxu0 0.0
  %1573 = vmatprep.subr.mxu0 0.0
  %1574 = vmatpush2.msra.mxu0 0.0
  %1575 = vmatprep.subr.mxu0 0.0
  %1576 = vmatpush2.msra.mxu0 0.0
  %1577 = vmatprep.subr.mxu0 0.0
  %1578 = vmatpush2.msra.mxu0 0.0
  %1579 = vmatprep.subr.mxu0 0.0
  %1580 = vmatpush2.msra.mxu0 0.0
  %1581 = vmatprep.subr.mxu0 0.0
  %1582 = vmatpush2.msra.mxu0 0.0
  %1583 = vmatprep.subr.mxu0 0.0
  %1584 = vmatpush2.msra.mxu0 0.0
  %1585 = vmatprep.subr.mxu0 0.0
  %1586 = vmatpush2.msra.mxu0 0.0
  %1587 = vmatprep.mubr.f32.mxu0 0.0
  %1588 = vmatmul.mubr.f32.gmra.mxu0 %v1512
  %v1589 = vpop.f32.mrf.mxu0
  %v1590 = vadd.f32 %v1497, %v1589
  %v1591 = vpop.f32.mrf.mxu0
  %v1592 = vadd.f32 %v1497, %v1591
  %1593 = vmatprep.mubr.f32.mxu0 0.0
  %1594 = vmatmul.mubr.f32.gmra.mxu0 %v1515
  %v1595 = vpop.f32.mrf.mxu0
  %v1596 = vadd.f32 %v1501, %v1595
  %v1597 = vpop.f32.mrf.mxu0
  %v1598 = vadd.f32 %v1501, %v1597
  %1599 = vmatprep.mubr.f32.mxu0 0.0
  %1600 = vmatmul.mubr.f32.gmra.mxu0 %v1518
  %v1601 = vpop.f32.mrf.mxu0
  %v1602 = vadd.f32 %v1505, %v1601
  %v1603 = vpop.f32.mrf.mxu0
  %v1604 = vadd.f32 %v1505, %v1603
  %1605 = vmatprep.mubr.f32.mxu0 0.0
  %1606 = vmatmul.mubr.f32.gmra.mxu0 %v1521
  %v1607 = vpop.f32.mrf.mxu0
  %v1608 = vadd.f32 %v1509, %v1607
  %v1609 = vpop.f32.mrf.mxu0
  %v1610 = vadd.f32 %v1509, %v1609
  %1611 = vdwg.mxu0
  %v1612 = vadd.f32 %v1590, %v1596
  %v1613 = vadd.f32 %v1612, %v1602
  %v1614 = vadd.f32 %v1613, %v1608
  %v1615 = vrot.slane %v1614, 4
  %v1616 = vadd.f32 %v1614, %v1615
  %v1617 = vrot.slane %v1616, 2
  %v1618 = vadd.f32 %v1616, %v1617
  %v1619 = vrot.slane %v1618, 1
  %v1620 = vadd.f32 %v1618, %v1619
  %v1621 = vadd.f32 %v1592, %v1598
  %v1622 = vadd.f32 %v1621, %v1604
  %v1623 = vadd.f32 %v1622, %v1610
  %v1624 = vrot.slane %v1623, 4
  %v1625 = vadd.f32 %v1623, %v1624
  %v1626 = vrot.slane %v1625, 2
  %v1627 = vadd.f32 %v1625, %v1626
  %v1628 = vrot.slane %v1627, 1
  %v1629 = vadd.f32 %v1627, %v1628
  %v1630 = vmul.f32 %v1620, %v291
  %v1631 = vmul.f32 %v1629, %v291
  %v1632 = vsub.f32 %v1590, %v1630
  %v1633 = vsub.f32 %v1592, %v1631
  %v1634 = vsub.f32 %v1596, %v1630
  %v1635 = vsub.f32 %v1598, %v1631
  %v1636 = vsub.f32 %v1602, %v1630
  %v1637 = vsub.f32 %v1604, %v1631
  %v1638 = vsub.f32 %v1608, %v1630
  %v1639 = vsub.f32 %v1610, %v1631
  %v1640 = vmul.f32 %v1632, %v1632
  %v1641 = vmul.f32 %v1633, %v1633
  %v1642 = vmul.f32 %v1634, %v1634
  %v1643 = vmul.f32 %v1635, %v1635
  %v1644 = vmul.f32 %v1636, %v1636
  %v1645 = vmul.f32 %v1637, %v1637
  %v1646 = vmul.f32 %v1638, %v1638
  %v1647 = vmul.f32 %v1639, %v1639
  %v1648 = vadd.f32 %v1640, %v1642
  %v1649 = vadd.f32 %v1648, %v1644
  %v1650 = vadd.f32 %v1649, %v1646
  %v1651 = vrot.slane %v1650, 4
  %v1652 = vadd.f32 %v1650, %v1651
  %v1653 = vrot.slane %v1652, 2
  %v1654 = vadd.f32 %v1652, %v1653
  %v1655 = vrot.slane %v1654, 1
  %v1656 = vadd.f32 %v1654, %v1655
  %v1657 = vadd.f32 %v1641, %v1643
  %v1658 = vadd.f32 %v1657, %v1645
  %v1659 = vadd.f32 %v1658, %v1647
  %v1660 = vrot.slane %v1659, 4
  %v1661 = vadd.f32 %v1659, %v1660
  %v1662 = vrot.slane %v1661, 2
  %v1663 = vadd.f32 %v1661, %v1662
  %v1664 = vrot.slane %v1663, 1
  %v1665 = vadd.f32 %v1663, %v1664
  %v1666 = vmul.f32 %v1656, %v291
  %v1667 = vmul.f32 %v1665, %v291
  %v1668 = vadd.f32 %v1666, 1e-05
  %v1669 = vadd.f32 %v1667, 1e-05
  %v1670 = vrsqrt.pop %v1668
  %v1671 = vrsqrt.pop %v1669
  %v1672 = vmul.f32 %v1632, %v1670
  %v1673 = vmul.f32 %v1633, %v1671
  %v1674 = vmul.f32 %v1634, %v1670
  %v1675 = vmul.f32 %v1635, %v1671
  %v1676 = vmul.f32 %v1636, %v1670
  %v1677 = vmul.f32 %v1637, %v1671
  %v1678 = vmul.f32 %v1638, %v1670
  %v1679 = vmul.f32 %v1639, %v1671
  %1680 = vset.pattern.permute.xlu0 4
  %1681 = vperm.xlu0 %1680, %v1275
  %v1682 = vpop.permute.xlu0 %1681
  %1684 = vset.pattern.permute.xlu0 4
  %1685 = vperm.xlu0 %1684, %v1276
  %v1686 = vpop.permute.xlu0 %1685
  %1688 = vset.pattern.permute.xlu0 4
  %1689 = vperm.xlu0 %1688, %v1277
  %v1690 = vpop.permute.xlu0 %1689
  %1692 = vset.pattern.permute.xlu0 4
  %1693 = vperm.xlu0 %1692, %v1278
  %v1694 = vpop.permute.xlu0 %1693
  %v1696 = vmul.f32 %v1672, %v1682
  %v1697 = vmul.f32 %v1673, %v1682
  %v1698 = vmul.f32 %v1674, %v1686
  %v1699 = vmul.f32 %v1675, %v1686
  %v1700 = vmul.f32 %v1676, %v1690
  %v1701 = vmul.f32 %v1677, %v1690
  %v1702 = vmul.f32 %v1678, %v1694
  %v1703 = vmul.f32 %v1679, %v1694
  %1704 = vset.pattern.permute.xlu0 5
  %1705 = vperm.xlu0 %1704, %v1275
  %v1706 = vpop.permute.xlu0 %1705
  %1708 = vset.pattern.permute.xlu0 5
  %1709 = vperm.xlu0 %1708, %v1276
  %v1710 = vpop.permute.xlu0 %1709
  %1712 = vset.pattern.permute.xlu0 5
  %1713 = vperm.xlu0 %1712, %v1277
  %v1714 = vpop.permute.xlu0 %1713
  %1716 = vset.pattern.permute.xlu0 5
  %1717 = vperm.xlu0 %1716, %v1278
  %v1718 = vpop.permute.xlu0 %1717
  %v1720 = vadd.f32 %v1696, %v1706
  %v1721 = vadd.f32 %v1697, %v1706
  %v1722 = vadd.f32 %v1698, %v1710
  %v1723 = vadd.f32 %v1699, %v1710
  %v1724 = vadd.f32 %v1700, %v1714
  %v1725 = vadd.f32 %v1701, %v1714
  %v1726 = vadd.f32 %v1702, %v1718
  %v1727 = vadd.f32 %v1703, %v1718
  %v1728 = vmax.f32 %v1720, 0.0
  %v1729 = vmax.f32 %v1721, 0.0
  %v1730 = vmax.f32 %v1722, 0.0
  %v1731 = vmax.f32 %v1723, 0.0
  %v1732 = vmax.f32 %v1724, 0.0
  %v1733 = vmax.f32 %v1725, 0.0
  %v1734 = vmax.f32 %v1726, 0.0
  %v1735 = vmax.f32 %v1727, 0.0
  %v1736 = vld [vmem:[%s29] sm:$0xff]
  %v1737 = vld [vmem:[%s31] sm:$0xff]
  %1739 = vset.pattern.permute.xlu0 0
  %1740 = vperm.xlu0 %1739, %v1737
  %v1741 = vpop.permute.xlu0 %1740
  %v1744 = vsel %vm418, %v1736, 0
  %1746 = vmatprep.subr.mxu0 0.0
  %1747 = vmatpush1.msra.mxu0 0.0
  %1748 = vmatprep.subr.mxu0 0.0
  %1749 = vmatpush1.msra.mxu0 0.0
  %1750 = vmatprep.subr.mxu0 0.0
  %1751 = vmatpush1.msra.mxu0 0.0
  %1752 = vmatprep.subr.mxu0 0.0
  %1753 = vmatpush1.msra.mxu0 0.0
  %1754 = vmatprep.subr.mxu0 0.0
  %1755 = vmatpush1.msra.mxu0 0.0
  %1756 = vmatprep.subr.mxu0 0.0
  %1757 = vmatpush1.msra.mxu0 0.0
  %1758 = vmatprep.subr.mxu0 0.0
  %1759 = vmatpush1.msra.mxu0 0.0
  %1760 = vmatprep.subr.mxu0 0.0
  %1761 = vmatpush1.msra.mxu0 0.0
  %1762 = vmatprep.subr.mxu0 0.0
  %1763 = vmatpush1.msra.mxu0 0.0
  %1764 = vmatprep.subr.mxu0 0.0
  %1765 = vmatpush1.msra.mxu0 0.0
  %1766 = vmatprep.subr.mxu0 0.0
  %1767 = vmatpush1.msra.mxu0 0.0
  %1768 = vmatprep.subr.mxu0 0.0
  %1769 = vmatpush1.msra.mxu0 0.0
  %1770 = vmatprep.subr.mxu0 %v1735
  %1771 = vmatpush1.msra.mxu0 %v1734
  %1772 = vmatprep.subr.mxu0 %v1733
  %1773 = vmatpush1.msra.mxu0 %v1732
  %1774 = vmatprep.subr.mxu0 %v1731
  %1775 = vmatpush1.msra.mxu0 %v1730
  %1776 = vmatprep.subr.mxu0 %v1729
  %1777 = vmatpush1.msra.mxu0 %v1728
  %1778 = vmatprep.subr.mxu0 0.0
  %1779 = vmatpush2.msra.mxu0 0.0
  %1780 = vmatprep.subr.mxu0 0.0
  %1781 = vmatpush2.msra.mxu0 0.0
  %1782 = vmatprep.subr.mxu0 0.0
  %1783 = vmatpush2.msra.mxu0 0.0
  %1784 = vmatprep.subr.mxu0 0.0
  %1785 = vmatpush2.msra.mxu0 0.0
  %1786 = vmatprep.subr.mxu0 0.0
  %1787 = vmatpush2.msra.mxu0 0.0
  %1788 = vmatprep.subr.mxu0 0.0
  %1789 = vmatpush2.msra.mxu0 0.0
  %1790 = vmatprep.subr.mxu0 0.0
  %1791 = vmatpush2.msra.mxu0 0.0
  %1792 = vmatprep.subr.mxu0 0.0
  %1793 = vmatpush2.msra.mxu0 0.0
  %1794 = vmatprep.subr.mxu0 0.0
  %1795 = vmatpush2.msra.mxu0 0.0
  %1796 = vmatprep.subr.mxu0 0.0
  %1797 = vmatpush2.msra.mxu0 0.0
  %1798 = vmatprep.subr.mxu0 0.0
  %1799 = vmatpush2.msra.mxu0 0.0
  %1800 = vmatprep.subr.mxu0 0.0
  %1801 = vmatpush2.msra.mxu0 0.0
  %1802 = vmatprep.subr.mxu0 0.0
  %1803 = vmatpush2.msra.mxu0 0.0
  %1804 = vmatprep.subr.mxu0 0.0
  %1805 = vmatpush2.msra.mxu0 0.0
  %1806 = vmatprep.subr.mxu0 0.0
  %1807 = vmatpush2.msra.mxu0 0.0
  %1808 = vmatprep.subr.mxu0 0.0
  %1809 = vmatpush2.msra.mxu0 0.0
  %1810 = vmatprep.mubr.f32.mxu0 0.0
  %1811 = vmatmul.mubr.f32.gmra.mxu0 %v1744
  %v1812 = vpop.f32.mrf.mxu0
  %v1813 = vadd.f32 %v1741, %v1812
  %v1814 = vpop.f32.mrf.mxu0
  %v1815 = vadd.f32 %v1741, %v1814
  %1816 = vdwg.mxu0
  %v1817 = vld [vmem:[%s33] sm:$0xff]
  %v1818 = vld [vmem:[%s33 + $0x8] sm:$0xff]
  %v1819 = vld [vmem:[%s33 + $0x10] sm:$0xff]
  %v1820 = vld [vmem:[%s33 + $0x18] sm:$0xff]
  %v1821 = vld [vmem:[%s35] sm:$0xff]
  %v1822 = vld [vmem:[%s35 + $0x8] sm:$0xff]
  %v1823 = vld [vmem:[%s35 + $0x10] sm:$0xff]
  %v1824 = vld [vmem:[%s35 + $0x18] sm:$0xff]
  %1826 = vset.pattern.permute.xlu0 0
  %1827 = vperm.xlu0 %1826, %v1817
  %v1828 = vpop.permute.xlu0 %1827
  %1831 = vset.pattern.permute.xlu0 0
  %1832 = vperm.xlu0 %1831, %v1818
  %v1833 = vpop.permute.xlu0 %1832
  %1836 = vset.pattern.permute.xlu0 0
  %1837 = vperm.xlu0 %1836, %v1819
  %v1838 = vpop.permute.xlu0 %1837
  %1841 = vset.pattern.permute.xlu0 0
  %1842 = vperm.xlu0 %1841, %v1820
  %v1843 = vpop.permute.xlu0 %1842
  %v1845 = vmul.f32 %v1828, %v182
  %v1846 = vmul.f32 %v1828, %v186
  %v1847 = vmul.f32 %v1833, %v182
  %v1848 = vmul.f32 %v1833, %v186
  %v1849 = vmul.f32 %v1838, %v182
  %v1850 = vmul.f32 %v1838, %v186
  %v1851 = vmul.f32 %v1843, %v182
  %v1852 = vmul.f32 %v1843, %v186
  %1854 = vset.pattern.permute.xlu0 0
  %1855 = vperm.xlu0 %1854, %v1821
  %v1856 = vpop.permute.xlu0 %1855
  %1859 = vset.pattern.permute.xlu0 0
  %1860 = vperm.xlu0 %1859, %v1822
  %v1861 = vpop.permute.xlu0 %1860
  %1864 = vset.pattern.permute.xlu0 0
  %1865 = vperm.xlu0 %1864, %v1823
  %v1866 = vpop.permute.xlu0 %1865
  %1869 = vset.pattern.permute.xlu0 0
  %1870 = vperm.xlu0 %1869, %v1824
  %v1871 = vpop.permute.xlu0 %1870
  %v1873 = vadd.f32 %v1856, %v1845
  %v1874 = vadd.f32 %v1856, %v1846
  %v1875 = vadd.f32 %v1861, %v1847
  %v1876 = vadd.f32 %v1861, %v1848
  %v1877 = vadd.f32 %v1866, %v1849
  %v1878 = vadd.f32 %v1866, %v1850
  %v1879 = vadd.f32 %v1871, %v1851
  %v1880 = vadd.f32 %v1871, %v1852
  %1881 = vset.pattern.permute.xlu0 1
  %1882 = vperm.xlu0 %1881, %v1817
  %v1883 = vpop.permute.xlu0 %1882
  %1885 = vset.pattern.permute.xlu0 1
  %1886 = vperm.xlu0 %1885, %v1818
  %v1887 = vpop.permute.xlu0 %1886
  %1889 = vset.pattern.permute.xlu0 1
  %1890 = vperm.xlu0 %1889, %v1819
  %v1891 = vpop.permute.xlu0 %1890
  %1893 = vset.pattern.permute.xlu0 1
  %1894 = vperm.xlu0 %1893, %v1820
  %v1895 = vpop.permute.xlu0 %1894
  %v1897 = vmul.f32 %v1883, %v252
  %v1898 = vmul.f32 %v1883, %v256
  %v1899 = vmul.f32 %v1887, %v252
  %v1900 = vmul.f32 %v1887, %v256
  %v1901 = vmul.f32 %v1891, %v252
  %v1902 = vmul.f32 %v1891, %v256
  %v1903 = vmul.f32 %v1895, %v252
  %v1904 = vmul.f32 %v1895, %v256
  %v1905 = vadd.f32 %v1873, %v1897
  %v1906 = vadd.f32 %v1874, %v1898
  %v1907 = vadd.f32 %v1875, %v1899
  %v1908 = vadd.f32 %v1876, %v1900
  %v1909 = vadd.f32 %v1877, %v1901
  %v1910 = vadd.f32 %v1878, %v1902
  %v1911 = vadd.f32 %v1879, %v1903
  %v1912 = vadd.f32 %v1880, %v1904
  %v1913 = vadd.f32 %v1905, %v1907
  %v1914 = vadd.f32 %v1913, %v1909
  %v1915 = vadd.f32 %v1914, %v1911
  %v1916 = vrot.slane %v1915, 4
  %v1917 = vadd.f32 %v1915, %v1916
  %v1918 = vrot.slane %v1917, 2
  %v1919 = vadd.f32 %v1917, %v1918
  %v1920 = vrot.slane %v1919, 1
  %v1921 = vadd.f32 %v1919, %v1920
  %v1922 = vadd.f32 %v1906, %v1908
  %v1923 = vadd.f32 %v1922, %v1910
  %v1924 = vadd.f32 %v1923, %v1912
  %v1925 = vrot.slane %v1924, 4
  %v1926 = vadd.f32 %v1924, %v1925
  %v1927 = vrot.slane %v1926, 2
  %v1928 = vadd.f32 %v1926, %v1927
  %v1929 = vrot.slane %v1928, 1
  %v1930 = vadd.f32 %v1928, %v1929
  %v1931 = vmul.f32 %v1921, %v291
  %v1932 = vmul.f32 %v1930, %v291
  %v1933 = vsub.f32 %v1905, %v1931
  %v1934 = vsub.f32 %v1906, %v1932
  %v1935 = vsub.f32 %v1907, %v1931
  %v1936 = vsub.f32 %v1908, %v1932
  %v1937 = vsub.f32 %v1909, %v1931
  %v1938 = vsub.f32 %v1910, %v1932
  %v1939 = vsub.f32 %v1911, %v1931
  %v1940 = vsub.f32 %v1912, %v1932
  %v1941 = vmul.f32 %v1933, %v1933
  %v1942 = vmul.f32 %v1934, %v1934
  %v1943 = vmul.f32 %v1935, %v1935
  %v1944 = vmul.f32 %v1936, %v1936
  %v1945 = vmul.f32 %v1937, %v1937
  %v1946 = vmul.f32 %v1938, %v1938
  %v1947 = vmul.f32 %v1939, %v1939
  %v1948 = vmul.f32 %v1940, %v1940
  %v1949 = vadd.f32 %v1941, %v1943
  %v1950 = vadd.f32 %v1949, %v1945
  %v1951 = vadd.f32 %v1950, %v1947
  %v1952 = vrot.slane %v1951, 4
  %v1953 = vadd.f32 %v1951, %v1952
  %v1954 = vrot.slane %v1953, 2
  %v1955 = vadd.f32 %v1953, %v1954
  %v1956 = vrot.slane %v1955, 1
  %v1957 = vadd.f32 %v1955, %v1956
  %v1958 = vadd.f32 %v1942, %v1944
  %v1959 = vadd.f32 %v1958, %v1946
  %v1960 = vadd.f32 %v1959, %v1948
  %v1961 = vrot.slane %v1960, 4
  %v1962 = vadd.f32 %v1960, %v1961
  %v1963 = vrot.slane %v1962, 2
  %v1964 = vadd.f32 %v1962, %v1963
  %v1965 = vrot.slane %v1964, 1
  %v1966 = vadd.f32 %v1964, %v1965
  %v1967 = vmul.f32 %v1957, %v291
  %v1968 = vmul.f32 %v1966, %v291
  %v1969 = vadd.f32 %v1967, 1e-05
  %v1970 = vadd.f32 %v1968, 1e-05
  %v1971 = vrsqrt.pop %v1969
  %v1972 = vrsqrt.pop %v1970
  %v1973 = vmul.f32 %v1933, %v1971
  %v1974 = vmul.f32 %v1934, %v1972
  %v1975 = vmul.f32 %v1935, %v1971
  %v1976 = vmul.f32 %v1936, %v1972
  %v1977 = vmul.f32 %v1937, %v1971
  %v1978 = vmul.f32 %v1938, %v1972
  %v1979 = vmul.f32 %v1939, %v1971
  %v1980 = vmul.f32 %v1940, %v1972
  %1981 = vset.pattern.permute.xlu0 1
  %1982 = vperm.xlu0 %1981, %v1821
  %v1983 = vpop.permute.xlu0 %1982
  %1985 = vset.pattern.permute.xlu0 1
  %1986 = vperm.xlu0 %1985, %v1822
  %v1987 = vpop.permute.xlu0 %1986
  %1989 = vset.pattern.permute.xlu0 1
  %1990 = vperm.xlu0 %1989, %v1823
  %v1991 = vpop.permute.xlu0 %1990
  %1993 = vset.pattern.permute.xlu0 1
  %1994 = vperm.xlu0 %1993, %v1824
  %v1995 = vpop.permute.xlu0 %1994
  %v1997 = vmul.f32 %v1973, %v1983
  %v1998 = vmul.f32 %v1974, %v1983
  %v1999 = vmul.f32 %v1975, %v1987
  %v2000 = vmul.f32 %v1976, %v1987
  %v2001 = vmul.f32 %v1977, %v1991
  %v2002 = vmul.f32 %v1978, %v1991
  %v2003 = vmul.f32 %v1979, %v1995
  %v2004 = vmul.f32 %v1980, %v1995
  %2005 = vset.pattern.permute.xlu0 2
  %2006 = vperm.xlu0 %2005, %v1821
  %v2007 = vpop.permute.xlu0 %2006
  %2009 = vset.pattern.permute.xlu0 2
  %2010 = vperm.xlu0 %2009, %v1822
  %v2011 = vpop.permute.xlu0 %2010
  %2013 = vset.pattern.permute.xlu0 2
  %2014 = vperm.xlu0 %2013, %v1823
  %v2015 = vpop.permute.xlu0 %2014
  %2017 = vset.pattern.permute.xlu0 2
  %2018 = vperm.xlu0 %2017, %v1824
  %v2019 = vpop.permute.xlu0 %2018
  %v2021 = vadd.f32 %v1997, %v2007
  %v2022 = vadd.f32 %v1998, %v2007
  %v2023 = vadd.f32 %v1999, %v2011
  %v2024 = vadd.f32 %v2000, %v2011
  %v2025 = vadd.f32 %v2001, %v2015
  %v2026 = vadd.f32 %v2002, %v2015
  %v2027 = vadd.f32 %v2003, %v2019
  %v2028 = vadd.f32 %v2004, %v2019
  %v2029 = vmax.f32 %v2021, 0.0
  %v2030 = vmax.f32 %v2022, 0.0
  %v2031 = vmax.f32 %v2023, 0.0
  %v2032 = vmax.f32 %v2024, 0.0
  %v2033 = vmax.f32 %v2025, 0.0
  %v2034 = vmax.f32 %v2026, 0.0
  %v2035 = vmax.f32 %v2027, 0.0
  %v2036 = vmax.f32 %v2028, 0.0
  %v2037 = vld [vmem:[%s37] sm:$0xff]
  %v2038 = vld [vmem:[%s37 + $0x8] sm:$0xff]
  %v2039 = vld [vmem:[%s37 + $0x10] sm:$0xff]
  %v2040 = vld [vmem:[%s37 + $0x18] sm:$0xff]
  %2041 = vset.pattern.permute.xlu0 3
  %2042 = vperm.xlu0 %2041, %v1821
  %v2043 = vpop.permute.xlu0 %2042
  %2045 = vset.pattern.permute.xlu0 3
  %2046 = vperm.xlu0 %2045, %v1822
  %v2047 = vpop.permute.xlu0 %2046
  %2049 = vset.pattern.permute.xlu0 3
  %2050 = vperm.xlu0 %2049, %v1823
  %v2051 = vpop.permute.xlu0 %2050
  %2053 = vset.pattern.permute.xlu0 3
  %2054 = vperm.xlu0 %2053, %v1824
  %v2055 = vpop.permute.xlu0 %2054
  %v2058 = vsel %vm418, %v2037, 0
  %v2061 = vsel %vm418, %v2038, 0
  %v2064 = vsel %vm418, %v2039, 0
  %v2067 = vsel %vm418, %v2040, 0
  %2069 = vmatprep.subr.mxu0 0.0
  %2070 = vmatpush1.msra.mxu0 0.0
  %2071 = vmatprep.subr.mxu0 0.0
  %2072 = vmatpush1.msra.mxu0 0.0
  %2073 = vmatprep.subr.mxu0 0.0
  %2074 = vmatpush1.msra.mxu0 0.0
  %2075 = vmatprep.subr.mxu0 0.0
  %2076 = vmatpush1.msra.mxu0 0.0
  %2077 = vmatprep.subr.mxu0 0.0
  %2078 = vmatpush1.msra.mxu0 0.0
  %2079 = vmatprep.subr.mxu0 0.0
  %2080 = vmatpush1.msra.mxu0 0.0
  %2081 = vmatprep.subr.mxu0 0.0
  %2082 = vmatpush1.msra.mxu0 0.0
  %2083 = vmatprep.subr.mxu0 0.0
  %2084 = vmatpush1.msra.mxu0 0.0
  %2085 = vmatprep.subr.mxu0 0.0
  %2086 = vmatpush1.msra.mxu0 0.0
  %2087 = vmatprep.subr.mxu0 0.0
  %2088 = vmatpush1.msra.mxu0 0.0
  %2089 = vmatprep.subr.mxu0 0.0
  %2090 = vmatpush1.msra.mxu0 0.0
  %2091 = vmatprep.subr.mxu0 0.0
  %2092 = vmatpush1.msra.mxu0 0.0
  %2093 = vmatprep.subr.mxu0 %v2036
  %2094 = vmatpush1.msra.mxu0 %v2035
  %2095 = vmatprep.subr.mxu0 %v2034
  %2096 = vmatpush1.msra.mxu0 %v2033
  %2097 = vmatprep.subr.mxu0 %v2032
  %2098 = vmatpush1.msra.mxu0 %v2031
  %2099 = vmatprep.subr.mxu0 %v2030
  %2100 = vmatpush1.msra.mxu0 %v2029
  %2101 = vmatprep.subr.mxu0 0.0
  %2102 = vmatpush2.msra.mxu0 0.0
  %2103 = vmatprep.subr.mxu0 0.0
  %2104 = vmatpush2.msra.mxu0 0.0
  %2105 = vmatprep.subr.mxu0 0.0
  %2106 = vmatpush2.msra.mxu0 0.0
  %2107 = vmatprep.subr.mxu0 0.0
  %2108 = vmatpush2.msra.mxu0 0.0
  %2109 = vmatprep.subr.mxu0 0.0
  %2110 = vmatpush2.msra.mxu0 0.0
  %2111 = vmatprep.subr.mxu0 0.0
  %2112 = vmatpush2.msra.mxu0 0.0
  %2113 = vmatprep.subr.mxu0 0.0
  %2114 = vmatpush2.msra.mxu0 0.0
  %2115 = vmatprep.subr.mxu0 0.0
  %2116 = vmatpush2.msra.mxu0 0.0
  %2117 = vmatprep.subr.mxu0 0.0
  %2118 = vmatpush2.msra.mxu0 0.0
  %2119 = vmatprep.subr.mxu0 0.0
  %2120 = vmatpush2.msra.mxu0 0.0
  %2121 = vmatprep.subr.mxu0 0.0
  %2122 = vmatpush2.msra.mxu0 0.0
  %2123 = vmatprep.subr.mxu0 0.0
  %2124 = vmatpush2.msra.mxu0 0.0
  %2125 = vmatprep.subr.mxu0 0.0
  %2126 = vmatpush2.msra.mxu0 0.0
  %2127 = vmatprep.subr.mxu0 0.0
  %2128 = vmatpush2.msra.mxu0 0.0
  %2129 = vmatprep.subr.mxu0 0.0
  %2130 = vmatpush2.msra.mxu0 0.0
  %2131 = vmatprep.subr.mxu0 0.0
  %2132 = vmatpush2.msra.mxu0 0.0
  %2133 = vmatprep.mubr.f32.mxu0 0.0
  %2134 = vmatmul.mubr.f32.gmra.mxu0 %v2058
  %v2135 = vpop.f32.mrf.mxu0
  %v2136 = vadd.f32 %v2043, %v2135
  %v2137 = vpop.f32.mrf.mxu0
  %v2138 = vadd.f32 %v2043, %v2137
  %2139 = vmatprep.mubr.f32.mxu0 0.0
  %2140 = vmatmul.mubr.f32.gmra.mxu0 %v2061
  %v2141 = vpop.f32.mrf.mxu0
  %v2142 = vadd.f32 %v2047, %v2141
  %v2143 = vpop.f32.mrf.mxu0
  %v2144 = vadd.f32 %v2047, %v2143
  %2145 = vmatprep.mubr.f32.mxu0 0.0
  %2146 = vmatmul.mubr.f32.gmra.mxu0 %v2064
  %v2147 = vpop.f32.mrf.mxu0
  %v2148 = vadd.f32 %v2051, %v2147
  %v2149 = vpop.f32.mrf.mxu0
  %v2150 = vadd.f32 %v2051, %v2149
  %2151 = vmatprep.mubr.f32.mxu0 0.0
  %2152 = vmatmul.mubr.f32.gmra.mxu0 %v2067
  %v2153 = vpop.f32.mrf.mxu0
  %v2154 = vadd.f32 %v2055, %v2153
  %v2155 = vpop.f32.mrf.mxu0
  %v2156 = vadd.f32 %v2055, %v2155
  %2157 = vdwg.mxu0
  %v2158 = vadd.f32 %v2136, %v2142
  %v2159 = vadd.f32 %v2158, %v2148
  %v2160 = vadd.f32 %v2159, %v2154
  %v2161 = vrot.slane %v2160, 4
  %v2162 = vadd.f32 %v2160, %v2161
  %v2163 = vrot.slane %v2162, 2
  %v2164 = vadd.f32 %v2162, %v2163
  %v2165 = vrot.slane %v2164, 1
  %v2166 = vadd.f32 %v2164, %v2165
  %v2167 = vadd.f32 %v2138, %v2144
  %v2168 = vadd.f32 %v2167, %v2150
  %v2169 = vadd.f32 %v2168, %v2156
  %v2170 = vrot.slane %v2169, 4
  %v2171 = vadd.f32 %v2169, %v2170
  %v2172 = vrot.slane %v2171, 2
  %v2173 = vadd.f32 %v2171, %v2172
  %v2174 = vrot.slane %v2173, 1
  %v2175 = vadd.f32 %v2173, %v2174
  %v2176 = vmul.f32 %v2166, %v291
  %v2177 = vmul.f32 %v2175, %v291
  %v2178 = vsub.f32 %v2136, %v2176
  %v2179 = vsub.f32 %v2138, %v2177
  %v2180 = vsub.f32 %v2142, %v2176
  %v2181 = vsub.f32 %v2144, %v2177
  %v2182 = vsub.f32 %v2148, %v2176
  %v2183 = vsub.f32 %v2150, %v2177
  %v2184 = vsub.f32 %v2154, %v2176
  %v2185 = vsub.f32 %v2156, %v2177
  %v2186 = vmul.f32 %v2178, %v2178
  %v2187 = vmul.f32 %v2179, %v2179
  %v2188 = vmul.f32 %v2180, %v2180
  %v2189 = vmul.f32 %v2181, %v2181
  %v2190 = vmul.f32 %v2182, %v2182
  %v2191 = vmul.f32 %v2183, %v2183
  %v2192 = vmul.f32 %v2184, %v2184
  %v2193 = vmul.f32 %v2185, %v2185
  %v2194 = vadd.f32 %v2186, %v2188
  %v2195 = vadd.f32 %v2194, %v2190
  %v2196 = vadd.f32 %v2195, %v2192
  %v2197 = vrot.slane %v2196, 4
  %v2198 = vadd.f32 %v2196, %v2197
  %v2199 = vrot.slane %v2198, 2
  %v2200 = vadd.f32 %v2198, %v2199
  %v2201 = vrot.slane %v2200, 1
  %v2202 = vadd.f32 %v2200, %v2201
  %v2203 = vadd.f32 %v2187, %v2189
  %v2204 = vadd.f32 %v2203, %v2191
  %v2205 = vadd.f32 %v2204, %v2193
  %v2206 = vrot.slane %v2205, 4
  %v2207 = vadd.f32 %v2205, %v2206
  %v2208 = vrot.slane %v2207, 2
  %v2209 = vadd.f32 %v2207, %v2208
  %v2210 = vrot.slane %v2209, 1
  %v2211 = vadd.f32 %v2209, %v2210
  %v2212 = vmul.f32 %v2202, %v291
  %v2213 = vmul.f32 %v2211, %v291
  %v2214 = vadd.f32 %v2212, 1e-05
  %v2215 = vadd.f32 %v2213, 1e-05
  %v2216 = vrsqrt.pop %v2214
  %v2217 = vrsqrt.pop %v2215
  %v2218 = vmul.f32 %v2178, %v2216
  %v2219 = vmul.f32 %v2179, %v2217
  %v2220 = vmul.f32 %v2180, %v2216
  %v2221 = vmul.f32 %v2181, %v2217
  %v2222 = vmul.f32 %v2182, %v2216
  %v2223 = vmul.f32 %v2183, %v2217
  %v2224 = vmul.f32 %v2184, %v2216
  %v2225 = vmul.f32 %v2185, %v2217
  %2226 = vset.pattern.permute.xlu0 4
  %2227 = vperm.xlu0 %2226, %v1821
  %v2228 = vpop.permute.xlu0 %2227
  %2230 = vset.pattern.permute.xlu0 4
  %2231 = vperm.xlu0 %2230, %v1822
  %v2232 = vpop.permute.xlu0 %2231
  %2234 = vset.pattern.permute.xlu0 4
  %2235 = vperm.xlu0 %2234, %v1823
  %v2236 = vpop.permute.xlu0 %2235
  %2238 = vset.pattern.permute.xlu0 4
  %2239 = vperm.xlu0 %2238, %v1824
  %v2240 = vpop.permute.xlu0 %2239
  %v2242 = vmul.f32 %v2218, %v2228
  %v2243 = vmul.f32 %v2219, %v2228
  %v2244 = vmul.f32 %v2220, %v2232
  %v2245 = vmul.f32 %v2221, %v2232
  %v2246 = vmul.f32 %v2222, %v2236
  %v2247 = vmul.f32 %v2223, %v2236
  %v2248 = vmul.f32 %v2224, %v2240
  %v2249 = vmul.f32 %v2225, %v2240
  %2250 = vset.pattern.permute.xlu0 5
  %2251 = vperm.xlu0 %2250, %v1821
  %v2252 = vpop.permute.xlu0 %2251
  %2254 = vset.pattern.permute.xlu0 5
  %2255 = vperm.xlu0 %2254, %v1822
  %v2256 = vpop.permute.xlu0 %2255
  %2258 = vset.pattern.permute.xlu0 5
  %2259 = vperm.xlu0 %2258, %v1823
  %v2260 = vpop.permute.xlu0 %2259
  %2262 = vset.pattern.permute.xlu0 5
  %2263 = vperm.xlu0 %2262, %v1824
  %v2264 = vpop.permute.xlu0 %2263
  %v2266 = vadd.f32 %v2242, %v2252
  %v2267 = vadd.f32 %v2243, %v2252
  %v2268 = vadd.f32 %v2244, %v2256
  %v2269 = vadd.f32 %v2245, %v2256
  %v2270 = vadd.f32 %v2246, %v2260
  %v2271 = vadd.f32 %v2247, %v2260
  %v2272 = vadd.f32 %v2248, %v2264
  %v2273 = vadd.f32 %v2249, %v2264
  %v2274 = vmax.f32 %v2266, 0.0
  %v2275 = vmax.f32 %v2267, 0.0
  %v2276 = vmax.f32 %v2268, 0.0
  %v2277 = vmax.f32 %v2269, 0.0
  %v2278 = vmax.f32 %v2270, 0.0
  %v2279 = vmax.f32 %v2271, 0.0
  %v2280 = vmax.f32 %v2272, 0.0
  %v2281 = vmax.f32 %v2273, 0.0
  %v2282 = vld [vmem:[%s39] sm:$0xff]
  %v2283 = vld [vmem:[%s41] sm:$0xff]
  %2285 = vset.pattern.permute.xlu0 0
  %2286 = vperm.xlu0 %2285, %v2283
  %v2287 = vpop.permute.xlu0 %2286
  %v2290 = vsel %vm418, %v2282, 0
  %2292 = vmatprep.subr.mxu0 0.0
  %2293 = vmatpush1.msra.mxu0 0.0
  %2294 = vmatprep.subr.mxu0 0.0
  %2295 = vmatpush1.msra.mxu0 0.0
  %2296 = vmatprep.subr.mxu0 0.0
  %2297 = vmatpush1.msra.mxu0 0.0
  %2298 = vmatprep.subr.mxu0 0.0
  %2299 = vmatpush1.msra.mxu0 0.0
  %2300 = vmatprep.subr.mxu0 0.0
  %2301 = vmatpush1.msra.mxu0 0.0
  %2302 = vmatprep.subr.mxu0 0.0
  %2303 = vmatpush1.msra.mxu0 0.0
  %2304 = vmatprep.subr.mxu0 0.0
  %2305 = vmatpush1.msra.mxu0 0.0
  %2306 = vmatprep.subr.mxu0 0.0
  %2307 = vmatpush1.msra.mxu0 0.0
  %2308 = vmatprep.subr.mxu0 0.0
  %2309 = vmatpush1.msra.mxu0 0.0
  %2310 = vmatprep.subr.mxu0 0.0
  %2311 = vmatpush1.msra.mxu0 0.0
  %2312 = vmatprep.subr.mxu0 0.0
  %2313 = vmatpush1.msra.mxu0 0.0
  %2314 = vmatprep.subr.mxu0 0.0
  %2315 = vmatpush1.msra.mxu0 0.0
  %2316 = vmatprep.subr.mxu0 %v2281
  %2317 = vmatpush1.msra.mxu0 %v2280
  %2318 = vmatprep.subr.mxu0 %v2279
  %2319 = vmatpush1.msra.mxu0 %v2278
  %2320 = vmatprep.subr.mxu0 %v2277
  %2321 = vmatpush1.msra.mxu0 %v2276
  %2322 = vmatprep.subr.mxu0 %v2275
  %2323 = vmatpush1.msra.mxu0 %v2274
  %2324 = vmatprep.subr.mxu0 0.0
  %2325 = vmatpush2.msra.mxu0 0.0
  %2326 = vmatprep.subr.mxu0 0.0
  %2327 = vmatpush2.msra.mxu0 0.0
  %2328 = vmatprep.subr.mxu0 0.0
  %2329 = vmatpush2.msra.mxu0 0.0
  %2330 = vmatprep.subr.mxu0 0.0
  %2331 = vmatpush2.msra.mxu0 0.0
  %2332 = vmatprep.subr.mxu0 0.0
  %2333 = vmatpush2.msra.mxu0 0.0
  %2334 = vmatprep.subr.mxu0 0.0
  %2335 = vmatpush2.msra.mxu0 0.0
  %2336 = vmatprep.subr.mxu0 0.0
  %2337 = vmatpush2.msra.mxu0 0.0
  %2338 = vmatprep.subr.mxu0 0.0
  %2339 = vmatpush2.msra.mxu0 0.0
  %2340 = vmatprep.subr.mxu0 0.0
  %2341 = vmatpush2.msra.mxu0 0.0
  %2342 = vmatprep.subr.mxu0 0.0
  %2343 = vmatpush2.msra.mxu0 0.0
  %2344 = vmatprep.subr.mxu0 0.0
  %2345 = vmatpush2.msra.mxu0 0.0
  %2346 = vmatprep.subr.mxu0 0.0
  %2347 = vmatpush2.msra.mxu0 0.0
  %2348 = vmatprep.subr.mxu0 0.0
  %2349 = vmatpush2.msra.mxu0 0.0
  %2350 = vmatprep.subr.mxu0 0.0
  %2351 = vmatpush2.msra.mxu0 0.0
  %2352 = vmatprep.subr.mxu0 0.0
  %2353 = vmatpush2.msra.mxu0 0.0
  %2354 = vmatprep.subr.mxu0 0.0
  %2355 = vmatpush2.msra.mxu0 0.0
  %2356 = vmatprep.mubr.f32.mxu0 0.0
  %2357 = vmatmul.mubr.f32.gmra.mxu0 %v2290
  %v2358 = vpop.f32.mrf.mxu0
  %v2359 = vadd.f32 %v2287, %v2358
  %v2360 = vpop.f32.mrf.mxu0
  %v2361 = vadd.f32 %v2287, %v2360
  %2362 = vdwg.mxu0
  %v2364 = vlaneseq
  %v2365 = vshrl.u32 %v2364, 7
  %v2366 = vsub.s32 0, %v2365
  %v2367 = vrot.slane %v129, %v2366
  %v2368 = vlaneseq
  %v2369 = vshrl.u32 %v2368, 7
  %v2370 = vsub.s32 1, %v2369
  %v2371 = vrot.slane %v129, %v2370
  %v2374 = vmul.f32 %v721, %v2367
  %v2375 = vmul.f32 %v723, %v2371
  %v2377 = vlaneseq
  %v2378 = vshrl.u32 %v2377, 7
  %v2379 = vsub.s32 0, %v2378
  %v2380 = vrot.slane %v127, %v2379
  %v2381 = vlaneseq
  %v2382 = vshrl.u32 %v2381, 7
  %v2383 = vsub.s32 1, %v2382
  %v2384 = vrot.slane %v127, %v2383
  %v2387 = vmul.f32 %v2374, %v2380
  %v2388 = vmul.f32 %v2375, %v2384
  %v2390 = vlaneseq
  %v2391 = vshrl.u32 %v2390, 7
  %v2392 = vsub.s32 0, %v2391
  %v2393 = vrot.slane %v131, %v2392
  %v2394 = vlaneseq
  %v2395 = vshrl.u32 %v2394, 7
  %v2396 = vsub.s32 4, %v2395
  %v2397 = vrot.slane %v131, %v2396
  %v2400 = vmul.f32 %v1813, %v2393
  %v2401 = vmul.f32 %v1815, %v2397
  %v2403 = vlaneseq
  %v2404 = vshrl.u32 %v2403, 7
  %v2405 = vsub.s32 0, %v2404
  %v2406 = vrot.slane %v128, %v2405
  %v2407 = vlaneseq
  %v2408 = vshrl.u32 %v2407, 7
  %v2409 = vsub.s32 4, %v2408
  %v2410 = vrot.slane %v128, %v2409
  %v2413 = vmul.f32 %v2400, %v2406
  %v2414 = vmul.f32 %v2401, %v2410
  %v2415 = vadd.f32 %v2387, %v2413
  %v2416 = vadd.f32 %v2388, %v2414
  %v2417 = vlaneseq
  %v2418 = vshrl.u32 %v2417, 7
  %v2419 = vsub.s32 1, %v2418
  %v2420 = vrot.slane %v131, %v2419
  %v2421 = vlaneseq
  %v2422 = vshrl.u32 %v2421, 7
  %v2423 = vsub.s32 5, %v2422
  %v2424 = vrot.slane %v131, %v2423
  %v2427 = vmul.f32 %v1813, %v2420
  %v2428 = vmul.f32 %v1815, %v2424
  %v2429 = vlaneseq
  %v2430 = vshrl.u32 %v2429, 7
  %v2431 = vsub.s32 1, %v2430
  %v2432 = vrot.slane %v128, %v2431
  %v2433 = vlaneseq
  %v2434 = vshrl.u32 %v2433, 7
  %v2435 = vsub.s32 5, %v2434
  %v2436 = vrot.slane %v128, %v2435
  %v2439 = vmul.f32 %v2427, %v2432
  %v2440 = vmul.f32 %v2428, %v2436
  %v2441 = vadd.f32 %v2415, %v2439
  %v2442 = vadd.f32 %v2416, %v2440
  %v2443 = vlaneseq
  %v2444 = vshrl.u32 %v2443, 7
  %v2445 = vsub.s32 2, %v2444
  %v2446 = vrot.slane %v131, %v2445
  %v2447 = vlaneseq
  %v2448 = vshrl.u32 %v2447, 7
  %v2449 = vsub.s32 6, %v2448
  %v2450 = vrot.slane %v131, %v2449
  %v2453 = vmul.f32 %v1813, %v2446
  %v2454 = vmul.f32 %v1815, %v2450
  %v2455 = vlaneseq
  %v2456 = vshrl.u32 %v2455, 7
  %v2457 = vsub.s32 2, %v2456
  %v2458 = vrot.slane %v128, %v2457
  %v2459 = vlaneseq
  %v2460 = vshrl.u32 %v2459, 7
  %v2461 = vsub.s32 6, %v2460
  %v2462 = vrot.slane %v128, %v2461
  %v2465 = vmul.f32 %v2453, %v2458
  %v2466 = vmul.f32 %v2454, %v2462
  %v2467 = vadd.f32 %v2441, %v2465
  %v2468 = vadd.f32 %v2442, %v2466
  %v2470 = vlaneseq
  %v2471 = vshrl.u32 %v2470, 7
  %v2472 = vsub.s32 0, %v2471
  %v2473 = vrot.slane %v130, %v2472
  %v2474 = vlaneseq
  %v2475 = vshrl.u32 %v2474, 7
  %v2476 = vsub.s32 4, %v2475
  %v2477 = vrot.slane %v130, %v2476
  %v2480 = vmul.f32 %v1267, %v2473
  %v2481 = vmul.f32 %v1269, %v2477
  %v2482 = vmul.f32 %v2480, %v2380
  %v2483 = vmul.f32 %v2481, %v2384
  %v2484 = vmul.f32 %v2359, %v132
  %v2485 = vmul.f32 %v2361, %v133
  %v2486 = vmul.f32 %v2484, %v2406
  %v2487 = vmul.f32 %v2485, %v2410
  %v2488 = vadd.f32 %v2482, %v2486
  %v2489 = vadd.f32 %v2483, %v2487
  %v2492 = vrot.slane %v2486, 1
  %v2493 = vrot.slane %v2487, 1
  %v2496 = vadd.f32 %v2488, %v2492
  %v2497 = vadd.f32 %v2489, %v2493
  %v2498 = vrot.slane %v2486, 2
  %v2499 = vrot.slane %v2487, 2
  %v2502 = vadd.f32 %v2496, %v2498
  %v2503 = vadd.f32 %v2497, %v2499
  %v2506 = vrot.slane %v132, 3
  %v2507 = vrot.slane %v133, 3
  %v2510 = vmul.f32 %v2359, %v2506
  %v2511 = vmul.f32 %v2361, %v2507
  %v2512 = vmul.f32 %v2510, %v2432
  %v2513 = vmul.f32 %v2511, %v2436
  %v2514 = vadd.f32 %v2502, %v2512
  %v2515 = vadd.f32 %v2503, %v2513
  %v2518 = vrot.slane %v2512, 1
  %v2519 = vrot.slane %v2513, 1
  %v2522 = vadd.f32 %v2514, %v2518
  %v2523 = vadd.f32 %v2515, %v2519
  %v2524 = vrot.slane %v2512, 2
  %v2525 = vrot.slane %v2513, 2
  %v2528 = vadd.f32 %v2522, %v2524
  %v2529 = vadd.f32 %v2523, %v2525
  %v2530 = vrot.slane %v132, 6
  %v2531 = vrot.slane %v133, 6
  %v2534 = vmul.f32 %v2359, %v2530
  %v2535 = vmul.f32 %v2361, %v2531
  %v2536 = vmul.f32 %v2534, %v2458
  %v2537 = vmul.f32 %v2535, %v2462
  %v2538 = vadd.f32 %v2528, %v2536
  %v2539 = vadd.f32 %v2529, %v2537
  %v2542 = vrot.slane %v2536, 1
  %v2543 = vrot.slane %v2537, 1
  %v2546 = vadd.f32 %v2538, %v2542
  %v2547 = vadd.f32 %v2539, %v2543
  %v2550 = vrot.slane %v134, 6
  %v2551 = vrot.slane %v135, 6
  %v2554 = vmul.f32 %v2359, %v2550
  %v2555 = vmul.f32 %v2361, %v2551
  %v2556 = vmul.f32 %v2554, %v2458
  %v2557 = vmul.f32 %v2555, %v2462
  %v2560 = vrot.slane %v2556, 2
  %v2561 = vrot.slane %v2557, 2
  %v2564 = vadd.f32 %v2546, %v2560
  %v2565 = vadd.f32 %v2547, %v2561
  %v2566 = vlaneseq
  %v2567 = vshrl.u32 %v2566, 7
  %v2568 = vsub.s32 1, %v2567
  %v2569 = vrot.slane %v130, %v2568
  %v2570 = vlaneseq
  %v2571 = vshrl.u32 %v2570, 7
  %v2572 = vsub.s32 5, %v2571
  %v2573 = vrot.slane %v130, %v2572
  %v2576 = vmul.f32 %v1267, %v2569
  %v2577 = vmul.f32 %v1269, %v2573
  %v2578 = vmul.f32 %v2576, %v2380
  %v2579 = vmul.f32 %v2577, %v2384
  %v2580 = vrot.slane %v134, 1
  %v2581 = vrot.slane %v135, 1
  %v2584 = vmul.f32 %v2359, %v2580
  %v2585 = vmul.f32 %v2361, %v2581
  %v2586 = vmul.f32 %v2584, %v2406
  %v2587 = vmul.f32 %v2585, %v2410
  %v2588 = vadd.f32 %v2578, %v2586
  %v2589 = vadd.f32 %v2579, %v2587
  %v2592 = vrot.slane %v2586, 1
  %v2593 = vrot.slane %v2587, 1
  %v2596 = vadd.f32 %v2588, %v2592
  %v2597 = vadd.f32 %v2589, %v2593
  %v2598 = vrot.slane %v2586, 2
  %v2599 = vrot.slane %v2587, 2
  %v2602 = vadd.f32 %v2596, %v2598
  %v2603 = vadd.f32 %v2597, %v2599
  %v2604 = vrot.slane %v134, 4
  %v2605 = vrot.slane %v135, 4
  %v2608 = vmul.f32 %v2359, %v2604
  %v2609 = vmul.f32 %v2361, %v2605
  %v2610 = vmul.f32 %v2608, %v2432
  %v2611 = vmul.f32 %v2609, %v2436
  %v2612 = vadd.f32 %v2602, %v2610
  %v2613 = vadd.f32 %v2603, %v2611
  %v2616 = vrot.slane %v2610, 1
  %v2617 = vrot.slane %v2611, 1
  %v2620 = vadd.f32 %v2612, %v2616
  %v2621 = vadd.f32 %v2613, %v2617
  %v2622 = vrot.slane %v2610, 2
  %v2623 = vrot.slane %v2611, 2
  %v2626 = vadd.f32 %v2620, %v2622
  %v2627 = vadd.f32 %v2621, %v2623
  %v2628 = vrot.slane %v134, 7
  %v2629 = vrot.slane %v135, 7
  %v2632 = vmul.f32 %v2359, %v2628
  %v2633 = vmul.f32 %v2361, %v2629
  %v2634 = vmul.f32 %v2632, %v2458
  %v2635 = vmul.f32 %v2633, %v2462
  %v2636 = vadd.f32 %v2626, %v2634
  %v2637 = vadd.f32 %v2627, %v2635
  %v2640 = vrot.slane %v136, 7
  %v2641 = vrot.slane %v137, 7
  %v2644 = vmul.f32 %v2359, %v2640
  %v2645 = vmul.f32 %v2361, %v2641
  %v2646 = vmul.f32 %v2644, %v2458
  %v2647 = vmul.f32 %v2645, %v2462
  %v2650 = vrot.slane %v2646, 1
  %v2651 = vrot.slane %v2647, 1
  %v2654 = vadd.f32 %v2636, %v2650
  %v2655 = vadd.f32 %v2637, %v2651
  %v2656 = vrot.slane %v2646, 2
  %v2657 = vrot.slane %v2647, 2
  %v2660 = vadd.f32 %v2654, %v2656
  %v2661 = vadd.f32 %v2655, %v2657
  %v2662 = vlaneseq
  %v2663 = vshrl.u32 %v2662, 7
  %v2664 = vsub.s32 2, %v2663
  %v2665 = vrot.slane %v130, %v2664
  %v2666 = vlaneseq
  %v2667 = vshrl.u32 %v2666, 7
  %v2668 = vsub.s32 6, %v2667
  %v2669 = vrot.slane %v130, %v2668
  %v2672 = vmul.f32 %v1267, %v2665
  %v2673 = vmul.f32 %v1269, %v2669
  %v2674 = vmul.f32 %v2672, %v2380
  %v2675 = vmul.f32 %v2673, %v2384
  %v2676 = vrot.slane %v136, 2
  %v2677 = vrot.slane %v137, 2
  %v2680 = vmul.f32 %v2359, %v2676
  %v2681 = vmul.f32 %v2361, %v2677
  %v2682 = vmul.f32 %v2680, %v2406
  %v2683 = vmul.f32 %v2681, %v2410
  %v2684 = vadd.f32 %v2674, %v2682
  %v2685 = vadd.f32 %v2675, %v2683
  %v2688 = vrot.slane %v2682, 1
  %v2689 = vrot.slane %v2683, 1
  %v2692 = vadd.f32 %v2684, %v2688
  %v2693 = vadd.f32 %v2685, %v2689
  %v2694 = vrot.slane %v2682, 2
  %v2695 = vrot.slane %v2683, 2
  %v2698 = vadd.f32 %v2692, %v2694
  %v2699 = vadd.f32 %v2693, %v2695
  %v2700 = vrot.slane %v136, 5
  %v2701 = vrot.slane %v137, 5
  %v2704 = vmul.f32 %v2359, %v2700
  %v2705 = vmul.f32 %v2361, %v2701
  %v2706 = vmul.f32 %v2704, %v2432
  %v2707 = vmul.f32 %v2705, %v2436
  %v2708 = vadd.f32 %v2698, %v2706
  %v2709 = vadd.f32 %v2699, %v2707
  %v2712 = vrot.slane %v2706, 1
  %v2713 = vrot.slane %v2707, 1
  %v2716 = vadd.f32 %v2708, %v2712
  %v2717 = vadd.f32 %v2709, %v2713
  %v2718 = vrot.slane %v2706, 2
  %v2719 = vrot.slane %v2707, 2
  %v2722 = vadd.f32 %v2716, %v2718
  %v2723 = vadd.f32 %v2717, %v2719
  %v2724 = vmul.f32 %v2359, %v138
  %v2725 = vmul.f32 %v2361, %v139
  %v2726 = vmul.f32 %v2724, %v2458
  %v2727 = vmul.f32 %v2725, %v2462
  %v2728 = vadd.f32 %v2722, %v2726
  %v2729 = vadd.f32 %v2723, %v2727
  %v2732 = vrot.slane %v2726, 1
  %v2733 = vrot.slane %v2727, 1
  %v2736 = vadd.f32 %v2728, %v2732
  %v2737 = vadd.f32 %v2729, %v2733
  %v2738 = vrot.slane %v2726, 2
  %v2739 = vrot.slane %v2727, 2
  %v2742 = vadd.f32 %v2736, %v2738
  %v2743 = vadd.f32 %v2737, %v2739
  %v2746 = vrot.slane %v2564, 7
  %v2747 = vrot.slane %v2565, 7
  %v2752 = vrot.slane %v2660, 6
  %v2753 = vrot.slane %v2661, 6
  %v2758 = vrot.slane %v2742, 5
  %v2759 = vrot.slane %v2743, 5
  %vm2762 = vcmask 1040384
  %v2763 = vsel %vm2762, %v2467, %v2746
  %v2764 = vsel %vm2762, %v2468, %v2747
  %vm2765 = vcmask 1041408
  %v2766 = vsel %vm2765, %v2763, %v2752
  %v2767 = vsel %vm2765, %v2764, %v2753
  %vm2768 = vcmask 1042432
  %v2769 = vsel %vm2768, %v2766, %v2758
  %v2770 = vsel %vm2768, %v2767, %v2759
  %vm2771 = vcmask 1043456
  %v2772 = vsel %vm2771, %v2769, 0.0
  %v2773 = vsel %vm2771, %v2770, 0.0
  %p2774 = scmp.eq.s32.totalorder 0, 0
  // Predicated region
  $region122: #{a_call__.3} parent=0 // pred_check
    %p2775 = pneg %p2774
  $region123: #{a_call__.3} parent=0 // pred_check_branch
    %2777 = sbr.rel (%p2775) target = $region125
  $region124: #{a_call__.3} parent=0 // pred_region
    %2778 = vst [vmem:[%s61] sm:$0xff] 0.0
  $region125: #{a_call__.3} parent=0 // pred_fallthru
    _
  %v2779 = vld [vmem:[%s61] sm:$0xff]
  %v2780 = vld [vmem:[%s55] sm:$0xff]
  %v2781 = vld [vmem:[%s55 + $0x8] sm:$0xff]
  %v2782 = vld [vmem:[%s55 + $0x10] sm:$0xff]
  %v2783 = vld [vmem:[%s55 + $0x18] sm:$0xff]
  %v2784 = vld [vmem:[%s55 + $0x20] sm:$0xff]
  %v2785 = vld [vmem:[%s55 + $0x28] sm:$0xff]
  %v2786 = vld [vmem:[%s55 + $0x30] sm:$0xff]
  %v2787 = vld [vmem:[%s55 + $0x38] sm:$0xff]
  %v2788 = vld [vmem:[%s55 + $0x40] sm:$0xff]
  %v2789 = vld [vmem:[%s55 + $0x48] sm:$0xff]
  %v2790 = vld [vmem:[%s55 + $0x50] sm:$0xff]
  %v2791 = vld [vmem:[%s55 + $0x58] sm:$0xff]
  %v2792 = vld [vmem:[%s55 + $0x60] sm:$0xff]
  %v2793 = vld [vmem:[%s55 + $0x68] sm:$0xff]
  %v2794 = vld [vmem:[%s55 + $0x70] sm:$0xff]
  %v2795 = vld [vmem:[%s55 + $0x78] sm:$0xff]
  %v2796 = vld [vmem:[%s55 + $0x80] sm:$0xff]
  %v2797 = vld [vmem:[%s55 + $0x88] sm:$0xff]
  %v2798 = vld [vmem:[%s55 + $0x90] sm:$0xff]
  %v2799 = vld [vmem:[%s55 + $0x98] sm:$0xff]
  %v2800 = vld [vmem:[%s55 + $0xa0] sm:$0xff]
  %v2801 = vld [vmem:[%s55 + $0xa8] sm:$0xff]
  %v2802 = vld [vmem:[%s55 + $0xb0] sm:$0xff]
  %v2803 = vld [vmem:[%s55 + $0xb8] sm:$0xff]
  %v2804 = vld [vmem:[%s55 + $0xc0] sm:$0xff]
  %v2805 = vld [vmem:[%s55 + $0xc8] sm:$0xff]
  %v2806 = vld [vmem:[%s55 + $0xd0] sm:$0xff]
  %v2807 = vld [vmem:[%s55 + $0xd8] sm:$0xff]
  %v2808 = vld [vmem:[%s55 + $0xe0] sm:$0xff]
  %v2809 = vld [vmem:[%s55 + $0xe8] sm:$0xff]
  %v2810 = vld [vmem:[%s55 + $0xf0] sm:$0xff]
  %v2811 = vld [vmem:[%s55 + $0xf8] sm:$0xff]
  %2812 = vmatprep.subr.mxu0 0.0
  %2813 = vmatpush1.msra.mxu0 %v2795
  %2814 = vmatprep.subr.mxu0 0.0
  %2815 = vmatpush1.msra.mxu0 %v2794
  %2816 = vmatprep.subr.mxu0 0.0
  %2817 = vmatpush1.msra.mxu0 %v2793
  %2818 = vmatprep.subr.mxu0 0.0
  %2819 = vmatpush1.msra.mxu0 %v2792
  %2820 = vmatprep.subr.mxu0 0.0
  %2821 = vmatpush1.msra.mxu0 %v2791
  %2822 = vmatprep.subr.mxu0 0.0
  %2823 = vmatpush1.msra.mxu0 %v2790
  %2824 = vmatprep.subr.mxu0 0.0
  %2825 = vmatpush1.msra.mxu0 %v2789
  %2826 = vmatprep.subr.mxu0 0.0
  %2827 = vmatpush1.msra.mxu0 %v2788
  %2828 = vmatprep.subr.mxu0 0.0
  %2829 = vmatpush1.msra.mxu0 %v2787
  %2830 = vmatprep.subr.mxu0 0.0
  %2831 = vmatpush1.msra.mxu0 %v2786
  %2832 = vmatprep.subr.mxu0 0.0
  %2833 = vmatpush1.msra.mxu0 %v2785
  %2834 = vmatprep.subr.mxu0 0.0
  %2835 = vmatpush1.msra.mxu0 %v2784
  %2836 = vmatprep.subr.mxu0 0.0
  %2837 = vmatpush1.msra.mxu0 %v2783
  %2838 = vmatprep.subr.mxu0 0.0
  %2839 = vmatpush1.msra.mxu0 %v2782
  %2840 = vmatprep.subr.mxu0 0.0
  %2841 = vmatpush1.msra.mxu0 %v2781
  %2842 = vmatprep.subr.mxu0 0.0
  %2843 = vmatpush1.msra.mxu0 %v2780
  %2844 = vmatprep.subr.mxu0 0.0
  %2845 = vmatpush2.msra.mxu0 %v2811
  %2846 = vmatprep.subr.mxu0 0.0
  %2847 = vmatpush2.msra.mxu0 %v2810
  %2848 = vmatprep.subr.mxu0 0.0
  %2849 = vmatpush2.msra.mxu0 %v2809
  %2850 = vmatprep.subr.mxu0 0.0
  %2851 = vmatpush2.msra.mxu0 %v2808
  %2852 = vmatprep.subr.mxu0 0.0
  %2853 = vmatpush2.msra.mxu0 %v2807
  %2854 = vmatprep.subr.mxu0 0.0
  %2855 = vmatpush2.msra.mxu0 %v2806
  %2856 = vmatprep.subr.mxu0 0.0
  %2857 = vmatpush2.msra.mxu0 %v2805
  %2858 = vmatprep.subr.mxu0 0.0
  %2859 = vmatpush2.msra.mxu0 %v2804
  %2860 = vmatprep.subr.mxu0 0.0
  %2861 = vmatpush2.msra.mxu0 %v2803
  %2862 = vmatprep.subr.mxu0 0.0
  %2863 = vmatpush2.msra.mxu0 %v2802
  %2864 = vmatprep.subr.mxu0 0.0
  %2865 = vmatpush2.msra.mxu0 %v2801
  %2866 = vmatprep.subr.mxu0 0.0
  %2867 = vmatpush2.msra.mxu0 %v2800
  %2868 = vmatprep.subr.mxu0 0.0
  %2869 = vmatpush2.msra.mxu0 %v2799
  %2870 = vmatprep.subr.mxu0 0.0
  %2871 = vmatpush2.msra.mxu0 %v2798
  %2872 = vmatprep.subr.mxu0 0.0
  %2873 = vmatpush2.msra.mxu0 %v2797
  %2874 = vmatprep.subr.mxu0 0.0
  %2875 = vmatpush2.msra.mxu0 %v2796
  %2876 = vmatprep.mubr.f32.mxu0 %v2773
  %2877 = vmatmul.mubr.f32.gmra.mxu0 %v2772
  %v2878 = vpop.f32.mrf.mxu0
  %v2879 = vadd.f32 0.0, %v2878
  %v2880 = vpop.f32.mrf.mxu0
  %2881 = vdwg.mxu0
  %v2882 = vadd.f32 %v2779, %v2879
  %2883 = vst [vmem:[%s61] sm:$0xff] %v2882
  // Predicated region
  $region126: #{a_call__.3} parent=0 // pred_check
    %p2884 = pneg %p2774
  $region127: #{a_call__.3} parent=0 // pred_check_branch
    %2886 = sbr.rel (%p2884) target = $region129
  $region128: #{a_call__.3} parent=0 // pred_region
    %v2887 = vld [vmem:[%s61] sm:$0xff]
    %v2888 = vld [vmem:[%s57] sm:$0x1]
    %v2890 = vlaneseq
    %v2891 = vshrl.u32 %v2890, 7
    %v2892 = vsub.s32 0, %v2891
    %v2893 = vrot.slane %v2888, %v2892
    %v2895 = vmul.f32 %v2887, %v2893
    %v2896 = vld [vmem:[%s59] sm:$0xff]
    %v2897 = vadd.f32 %v2895, %v2896
    %2898 = vst [vmem:[%s61] sm:$0xff] %v2897
  $region129: #{a_call__.3} parent=0 // pred_fallthru
    _
  // Predicated region
  $region130: #{a_call__.3} parent=0 // pred_check
    _
  $region131: #{a_call__.3} parent=0 // pred_check_branch
    %2900 = sbr.rel (0) target = $region133
  $region132: #{a_call__.3} parent=0 // pred_region
    _
  $region133: #{a_call__.3} parent=0 // pred_fallthru
    _
  // Predicated region
  $region134: #{a_call__.3} parent=0 // pred_check
    _
  $region135: #{a_call__.3} parent=0 // pred_check_branch
    %2902 = sbr.rel (0) target = $region137
  $region136: #{a_call__.3} parent=0 // pred_region
    _
  $region137: #{a_call__.3} parent=0 // pred_fallthru
    _

</llo_original>
